<compile_context>
chip_gen: v5e
topology: v5e:2x2
jax: 0.10.0
libtpu: 0.0.40
codegen_flags: <defaults>
</compile_context>

<pallas_src>
import functools

import jax
import jax.numpy as jnp
from jax.experimental import pallas as pl
from jax.experimental.pallas import tpu as pltpu


# ------------------------------------------------------------------------------------------
# Kernel 1: linear1 + GLU + causal LightweightConv1dTBC + linear2 + residual + LayerNorm,
#           fused with the Q projection and the concatenated K|V encoder projection.
#           Grid over batch blocks (Bblk batches per step).
# ------------------------------------------------------------------------------------------
def _conv_qkv_kernel(x_ref, enc_ref,
                     w1_ref, b1_ref, cwn_ref, w2_ref, b2_ref, g_ref, beta_ref,
                     wq_ref, bq_ref, wkv_ref, bkv_ref,
                     x2_ref, q_ref, kv_ref,
                     hpad_ref, *, kernel_size, scaling):
    K = kernel_size
    Bblk, T, E = x_ref.shape
    S = enc_ref.shape[1]
    C = cwn_ref.shape[1]

    x = x_ref[...]                                                      # (Bblk, T, E) f32 residual
    xf = x.reshape(Bblk * T, E)                                         # flatten: M = Bblk*T rows

    # linear1 + GLU (bf16 MXU operands, f32 accumulation; sigmoid exp goes to the EUP)
    y = jnp.dot(xf.astype(jnp.bfloat16), w1_ref[...],
                preferred_element_type=jnp.float32) + b1_ref[...]
    h = y[:, :C] * (1.0 / (1.0 + jnp.exp(-y[:, C:])))
    h = h.reshape(Bblk, T, C)

    # causal lightweight conv: padding_l = K-1, softmax-normalized (K, C) weights precomputed
    # wrapper-side.  Shifted-slice accumulation through a small VMEM halo scratch.
    w = cwn_ref[...]
    if K > 1:
        hpad_ref[:, 0:K - 1, :] = jnp.zeros((Bblk, K - 1, C), jnp.float32)
    hpad_ref[:, K - 1:, :] = h
    acc = jnp.zeros((Bblk, T, C), jnp.float32)
    for k in range(K):                                                  # out[t] = sum_k w[k]*h[t-(K-1)+k]
        acc = acc + hpad_ref[:, k:k + T, :] * w[k:k + 1, :]
    # TODO(synk): at production T replace halo slices with pltpu.roll taps + iota edge mask (XLU slot).

    # linear2 + residual + LayerNorm (post-norm, eps = 1e-5)
    z = jnp.dot(acc.reshape(Bblk * T, C).astype(jnp.bfloat16), w2_ref[...],
                preferred_element_type=jnp.float32) + b2_ref[...]
    z = z + xf
    mu = jnp.mean(z, axis=-1, keepdims=True)
    var = jnp.mean(jnp.square(z - mu), axis=-1, keepdims=True)
    x2 = (z - mu) * jax.lax.rsqrt(var + 1e-5) * g_ref[...] + beta_ref[...]
    x2_ref[...] = x2.reshape(Bblk, T, E).astype(x2_ref.dtype)

    # fused projections: scaled Q from x2, K|V from encoder_out in one (E, 2E) matmul
    q = jnp.dot(x2.astype(jnp.bfloat16), wq_ref[...],
                preferred_element_type=jnp.float32) + bq_ref[...]
    q_ref[...] = (q * scaling).reshape(Bblk, T, E).astype(q_ref.dtype)

    enc = enc_ref[...].reshape(Bblk * S, E)
    kv = jnp.dot(enc.astype(jnp.bfloat16), wkv_ref[...],
                 preferred_element_type=jnp.float32) + bkv_ref[...]
    kv_ref[...] = kv.reshape(Bblk, S, 2 * E).astype(kv_ref.dtype)


# ------------------------------------------------------------------------------------------
# Kernel 2: attention core.  Consumes lane-dense (1,T,E) Q and (1,S,2E) K|V, splits heads
#           in-kernel via static lane slices, writes lane-dense bf16 ctx + averaged attn map.
# ------------------------------------------------------------------------------------------
def _attn_core_kernel(q_ref, kv_ref, mask_ref, ctx_ref, attn_ref, *, num_heads):
    T, E = q_ref.shape[1], q_ref.shape[2]
    S = kv_ref.shape[1]
    hd = E // num_heads

    q = q_ref[0]                                                        # (T, E)  bf16, pre-scaled
    kv = kv_ref[0]                                                      # (S, 2E) bf16
    m = mask_ref[0]                                                     # (1, S)  f32, 1.0 == pad

    attn_sum = jnp.zeros((T, S), jnp.float32)
    ctx_heads = []
    for h in range(num_heads):                                          # static head unroll
        qh = q[:, h * hd:(h + 1) * hd]
        kh = kv[:, h * hd:(h + 1) * hd]
        vh = kv[:, E + h * hd:E + (h + 1) * hd]
        s = jax.lax.dot_general(qh, kh, (((1,), (1,)), ((), ())),
                                preferred_element_type=jnp.float32)      # (T, S)
        s = jnp.where(m > 0.5, -1e30, s)                                 # finite mask: no NaN on all-pad rows
        s = s - jnp.max(s, axis=-1, keepdims=True)
        e = jnp.exp(s)
        p = e * pl.reciprocal(jnp.sum(e, axis=-1, keepdims=True), approx=True)
        attn_sum = attn_sum + p
        ctx_heads.append(jnp.dot(p.astype(vh.dtype), vh,
                                 preferred_element_type=jnp.float32))    # (T, hd)
    ctx_ref[0] = jnp.concatenate(ctx_heads, axis=-1).astype(ctx_ref.dtype)   # lane-dense (T, E)
    attn_ref[0] = (attn_sum * (1.0 / num_heads)).astype(attn_ref.dtype)
    # TODO(synk): KV-tiled flash-style grid (online softmax) for production S, esp. on v7x 64MiB VMEM.


# ------------------------------------------------------------------------------------------
# Kernel 3: out_proj + residual + LN + fc1 + ReLU + fc2 + residual + LN (row-tiled grid,
#           weights VMEM-resident via constant index_map).
# ------------------------------------------------------------------------------------------
def _outproj_ffn_kernel(ctx_ref, res_ref,
                        wo_ref, bo_ref, g1_ref, be1_ref,
                        wf1_ref, bf1_ref, wf2_ref, bf2_ref, g2_ref, be2_ref,
                        o_ref):
    def layer_norm(z, g, b):
        mu = jnp.mean(z, axis=-1, keepdims=True)
        var = jnp.mean(jnp.square(z - mu), axis=-1, keepdims=True)
        return (z - mu) * jax.lax.rsqrt(var + 1e-5) * g + b

    res = res_ref[...]                                                  # (tile, E) f32
    o = jnp.dot(ctx_ref[...].astype(jnp.bfloat16), wo_ref[...],
                preferred_element_type=jnp.float32) + bo_ref[...]
    x3 = layer_norm(o + res, g1_ref[...], be1_ref[...])                 # encoder_attn_layer_norm

    hdn = jnp.dot(x3.astype(jnp.bfloat16), wf1_ref[...],
                  preferred_element_type=jnp.float32) + bf1_ref[...]
    hdn = jnp.maximum(hdn, 0.0)                                         # ReLU
    f = jnp.dot(hdn.astype(jnp.bfloat16), wf2_ref[...],
                preferred_element_type=jnp.float32) + bf2_ref[...]
    o_ref[...] = layer_norm(f + x3, g2_ref[...], be2_ref[...]).astype(o_ref.dtype)


def _const_spec(a):
    return pl.BlockSpec(a.shape, lambda *_: (0,) * a.ndim)              # weight resident in VMEM


# ------------------------------------------------------------------------------------------
# Forward wrapper (decoder_glu=True, lightweight conv, weight_softmax=True,
# normalize_before=False, no_encoder_attn=False, eval mode)
# ------------------------------------------------------------------------------------------
@functools.partial(jax.jit, static_argnums=(4, 5))
def lightconv_decoder_layer_forward(x, encoder_out, encoder_padding_mask, p, num_heads, kernel_size):
    T, B, E = x.shape
    S = encoder_out.shape[0]
    H = num_heads
    hd = E // H
    C = p["conv_w_kc"].shape[1]
    FFN = p["wf1"].shape[1]
    Kk = kernel_size
    scaling = float(hd) ** -0.5
    bf16, f32 = jnp.bfloat16, jnp.float32
    parallel = pltpu.CompilerParams(dimension_semantics=("parallel",))

    # XLA-side layout plumbing: batch-major activations, bf16 weights, fused K|V weight,
    # conv-kernel softmax precomputed once (not per grid step).
    x_bte = jnp.transpose(x, (1, 0, 2))                                 # (B, T, E)
    enc_bse = jnp.transpose(encoder_out, (1, 0, 2))                     # (B, S, E)
    mask3 = encoder_padding_mask.reshape(B, 1, S).astype(f32)
    cw_norm = jax.nn.softmax(p["conv_w_kc"], axis=0)                    # (K, C)
    w1 = p["w1"].astype(bf16)
    w2 = p["w2"].astype(bf16)
    wq = p["wq"].astype(bf16)
    wkv = jnp.concatenate([p["wk"], p["wv"]], axis=1).astype(bf16)      # (E, 2E)
    bkv = jnp.concatenate([p["bk"], p["bv"]], axis=1)                   # (1, 2E)
    wo = p["wo"].astype(bf16)
    wf1 = p["wf1"].astype(bf16)
    wf2 = p["wf2"].astype(bf16)

    # batch-block size for K1: largest divisor of B whose row tiles stay VMEM-sane (~<=512 rows).
    bblk = 1
    for d in range(1, B + 1):
        if B % d == 0 and d * max(T, S) <= 512:
            bblk = d

    # ---- kernel 1: conv block + fused Q / K|V projections ----
    k1_flops = (2 * B * T * E * 2 * C + 2 * B * T * Kk * C + 2 * B * T * C * E
                + 2 * B * T * E * E + 2 * B * S * E * 2 * E)
    k1_bytes = (4 * B * T * E * 2 + 4 * B * S * E
                + 2 * (E * 2 * C + C * E + E * E + E * 2 * E)
                + 2 * B * T * E + 2 * B * S * 2 * E)
    x2_bte, q_bte, kv_bse = pl.pallas_call(
        functools.partial(_conv_qkv_kernel, kernel_size=Kk, scaling=scaling),
        grid=(B // bblk,),
        in_specs=[
            pl.BlockSpec((bblk, T, E), lambda b: (b, 0, 0)),
            pl.BlockSpec((bblk, S, E), lambda b: (b, 0, 0)),
            _const_spec(w1), _const_spec(p["b1"]), _const_spec(cw_norm),
            _const_spec(w2), _const_spec(p["b2"]),
            _const_spec(p["ln_conv_g"]), _const_spec(p["ln_conv_b"]),
            _const_spec(wq), _const_spec(p["bq"]), _const_spec(wkv), _const_spec(bkv),
        ],
        out_specs=(
            pl.BlockSpec((bblk, T, E), lambda b: (b, 0, 0)),
            pl.BlockSpec((bblk, T, E), lambda b: (b, 0, 0)),
            pl.BlockSpec((bblk, S, 2 * E), lambda b: (b, 0, 0)),
        ),
        out_shape=(
            jax.ShapeDtypeStruct((B, T, E), f32),          # conv-block output (residual for K3)
            jax.ShapeDtypeStruct((B, T, E), bf16),         # scaled Q
            jax.ShapeDtypeStruct((B, S, 2 * E), bf16),     # K | V
        ),
        scratch_shapes=[pltpu.VMEM((bblk, T + Kk - 1, C), f32)],
        compiler_params=parallel,
        cost_estimate=pl.CostEstimate(flops=int(k1_flops), transcendentals=int(B * T * C),
                                      bytes_accessed=int(k1_bytes)),
    )(x_bte, enc_bse, w1, p["b1"], cw_norm, w2, p["b2"],
      p["ln_conv_g"], p["ln_conv_b"], wq, p["bq"], wkv, bkv)

    # ---- kernel 2: attention core (lane-dense bf16 ctx out, heads split in-kernel) ----
    k2_flops = 4 * B * T * S * E
    k2_bytes = 2 * B * T * E * 2 + 2 * B * S * 2 * E + 4 * B * S + 4 * B * T * S
    ctx_bte, attn = pl.pallas_call(
        functools.partial(_attn_core_kernel, num_heads=H),
        grid=(B,),
        in_specs=[
            pl.BlockSpec((1, T, E), lambda b: (b, 0, 0)),
            pl.BlockSpec((1, S, 2 * E), lambda b: (b, 0, 0)),
            pl.BlockSpec((1, 1, S), lambda b: (b, 0, 0)),
        ],
        out_specs=(
            pl.BlockSpec((1, T, E), lambda b: (b, 0, 0)),
            pl.BlockSpec((1, T, S), lambda b: (b, 0, 0)),
        ),
        out_shape=(
            jax.ShapeDtypeStruct((B, T, E), bf16),         # attention context (lane-dense, bf16)
            jax.ShapeDtypeStruct((B, T, S), f32),          # head-averaged attention weights
        ),
        compiler_params=parallel,
        cost_estimate=pl.CostEstimate(flops=int(k2_flops), transcendentals=int(B * H * T * S),
                                      bytes_accessed=int(k2_bytes)),
    )(q_bte, kv_bse, mask3)

    # ---- kernel 3: out_proj + LN + FFN + LN, row-tiled (tile = min(R, 512)) ----
    R = B * T
    row_tile = R
    if R > 512:
        row_tile = 8
        for t in range(8, 513, 8):
            if R % t == 0:
                row_tile = t
        if R % row_tile != 0:
            row_tile = R
    ctx_rows = ctx_bte.reshape(R, E)                       # free reshapes, no head transposes needed
    res_rows = x2_bte.reshape(R, E)

    k3_flops = 2 * R * (E * E + 2 * E * FFN)
    k3_bytes = 2 * R * E + 4 * R * E * 2 + 2 * (E * E + 2 * E * FFN)
    y_rows = pl.pallas_call(
        _outproj_ffn_kernel,
        grid=(R // row_tile,),
        in_specs=[
            pl.BlockSpec((row_tile, E), lambda i: (i, 0)),
            pl.BlockSpec((row_tile, E), lambda i: (i, 0)),
            _const_spec(wo), _const_spec(p["bo"]),
            _const_spec(p["ln_attn_g"]), _const_spec(p["ln_attn_b"]),
            _const_spec(wf1), _const_spec(p["bf1"]), _const_spec(wf2), _const_spec(p["bf2"]),
            _const_spec(p["ln_final_g"]), _const_spec(p["ln_final_b"]),
        ],
        out_specs=pl.BlockSpec((row_tile, E), lambda i: (i, 0)),
        out_shape=jax.ShapeDtypeStruct((R, E), f32),
        compiler_params=parallel,
        cost_estimate=pl.CostEstimate(flops=int(k3_flops), transcendentals=0,
                                      bytes_accessed=int(k3_bytes)),
    )(ctx_rows, res_rows, wo, p["bo"], p["ln_attn_g"], p["ln_attn_b"],
      wf1, p["bf1"], wf2, p["bf2"], p["ln_final_g"], p["ln_final_b"])

    out = jnp.transpose(y_rows.reshape(B, T, E), (1, 0, 2))             # back to (T, B, E)
    return out, attn


# ------------------------------------------------------------------------------------------
# Pure-JAX reference (same bf16-in / f32-accumulate rounding points as the kernels)
# ------------------------------------------------------------------------------------------
def reference_forward(x, enc, mask, p, num_heads, kernel_size):
    f32, bf16 = jnp.float32, jnp.bfloat16
    T, B, E = x.shape
    S = enc.shape[0]
    C = p["conv_w_kc"].shape[1]
    H = num_heads
    hd = E // H
    K = kernel_size

    def mm(a, w):
        return jax.lax.dot_general(a.astype(bf16), w.astype(bf16),
                                   (((1,), (0,)), ((), ())),
                                   preferred_element_type=f32)

    def ln(z, g, b):
        mu = z.mean(-1, keepdims=True)
        var = ((z - mu) ** 2).mean(-1, keepdims=True)
        return (z - mu) * jax.lax.rsqrt(var + 1e-5) * g + b

    xr = x.reshape(T * B, E)
    y = mm(xr, p["w1"]) + p["b1"]
    h = (y[:, :C] * (1.0 / (1.0 + jnp.exp(-y[:, C:])))).reshape(T, B, C)
    w = jax.nn.softmax(p["conv_w_kc"], axis=0)
    hpad = jnp.concatenate([jnp.zeros((K - 1, B, C), f32), h], axis=0)
    conv = sum(hpad[k:k + T] * w[k][None, None, :] for k in range(K))
    z = mm(conv.reshape(T * B, C), p["w2"]) + p["b2"]
    x2 = ln(xr + z, p["ln_conv_g"], p["ln_conv_b"])

    q = (mm(x2, p["wq"]) + p["bq"]) * (hd ** -0.5)
    er = enc.reshape(S * B, E)
    k = mm(er, p["wk"]) + p["bk"]
    v = mm(er, p["wv"]) + p["bv"]
    q4 = q.reshape(T, B, H, hd).astype(bf16)
    k4 = k.reshape(S, B, H, hd).astype(bf16)
    v4 = v.reshape(S, B, H, hd).astype(bf16)
    s = jnp.einsum('tbhd,sbhd->bhts', q4, k4, preferred_element_type=f32)
    s = jnp.where(mask[:, None, None, :] > 0.5, -1e30, s)
    pw = jax.nn.softmax(s, axis=-1)
    ctx = jnp.einsum('bhts,sbhd->tbhd', pw.astype(bf16), v4, preferred_element_type=f32)
    attn = pw.mean(axis=1)
    o = mm(ctx.reshape(T * B, E).astype(bf16), p["wo"]) + p["bo"]
    x3 = ln(x2 + o, p["ln_attn_g"], p["ln_attn_b"])

    f = jnp.maximum(mm(x3, p["wf1"]) + p["bf1"], 0.0)
    f = mm(f, p["wf2"]) + p["bf2"]
    x4 = ln(x3 + f, p["ln_final_g"], p["ln_final_b"])
    return x4.reshape(T, B, E), attn


# ------------------------------------------------------------------------------------------
# Parameters
# ------------------------------------------------------------------------------------------
def make_params(key, E, C, H, K, FFN):
    keys = iter(jax.random.split(key, 24))

    def rnd(shape, scale=0.1):
        return (scale * jax.random.normal(next(keys), shape)).astype(jnp.float32)

    def lin(n_in, n_out):
        return rnd((n_in, n_out)), rnd((1, n_out), 0.05)

    # module param self.conv.weight has shape (num_heads, 1, kernel_size);
    # expand head weights to per-channel columns -> (K, C)
    conv_w = rnd((H, 1, K), 0.5)
    conv_w_kc = jnp.repeat(conv_w.reshape(H, K).T, C // H, axis=1)

    w1, b1 = lin(E, 2 * C)
    w2, b2 = lin(C, E)
    wq, bq = lin(E, E)
    wk, bk = lin(E, E)
    wv, bv = lin(E, E)
    wo, bo = lin(E, E)
    wf1, bf1 = lin(E, FFN)
    wf2, bf2 = lin(FFN, E)

    def ln_params():
        return 1.0 + rnd((1, E), 0.05), rnd((1, E), 0.05)

    gc, bc = ln_params()
    ga, ba = ln_params()
    gf, bf = ln_params()
    return dict(w1=w1, b1=b1, w2=w2, b2=b2, wq=wq, bq=bq, wk=wk, bk=bk, wv=wv, bv=bv,
                wo=wo, bo=bo, wf1=wf1, bf1=bf1, wf2=wf2, bf2=bf2,
                ln_conv_g=gc, ln_conv_b=bc, ln_attn_g=ga, ln_attn_b=ba,
                ln_final_g=gf, ln_final_b=bf, conv_w_kc=conv_w_kc)


if __name__ == "__main__":
    # small but lane-dense shapes: embed = conv_dim = 128, ffn = 256, heads = 4, kernel = 4
    T, B, E, C, H, K, FFN, S = 8, 2, 128, 128, 4, 4, 256, 128
    key = jax.random.PRNGKey(0)
    kx, ke, kp = jax.random.split(key, 3)
    x = jax.random.normal(kx, (T, B, E), dtype=jnp.float32)                  # (seq, batch, embed)
    encoder_out = jax.random.normal(ke, (S, B, E), dtype=jnp.float32)        # (src, batch, embed)
    encoder_padding_mask = jnp.zeros((B, S), jnp.float32).at[1, S - 5:].set(1.0)  # 1.0 == pad

    params = make_params(kp, E, C, H, K, FFN)

    out, attn = lightconv_decoder_layer_forward(x, encoder_out, encoder_padding_mask, params, H, K)
    out = jax.block_until_ready(out)
    attn = jax.block_until_ready(attn)

    ref_out, ref_attn = reference_forward(x, encoder_out, encoder_padding_mask, params, H, K)
    assert out.shape == (T, B, E) and attn.shape == (B, T, S)
    assert bool(jnp.all(jnp.isfinite(out))) and bool(jnp.all(jnp.isfinite(attn)))
    assert jnp.allclose(out, ref_out, rtol=1e-2, atol=1e-2), float(jnp.max(jnp.abs(out - ref_out)))
    assert jnp.allclose(attn, ref_attn, rtol=5e-3, atol=5e-3), float(jnp.max(jnp.abs(attn - ref_attn)))
    print("KERNEL_OK")
</pallas_src>

<mosaic_0001>
module attributes {stable_mosaic.version = 11 : i64} {
  func.func @_attn_core_kernel(%arg0: i32, %arg1: memref<1x8x128xbf16, #tpu.memory_space<vmem>>, %arg2: memref<1x128x256xbf16, #tpu.memory_space<vmem>>, %arg3: memref<1x1x128xf32, #tpu.memory_space<vmem>>, %arg4: memref<1x8x128xbf16, #tpu.memory_space<vmem>>, %arg5: memref<1x8x128xf32, #tpu.memory_space<vmem>>) attributes {dimension_semantics = [#tpu.dimension_semantics<parallel>], iteration_bounds = array<i64: 2>, scalar_prefetch = 0 : i64, scratch_operands = 0 : i64, tpu.core_type = #tpu.core_type<tc>, window_params = [{transform_indices = @transform_0, window_bounds = array<i64: 1, 8, 128>}, {transform_indices = @transform_1, window_bounds = array<i64: 1, 128, 256>}, {transform_indices = @transform_2, window_bounds = array<i64: 1, 1, 128>}, {transform_indices = @transform_3, window_bounds = array<i64: 1, 8, 128>}, {transform_indices = @transform_4, window_bounds = array<i64: 1, 8, 128>}]} {
    %c0 = arith.constant 0 : index
    %c0_0 = arith.constant 0 : index
    %c0_1 = arith.constant 0 : index
    %0 = vector.load %arg1[%c0, %c0_0, %c0_1] : memref<1x8x128xbf16, #tpu.memory_space<vmem>>, vector<1x8x128xbf16>
    %1 = vector.shape_cast %0 : vector<1x8x128xbf16> to vector<8x128xbf16>
    %c0_2 = arith.constant 0 : index
    %c0_3 = arith.constant 0 : index
    %c0_4 = arith.constant 0 : index
    %2 = vector.load %arg2[%c0_2, %c0_3, %c0_4] : memref<1x128x256xbf16, #tpu.memory_space<vmem>>, vector<1x128x256xbf16>
    %3 = vector.shape_cast %2 : vector<1x128x256xbf16> to vector<128x256xbf16>
    %c0_5 = arith.constant 0 : index
    %c0_6 = arith.constant 0 : index
    %c0_7 = arith.constant 0 : index
    %4 = vector.load %arg3[%c0_5, %c0_6, %c0_7] : memref<1x1x128xf32, #tpu.memory_space<vmem>>, vector<1x1x128xf32>
    %5 = vector.shape_cast %4 : vector<1x1x128xf32> to vector<1x128xf32>
    %cst = arith.constant 0.000000e+00 : f32
    %6 = vector.broadcast %cst : f32 to vector<8x128xf32>
    %7 = vector.extract_strided_slice %1 {offsets = [0, 0], sizes = [8, 32], strides = [1, 1]} : vector<8x128xbf16> to vector<8x32xbf16>
    %8 = vector.extract_strided_slice %3 {offsets = [0, 0], sizes = [128, 32], strides = [1, 1]} : vector<128x256xbf16> to vector<128x32xbf16>
    %9 = vector.extract_strided_slice %3 {offsets = [0, 128], sizes = [128, 32], strides = [1, 1]} : vector<128x256xbf16> to vector<128x32xbf16>
    %cst_8 = arith.constant dense<0.000000e+00> : vector<8x128xf32>
    %10 = tpu.matmul %7, %8, %cst_8 {dimension_numbers = #tpu.dot_dimension_numbers<[1], [1], [0], [0], [0, 0, 1, 0], [], []>} : vector<8x32xbf16>, vector<128x32xbf16>, vector<8x128xf32> -> vector<8x128xf32>
    %cst_9 = arith.constant 5.000000e-01 : f32
    %11 = vector.broadcast %cst_9 : f32 to vector<1x128xf32>
    %12 = arith.cmpf ogt, %5, %11 : vector<1x128xf32>
    %cst_10 = arith.constant -1.000000e+30 : f32
    %13 = vector.shape_cast %12 : vector<1x128xi1> to vector<1x128xi1>
    %14 = vector.broadcast %13 : vector<1x128xi1> to vector<8x128xi1>
    %15 = vector.broadcast %cst_10 : f32 to vector<8x128xf32>
    %16 = arith.select %14, %15, %10 : vector<8x128xi1>, vector<8x128xf32>
    %cst_11 = arith.constant dense<0xFF800000> : vector<8xf32>
    %17 = vector.multi_reduction <maximumf>, %16, %cst_11 [1] : vector<8x128xf32> to vector<8xf32>
    %18 = vector.shape_cast %17 : vector<8xf32> to vector<8x1xf32>
    %19 = vector.broadcast %18 : vector<8x1xf32> to vector<8x128xf32>
    %20 = arith.subf %16, %19 : vector<8x128xf32>
    %21 = math.exp %20 : vector<8x128xf32>
    %cst_12 = arith.constant dense<0.000000e+00> : vector<8xf32>
    %22 = vector.multi_reduction <add>, %21, %cst_12 [1] : vector<8x128xf32> to vector<8xf32>
    %23 = vector.shape_cast %22 : vector<8xf32> to vector<8x1xf32>
    %24 = tpu.reciprocal %23 {approx = true} : vector<8x1xf32> -> vector<8x1xf32>
    %25 = vector.broadcast %24 : vector<8x1xf32> to vector<8x128xf32>
    %26 = arith.mulf %21, %25 : vector<8x128xf32>
    %27 = arith.addf %6, %26 : vector<8x128xf32>
    %28 = arith.truncf %26 : vector<8x128xf32> to vector<8x128xbf16>
    %cst_13 = arith.constant dense<0.000000e+00> : vector<8x32xf32>
    %29 = tpu.matmul %28, %9, %cst_13 {dimension_numbers = #tpu.dot_dimension_numbers<[1], [0], [0], [1], [0, 0, 1, 1], [], []>} : vector<8x128xbf16>, vector<128x32xbf16>, vector<8x32xf32> -> vector<8x32xf32>
    %30 = vector.extract_strided_slice %1 {offsets = [0, 32], sizes = [8, 32], strides = [1, 1]} : vector<8x128xbf16> to vector<8x32xbf16>
    %31 = vector.extract_strided_slice %3 {offsets = [0, 32], sizes = [128, 32], strides = [1, 1]} : vector<128x256xbf16> to vector<128x32xbf16>
    %32 = vector.extract_strided_slice %3 {offsets = [0, 160], sizes = [128, 32], strides = [1, 1]} : vector<128x256xbf16> to vector<128x32xbf16>
    %cst_14 = arith.constant dense<0.000000e+00> : vector<8x128xf32>
    %33 = tpu.matmul %30, %31, %cst_14 {dimension_numbers = #tpu.dot_dimension_numbers<[1], [1], [0], [0], [0, 0, 1, 0], [], []>} : vector<8x32xbf16>, vector<128x32xbf16>, vector<8x128xf32> -> vector<8x128xf32>
    %cst_15 = arith.constant 5.000000e-01 : f32
    %34 = vector.broadcast %cst_15 : f32 to vector<1x128xf32>
    %35 = arith.cmpf ogt, %5, %34 : vector<1x128xf32>
    %cst_16 = arith.constant -1.000000e+30 : f32
    %36 = vector.shape_cast %35 : vector<1x128xi1> to vector<1x128xi1>
    %37 = vector.broadcast %36 : vector<1x128xi1> to vector<8x128xi1>
    %38 = vector.broadcast %cst_16 : f32 to vector<8x128xf32>
    %39 = arith.select %37, %38, %33 : vector<8x128xi1>, vector<8x128xf32>
    %cst_17 = arith.constant dense<0xFF800000> : vector<8xf32>
    %40 = vector.multi_reduction <maximumf>, %39, %cst_17 [1] : vector<8x128xf32> to vector<8xf32>
    %41 = vector.shape_cast %40 : vector<8xf32> to vector<8x1xf32>
    %42 = vector.broadcast %41 : vector<8x1xf32> to vector<8x128xf32>
    %43 = arith.subf %39, %42 : vector<8x128xf32>
    %44 = math.exp %43 : vector<8x128xf32>
    %cst_18 = arith.constant dense<0.000000e+00> : vector<8xf32>
    %45 = vector.multi_reduction <add>, %44, %cst_18 [1] : vector<8x128xf32> to vector<8xf32>
    %46 = vector.shape_cast %45 : vector<8xf32> to vector<8x1xf32>
    %47 = tpu.reciprocal %46 {approx = true} : vector<8x1xf32> -> vector<8x1xf32>
    %48 = vector.broadcast %47 : vector<8x1xf32> to vector<8x128xf32>
    %49 = arith.mulf %44, %48 : vector<8x128xf32>
    %50 = arith.addf %27, %49 : vector<8x128xf32>
    %51 = arith.truncf %49 : vector<8x128xf32> to vector<8x128xbf16>
    %cst_19 = arith.constant dense<0.000000e+00> : vector<8x32xf32>
    %52 = tpu.matmul %51, %32, %cst_19 {dimension_numbers = #tpu.dot_dimension_numbers<[1], [0], [0], [1], [0, 0, 1, 1], [], []>} : vector<8x128xbf16>, vector<128x32xbf16>, vector<8x32xf32> -> vector<8x32xf32>
    %53 = vector.extract_strided_slice %1 {offsets = [0, 64], sizes = [8, 32], strides = [1, 1]} : vector<8x128xbf16> to vector<8x32xbf16>
    %54 = vector.extract_strided_slice %3 {offsets = [0, 64], sizes = [128, 32], strides = [1, 1]} : vector<128x256xbf16> to vector<128x32xbf16>
    %55 = vector.extract_strided_slice %3 {offsets = [0, 192], sizes = [128, 32], strides = [1, 1]} : vector<128x256xbf16> to vector<128x32xbf16>
    %cst_20 = arith.constant dense<0.000000e+00> : vector<8x128xf32>
    %56 = tpu.matmul %53, %54, %cst_20 {dimension_numbers = #tpu.dot_dimension_numbers<[1], [1], [0], [0], [0, 0, 1, 0], [], []>} : vector<8x32xbf16>, vector<128x32xbf16>, vector<8x128xf32> -> vector<8x128xf32>
    %cst_21 = arith.constant 5.000000e-01 : f32
    %57 = vector.broadcast %cst_21 : f32 to vector<1x128xf32>
    %58 = arith.cmpf ogt, %5, %57 : vector<1x128xf32>
    %cst_22 = arith.constant -1.000000e+30 : f32
    %59 = vector.shape_cast %58 : vector<1x128xi1> to vector<1x128xi1>
    %60 = vector.broadcast %59 : vector<1x128xi1> to vector<8x128xi1>
    %61 = vector.broadcast %cst_22 : f32 to vector<8x128xf32>
    %62 = arith.select %60, %61, %56 : vector<8x128xi1>, vector<8x128xf32>
    %cst_23 = arith.constant dense<0xFF800000> : vector<8xf32>
    %63 = vector.multi_reduction <maximumf>, %62, %cst_23 [1] : vector<8x128xf32> to vector<8xf32>
    %64 = vector.shape_cast %63 : vector<8xf32> to vector<8x1xf32>
    %65 = vector.broadcast %64 : vector<8x1xf32> to vector<8x128xf32>
    %66 = arith.subf %62, %65 : vector<8x128xf32>
    %67 = math.exp %66 : vector<8x128xf32>
    %cst_24 = arith.constant dense<0.000000e+00> : vector<8xf32>
    %68 = vector.multi_reduction <add>, %67, %cst_24 [1] : vector<8x128xf32> to vector<8xf32>
    %69 = vector.shape_cast %68 : vector<8xf32> to vector<8x1xf32>
    %70 = tpu.reciprocal %69 {approx = true} : vector<8x1xf32> -> vector<8x1xf32>
    %71 = vector.broadcast %70 : vector<8x1xf32> to vector<8x128xf32>
    %72 = arith.mulf %67, %71 : vector<8x128xf32>
    %73 = arith.addf %50, %72 : vector<8x128xf32>
    %74 = arith.truncf %72 : vector<8x128xf32> to vector<8x128xbf16>
    %cst_25 = arith.constant dense<0.000000e+00> : vector<8x32xf32>
    %75 = tpu.matmul %74, %55, %cst_25 {dimension_numbers = #tpu.dot_dimension_numbers<[1], [0], [0], [1], [0, 0, 1, 1], [], []>} : vector<8x128xbf16>, vector<128x32xbf16>, vector<8x32xf32> -> vector<8x32xf32>
    %76 = vector.extract_strided_slice %1 {offsets = [0, 96], sizes = [8, 32], strides = [1, 1]} : vector<8x128xbf16> to vector<8x32xbf16>
    %77 = vector.extract_strided_slice %3 {offsets = [0, 96], sizes = [128, 32], strides = [1, 1]} : vector<128x256xbf16> to vector<128x32xbf16>
    %78 = vector.extract_strided_slice %3 {offsets = [0, 224], sizes = [128, 32], strides = [1, 1]} : vector<128x256xbf16> to vector<128x32xbf16>
    %cst_26 = arith.constant dense<0.000000e+00> : vector<8x128xf32>
    %79 = tpu.matmul %76, %77, %cst_26 {dimension_numbers = #tpu.dot_dimension_numbers<[1], [1], [0], [0], [0, 0, 1, 0], [], []>} : vector<8x32xbf16>, vector<128x32xbf16>, vector<8x128xf32> -> vector<8x128xf32>
    %cst_27 = arith.constant 5.000000e-01 : f32
    %80 = vector.broadcast %cst_27 : f32 to vector<1x128xf32>
    %81 = arith.cmpf ogt, %5, %80 : vector<1x128xf32>
    %cst_28 = arith.constant -1.000000e+30 : f32
    %82 = vector.shape_cast %81 : vector<1x128xi1> to vector<1x128xi1>
    %83 = vector.broadcast %82 : vector<1x128xi1> to vector<8x128xi1>
    %84 = vector.broadcast %cst_28 : f32 to vector<8x128xf32>
    %85 = arith.select %83, %84, %79 : vector<8x128xi1>, vector<8x128xf32>
    %cst_29 = arith.constant dense<0xFF800000> : vector<8xf32>
    %86 = vector.multi_reduction <maximumf>, %85, %cst_29 [1] : vector<8x128xf32> to vector<8xf32>
    %87 = vector.shape_cast %86 : vector<8xf32> to vector<8x1xf32>
    %88 = vector.broadcast %87 : vector<8x1xf32> to vector<8x128xf32>
    %89 = arith.subf %85, %88 : vector<8x128xf32>
    %90 = math.exp %89 : vector<8x128xf32>
    %cst_30 = arith.constant dense<0.000000e+00> : vector<8xf32>
    %91 = vector.multi_reduction <add>, %90, %cst_30 [1] : vector<8x128xf32> to vector<8xf32>
    %92 = vector.shape_cast %91 : vector<8xf32> to vector<8x1xf32>
    %93 = tpu.reciprocal %92 {approx = true} : vector<8x1xf32> -> vector<8x1xf32>
    %94 = vector.broadcast %93 : vector<8x1xf32> to vector<8x128xf32>
    %95 = arith.mulf %90, %94 : vector<8x128xf32>
    %96 = arith.addf %73, %95 : vector<8x128xf32>
    %97 = arith.truncf %95 : vector<8x128xf32> to vector<8x128xbf16>
    %cst_31 = arith.constant dense<0.000000e+00> : vector<8x32xf32>
    %98 = tpu.matmul %97, %78, %cst_31 {dimension_numbers = #tpu.dot_dimension_numbers<[1], [0], [0], [1], [0, 0, 1, 1], [], []>} : vector<8x128xbf16>, vector<128x32xbf16>, vector<8x32xf32> -> vector<8x32xf32>
    %99 = tpu.concatenate %29, %52, %75, %98 in 1 : vector<8x32xf32>, vector<8x32xf32>, vector<8x32xf32>, vector<8x32xf32> -> vector<8x128xf32>
    %100 = arith.truncf %99 : vector<8x128xf32> to vector<8x128xbf16>
    %c0_32 = arith.constant 0 : index
    %c0_33 = arith.constant 0 : index
    %c0_34 = arith.constant 0 : index
    %101 = vector.load %arg4[%c0_32, %c0_33, %c0_34] : memref<1x8x128xbf16, #tpu.memory_space<vmem>>, vector<1x8x128xbf16>
    %102 = vector.shape_cast %101 : vector<1x8x128xbf16> to vector<8x128xbf16>
    %103 = vector.shape_cast %100 : vector<8x128xbf16> to vector<1x8x128xbf16>
    tpu.vector_store %arg4[%c0_32, %c0_33, %c0_34], %103 {strides = array<i32>} : memref<1x8x128xbf16, #tpu.memory_space<vmem>>, vector<1x8x128xbf16>,
    %cst_35 = arith.constant 2.500000e-01 : f32
    %104 = vector.broadcast %cst_35 : f32 to vector<8x128xf32>
    %105 = arith.mulf %96, %104 : vector<8x128xf32>
    %c0_36 = arith.constant 0 : index
    %c0_37 = arith.constant 0 : index
    %c0_38 = arith.constant 0 : index
    %106 = vector.load %arg5[%c0_36, %c0_37, %c0_38] : memref<1x8x128xf32, #tpu.memory_space<vmem>>, vector<1x8x128xf32>
    %107 = vector.shape_cast %106 : vector<1x8x128xf32> to vector<8x128xf32>
    %108 = vector.shape_cast %105 : vector<8x128xf32> to vector<1x8x128xf32>
    tpu.vector_store %arg5[%c0_36, %c0_37, %c0_38], %108 {strides = array<i32>} : memref<1x8x128xf32, #tpu.memory_space<vmem>>, vector<1x8x128xf32>,
    return
  }
  func.func @transform_0(%arg0: i32) -> (i32, i32, i32) {
    %c0_i32 = arith.constant 0 : i32
    %c0_i32_0 = arith.constant 0 : i32
    %c0_i32_1 = arith.constant 0 : i32
    return %arg0, %c0_i32, %c0_i32_0 : i32, i32, i32
  }
  func.func @transform_1(%arg0: i32) -> (i32, i32, i32) {
    %c0_i32 = arith.constant 0 : i32
    %c0_i32_0 = arith.constant 0 : i32
    %c0_i32_1 = arith.constant 0 : i32
    return %arg0, %c0_i32, %c0_i32_0 : i32, i32, i32
  }
  func.func @transform_2(%arg0: i32) -> (i32, i32, i32) {
    %c0_i32 = arith.constant 0 : i32
    %c0_i32_0 = arith.constant 0 : i32
    %c0_i32_1 = arith.constant 0 : i32
    return %arg0, %c0_i32, %c0_i32_0 : i32, i32, i32
  }
  func.func @transform_3(%arg0: i32) -> (i32, i32, i32) {
    %c0_i32 = arith.constant 0 : i32
    %c0_i32_0 = arith.constant 0 : i32
    %c0_i32_1 = arith.constant 0 : i32
    return %arg0, %c0_i32, %c0_i32_0 : i32, i32, i32
  }
  func.func @transform_4(%arg0: i32) -> (i32, i32, i32) {
    %c0_i32 = arith.constant 0 : i32
    %c0_i32_0 = arith.constant 0 : i32
    %c0_i32_1 = arith.constant 0 : i32
    return %arg0, %c0_i32, %c0_i32_0 : i32, i32, i32
  }
}

module attributes {stable_mosaic.version = 11 : i64} {
  func.func @_conv_qkv_kernel(%arg0: i32, %arg1: memref<2x8x128xf32, #tpu.memory_space<vmem>>, %arg2: memref<2x128x128xf32, #tpu.memory_space<vmem>>, %arg3: memref<128x256xbf16, #tpu.memory_space<vmem>>, %arg4: memref<1x256xf32, #tpu.memory_space<vmem>>, %arg5: memref<4x128xf32, #tpu.memory_space<vmem>>, %arg6: memref<128x128xbf16, #tpu.memory_space<vmem>>, %arg7: memref<1x128xf32, #tpu.memory_space<vmem>>, %arg8: memref<1x128xf32, #tpu.memory_space<vmem>>, %arg9: memref<1x128xf32, #tpu.memory_space<vmem>>, %arg10: memref<128x128xbf16, #tpu.memory_space<vmem>>, %arg11: memref<1x128xf32, #tpu.memory_space<vmem>>, %arg12: memref<128x256xbf16, #tpu.memory_space<vmem>>, %arg13: memref<1x256xf32, #tpu.memory_space<vmem>>, %arg14: memref<2x8x128xf32, #tpu.memory_space<vmem>>, %arg15: memref<2x8x128xbf16, #tpu.memory_space<vmem>>, %arg16: memref<2x128x256xbf16, #tpu.memory_space<vmem>>, %arg17: memref<2x11x128xf32, #tpu.memory_space<vmem>>) attributes {dimension_semantics = [#tpu.dimension_semantics<parallel>], iteration_bounds = array<i64: 1>, scalar_prefetch = 0 : i64, scratch_operands = 1 : i64, tpu.core_type = #tpu.core_type<tc>, window_params = [{transform_indices = @transform_0, window_bounds = array<i64: 2, 8, 128>}, {transform_indices = @transform_1, window_bounds = array<i64: 2, 128, 128>}, {pipeline_mode = #tpu.pipeline_mode<synchronous>, transform_indices = @transform_2, window_bounds = array<i64: 128, 256>}, {pipeline_mode = #tpu.pipeline_mode<synchronous>, transform_indices = @transform_3, window_bounds = array<i64: 1, 256>}, {pipeline_mode = #tpu.pipeline_mode<synchronous>, transform_indices = @transform_4, window_bounds = array<i64: 4, 128>}, {pipeline_mode = #tpu.pipeline_mode<synchronous>, transform_indices = @transform_5, window_bounds = array<i64: 128, 128>}, {pipeline_mode = #tpu.pipeline_mode<synchronous>, transform_indices = @transform_6, window_bounds = array<i64: 1, 128>}, {pipeline_mode = #tpu.pipeline_mode<synchronous>, transform_indices = @transform_7, window_bounds = array<i64: 1, 128>}, {pipeline_mode = #tpu.pipeline_mode<synchronous>, transform_indices = @transform_8, window_bounds = array<i64: 1, 128>}, {pipeline_mode = #tpu.pipeline_mode<synchronous>, transform_indices = @transform_9, window_bounds = array<i64: 128, 128>}, {pipeline_mode = #tpu.pipeline_mode<synchronous>, transform_indices = @transform_10, window_bounds = array<i64: 1, 128>}, {pipeline_mode = #tpu.pipeline_mode<synchronous>, transform_indices = @transform_11, window_bounds = array<i64: 128, 256>}, {pipeline_mode = #tpu.pipeline_mode<synchronous>, transform_indices = @transform_12, window_bounds = array<i64: 1, 256>}, {transform_indices = @transform_13, window_bounds = array<i64: 2, 8, 128>}, {transform_indices = @transform_14, window_bounds = array<i64: 2, 8, 128>}, {transform_indices = @transform_15, window_bounds = array<i64: 2, 128, 256>}]} {
    %c0 = arith.constant 0 : index
    %c0_0 = arith.constant 0 : index
    %c0_1 = arith.constant 0 : index
    %0 = vector.load %arg1[%c0, %c0_0, %c0_1] : memref<2x8x128xf32, #tpu.memory_space<vmem>>, vector<2x8x128xf32>
    %1 = vector.shape_cast %0 : vector<2x8x128xf32> to vector<16x128xf32>
    %2 = arith.truncf %1 : vector<16x128xf32> to vector<16x128xbf16>
    %c0_2 = arith.constant 0 : index
    %c0_3 = arith.constant 0 : index
    %3 = vector.load %arg3[%c0_2, %c0_3] : memref<128x256xbf16, #tpu.memory_space<vmem>>, vector<128x256xbf16>
    %cst = arith.constant dense<0.000000e+00> : vector<16x256xf32>
    %4 = tpu.matmul %2, %3, %cst {dimension_numbers = #tpu.dot_dimension_numbers<[1], [0], [0], [1], [0, 0, 1, 1], [], []>} : vector<16x128xbf16>, vector<128x256xbf16>, vector<16x256xf32> -> vector<16x256xf32>
    %c0_4 = arith.constant 0 : index
    %c0_5 = arith.constant 0 : index
    %5 = vector.load %arg4[%c0_4, %c0_5] : memref<1x256xf32, #tpu.memory_space<vmem>>, vector<1x256xf32>
    %6 = vector.broadcast %5 : vector<1x256xf32> to vector<16x256xf32>
    %7 = arith.addf %4, %6 : vector<16x256xf32>
    %8 = vector.extract_strided_slice %7 {offsets = [0, 0], sizes = [16, 128], strides = [1, 1]} : vector<16x256xf32> to vector<16x128xf32>
    %9 = vector.extract_strided_slice %7 {offsets = [0, 128], sizes = [16, 128], strides = [1, 1]} : vector<16x256xf32> to vector<16x128xf32>
    %cst_6 = arith.constant 0.000000e+00 : f32
    %10 = vector.broadcast %cst_6 : f32 to vector<16x128xf32>
    %11 = arith.subf %10, %9 : vector<16x128xf32>
    %12 = math.exp %11 : vector<16x128xf32>
    %cst_7 = arith.constant 1.000000e+00 : f32
    %13 = vector.broadcast %cst_7 : f32 to vector<16x128xf32>
    %14 = arith.addf %13, %12 : vector<16x128xf32>
    %cst_8 = arith.constant 1.000000e+00 : f32
    %15 = vector.broadcast %cst_8 : f32 to vector<16x128xf32>
    %16 = arith.divf %15, %14 : vector<16x128xf32>
    %17 = arith.mulf %8, %16 : vector<16x128xf32>
    %18 = vector.shape_cast %17 : vector<16x128xf32> to vector<2x8x128xf32>
    %c0_9 = arith.constant 0 : index
    %c0_10 = arith.constant 0 : index
    %19 = vector.load %arg5[%c0_9, %c0_10] : memref<4x128xf32, #tpu.memory_space<vmem>>, vector<4x128xf32>
    %cst_11 = arith.constant 0.000000e+00 : f32
    %20 = vector.broadcast %cst_11 : f32 to vector<2x3x128xf32>
    %c0_12 = arith.constant 0 : index
    %c0_13 = arith.constant 0 : index
    %c0_14 = arith.constant 0 : index
    %21 = vector.load %arg17[%c0_12, %c0_13, %c0_14] : memref<2x11x128xf32, #tpu.memory_space<vmem>>, vector<2x3x128xf32>
    tpu.vector_store %arg17[%c0_12, %c0_13, %c0_14], %20 {strides = array<i32>} : memref<2x11x128xf32, #tpu.memory_space<vmem>>, vector<2x3x128xf32>,
    %c0_15 = arith.constant 0 : index
    %c3 = arith.constant 3 : index
    %c0_16 = arith.constant 0 : index
    %22 = vector.load %arg17[%c0_15, %c3, %c0_16] : memref<2x11x128xf32, #tpu.memory_space<vmem>>, vector<2x8x128xf32>
    tpu.vector_store %arg17[%c0_15, %c3, %c0_16], %18 {strides = array<i32>} : memref<2x11x128xf32, #tpu.memory_space<vmem>>, vector<2x8x128xf32>,
    %cst_17 = arith.constant 0.000000e+00 : f32
    %23 = vector.broadcast %cst_17 : f32 to vector<2x8x128xf32>
    %c0_18 = arith.constant 0 : index
    %c0_19 = arith.constant 0 : index
    %c0_20 = arith.constant 0 : index
    %24 = vector.load %arg17[%c0_18, %c0_19, %c0_20] : memref<2x11x128xf32, #tpu.memory_space<vmem>>, vector<2x8x128xf32>
    %25 = vector.extract_strided_slice %19 {offsets = [0, 0], sizes = [1, 128], strides = [1, 1]} : vector<4x128xf32> to vector<1x128xf32>
    %26 = vector.shape_cast %25 : vector<1x128xf32> to vector<1x1x128xf32>
    %27 = vector.broadcast %26 : vector<1x1x128xf32> to vector<2x8x128xf32>
    %28 = arith.mulf %24, %27 : vector<2x8x128xf32>
    %29 = arith.addf %23, %28 : vector<2x8x128xf32>
    %c0_21 = arith.constant 0 : index
    %c1 = arith.constant 1 : index
    %c0_22 = arith.constant 0 : index
    %30 = vector.load %arg17[%c0_21, %c1, %c0_22] : memref<2x11x128xf32, #tpu.memory_space<vmem>>, vector<2x8x128xf32>
    %31 = vector.extract_strided_slice %19 {offsets = [1, 0], sizes = [1, 128], strides = [1, 1]} : vector<4x128xf32> to vector<1x128xf32>
    %32 = vector.shape_cast %31 : vector<1x128xf32> to vector<1x1x128xf32>
    %33 = vector.broadcast %32 : vector<1x1x128xf32> to vector<2x8x128xf32>
    %34 = arith.mulf %30, %33 : vector<2x8x128xf32>
    %35 = arith.addf %29, %34 : vector<2x8x128xf32>
    %c0_23 = arith.constant 0 : index
    %c2 = arith.constant 2 : index
    %c0_24 = arith.constant 0 : index
    %36 = vector.load %arg17[%c0_23, %c2, %c0_24] : memref<2x11x128xf32, #tpu.memory_space<vmem>>, vector<2x8x128xf32>
    %37 = vector.extract_strided_slice %19 {offsets = [2, 0], sizes = [1, 128], strides = [1, 1]} : vector<4x128xf32> to vector<1x128xf32>
    %38 = vector.shape_cast %37 : vector<1x128xf32> to vector<1x1x128xf32>
    %39 = vector.broadcast %38 : vector<1x1x128xf32> to vector<2x8x128xf32>
    %40 = arith.mulf %36, %39 : vector<2x8x128xf32>
    %41 = arith.addf %35, %40 : vector<2x8x128xf32>
    %c0_25 = arith.constant 0 : index
    %c3_26 = arith.constant 3 : index
    %c0_27 = arith.constant 0 : index
    %42 = vector.load %arg17[%c0_25, %c3_26, %c0_27] : memref<2x11x128xf32, #tpu.memory_space<vmem>>, vector<2x8x128xf32>
    %43 = vector.extract_strided_slice %19 {offsets = [3, 0], sizes = [1, 128], strides = [1, 1]} : vector<4x128xf32> to vector<1x128xf32>
    %44 = vector.shape_cast %43 : vector<1x128xf32> to vector<1x1x128xf32>
    %45 = vector.broadcast %44 : vector<1x1x128xf32> to vector<2x8x128xf32>
    %46 = arith.mulf %42, %45 : vector<2x8x128xf32>
    %47 = arith.addf %41, %46 : vector<2x8x128xf32>
    %48 = vector.shape_cast %47 : vector<2x8x128xf32> to vector<16x128xf32>
    %49 = arith.truncf %48 : vector<16x128xf32> to vector<16x128xbf16>
    %c0_28 = arith.constant 0 : index
    %c0_29 = arith.constant 0 : index
    %50 = vector.load %arg6[%c0_28, %c0_29] : memref<128x128xbf16, #tpu.memory_space<vmem>>, vector<128x128xbf16>
    %cst_30 = arith.constant dense<0.000000e+00> : vector<16x128xf32>
    %51 = tpu.matmul %49, %50, %cst_30 {dimension_numbers = #tpu.dot_dimension_numbers<[1], [0], [0], [1], [0, 0, 1, 1], [], []>} : vector<16x128xbf16>, vector<128x128xbf16>, vector<16x128xf32> -> vector<16x128xf32>
    %c0_31 = arith.constant 0 : index
    %c0_32 = arith.constant 0 : index
    %52 = vector.load %arg7[%c0_31, %c0_32] : memref<1x128xf32, #tpu.memory_space<vmem>>, vector<1x128xf32>
    %53 = vector.broadcast %52 : vector<1x128xf32> to vector<16x128xf32>
    %54 = arith.addf %51, %53 : vector<16x128xf32>
    %55 = arith.addf %54, %1 : vector<16x128xf32>
    %cst_33 = arith.constant dense<0.000000e+00> : vector<16xf32>
    %56 = vector.multi_reduction <add>, %55, %cst_33 [1] : vector<16x128xf32> to vector<16xf32>
    %57 = vector.shape_cast %56 : vector<16xf32> to vector<16x1xf32>
    %cst_34 = arith.constant 1.280000e+02 : f32
    %58 = vector.broadcast %cst_34 : f32 to vector<16x1xf32>
    %59 = arith.divf %57, %58 : vector<16x1xf32>
    %60 = vector.broadcast %59 : vector<16x1xf32> to vector<16x128xf32>
    %61 = arith.subf %55, %60 : vector<16x128xf32>
    %62 = arith.mulf %61, %61 : vector<16x128xf32>
    %cst_35 = arith.constant dense<0.000000e+00> : vector<16xf32>
    %63 = vector.multi_reduction <add>, %62, %cst_35 [1] : vector<16x128xf32> to vector<16xf32>
    %64 = vector.shape_cast %63 : vector<16xf32> to vector<16x1xf32>
    %cst_36 = arith.constant 1.280000e+02 : f32
    %65 = vector.broadcast %cst_36 : f32 to vector<16x1xf32>
    %66 = arith.divf %64, %65 : vector<16x1xf32>
    %67 = vector.broadcast %59 : vector<16x1xf32> to vector<16x128xf32>
    %68 = arith.subf %55, %67 : vector<16x128xf32>
    %cst_37 = arith.constant 9.99999974E-6 : f32
    %69 = vector.broadcast %cst_37 : f32 to vector<16x1xf32>
    %70 = arith.addf %66, %69 : vector<16x1xf32>
    %71 = math.rsqrt %70 : vector<16x1xf32>
    %72 = vector.broadcast %71 : vector<16x1xf32> to vector<16x128xf32>
    %73 = arith.mulf %68, %72 : vector<16x128xf32>
    %c0_38 = arith.constant 0 : index
    %c0_39 = arith.constant 0 : index
    %74 = vector.load %arg8[%c0_38, %c0_39] : memref<1x128xf32, #tpu.memory_space<vmem>>, vector<1x128xf32>
    %75 = vector.broadcast %74 : vector<1x128xf32> to vector<16x128xf32>
    %76 = arith.mulf %73, %75 : vector<16x128xf32>
    %c0_40 = arith.constant 0 : index
    %c0_41 = arith.constant 0 : index
    %77 = vector.load %arg9[%c0_40, %c0_41] : memref<1x128xf32, #tpu.memory_space<vmem>>, vector<1x128xf32>
    %78 = vector.broadcast %77 : vector<1x128xf32> to vector<16x128xf32>
    %79 = arith.addf %76, %78 : vector<16x128xf32>
    %80 = vector.shape_cast %79 : vector<16x128xf32> to vector<2x8x128xf32>
    %c0_42 = arith.constant 0 : index
    %c0_43 = arith.constant 0 : index
    %c0_44 = arith.constant 0 : index
    %81 = vector.load %arg14[%c0_42, %c0_43, %c0_44] : memref<2x8x128xf32, #tpu.memory_space<vmem>>, vector<2x8x128xf32>
    tpu.vector_store %arg14[%c0_42, %c0_43, %c0_44], %80 {strides = array<i32>} : memref<2x8x128xf32, #tpu.memory_space<vmem>>, vector<2x8x128xf32>,
    %82 = arith.truncf %79 : vector<16x128xf32> to vector<16x128xbf16>
    %c0_45 = arith.constant 0 : index
    %c0_46 = arith.constant 0 : index
    %83 = vector.load %arg10[%c0_45, %c0_46] : memref<128x128xbf16, #tpu.memory_space<vmem>>, vector<128x128xbf16>
    %cst_47 = arith.constant dense<0.000000e+00> : vector<16x128xf32>
    %84 = tpu.matmul %82, %83, %cst_47 {dimension_numbers = #tpu.dot_dimension_numbers<[1], [0], [0], [1], [0, 0, 1, 1], [], []>} : vector<16x128xbf16>, vector<128x128xbf16>, vector<16x128xf32> -> vector<16x128xf32>
    %c0_48 = arith.constant 0 : index
    %c0_49 = arith.constant 0 : index
    %85 = vector.load %arg11[%c0_48, %c0_49] : memref<1x128xf32, #tpu.memory_space<vmem>>, vector<1x128xf32>
    %86 = vector.broadcast %85 : vector<1x128xf32> to vector<16x128xf32>
    %87 = arith.addf %84, %86 : vector<16x128xf32>
    %cst_50 = arith.constant 0.176776692 : f32
    %88 = vector.broadcast %cst_50 : f32 to vector<16x128xf32>
    %89 = arith.mulf %87, %88 : vector<16x128xf32>
    %90 = vector.shape_cast %89 : vector<16x128xf32> to vector<2x8x128xf32>
    %91 = arith.truncf %90 : vector<2x8x128xf32> to vector<2x8x128xbf16>
    %c0_51 = arith.constant 0 : index
    %c0_52 = arith.constant 0 : index
    %c0_53 = arith.constant 0 : index
    %92 = vector.load %arg15[%c0_51, %c0_52, %c0_53] : memref<2x8x128xbf16, #tpu.memory_space<vmem>>, vector<2x8x128xbf16>
    tpu.vector_store %arg15[%c0_51, %c0_52, %c0_53], %91 {strides = array<i32>} : memref<2x8x128xbf16, #tpu.memory_space<vmem>>, vector<2x8x128xbf16>,
    %c0_54 = arith.constant 0 : index
    %c0_55 = arith.constant 0 : index
    %c0_56 = arith.constant 0 : index
    %93 = vector.load %arg2[%c0_54, %c0_55, %c0_56] : memref<2x128x128xf32, #tpu.memory_space<vmem>>, vector<2x128x128xf32>
    %94 = vector.shape_cast %93 : vector<2x128x128xf32> to vector<256x128xf32>
    %95 = arith.truncf %94 : vector<256x128xf32> to vector<256x128xbf16>
    %c0_57 = arith.constant 0 : index
    %c0_58 = arith.constant 0 : index
    %96 = vector.load %arg12[%c0_57, %c0_58] : memref<128x256xbf16, #tpu.memory_space<vmem>>, vector<128x256xbf16>
    %cst_59 = arith.constant dense<0.000000e+00> : vector<256x256xf32>
    %97 = tpu.matmul %95, %96, %cst_59 {dimension_numbers = #tpu.dot_dimension_numbers<[1], [0], [0], [1], [0, 0, 1, 1], [], []>} : vector<256x128xbf16>, vector<128x256xbf16>, vector<256x256xf32> -> vector<256x256xf32>
    %c0_60 = arith.constant 0 : index
    %c0_61 = arith.constant 0 : index
    %98 = vector.load %arg13[%c0_60, %c0_61] : memref<1x256xf32, #tpu.memory_space<vmem>>, vector<1x256xf32>
    %99 = vector.broadcast %98 : vector<1x256xf32> to vector<256x256xf32>
    %100 = arith.addf %97, %99 : vector<256x256xf32>
    %101 = vector.shape_cast %100 : vector<256x256xf32> to vector<2x128x256xf32>
    %102 = arith.truncf %101 : vector<2x128x256xf32> to vector<2x128x256xbf16>
    %c0_62 = arith.constant 0 : index
    %c0_63 = arith.constant 0 : index
    %c0_64 = arith.constant 0 : index
    %103 = vector.load %arg16[%c0_62, %c0_63, %c0_64] : memref<2x128x256xbf16, #tpu.memory_space<vmem>>, vector<2x128x256xbf16>
    tpu.vector_store %arg16[%c0_62, %c0_63, %c0_64], %102 {strides = array<i32>} : memref<2x128x256xbf16, #tpu.memory_space<vmem>>, vector<2x128x256xbf16>,
    return
  }
  func.func @transform_0(%arg0: i32) -> (i32, i32, i32) {
    %c0_i32 = arith.constant 0 : i32
    %c0_i32_0 = arith.constant 0 : i32
    %c0_i32_1 = arith.constant 0 : i32
    return %arg0, %c0_i32, %c0_i32_0 : i32, i32, i32
  }
  func.func @transform_1(%arg0: i32) -> (i32, i32, i32) {
    %c0_i32 = arith.constant 0 : i32
    %c0_i32_0 = arith.constant 0 : i32
    %c0_i32_1 = arith.constant 0 : i32
    return %arg0, %c0_i32, %c0_i32_0 : i32, i32, i32
  }
  func.func @transform_2(%arg0: i32) -> (i32, i32) {
    %c0_i32 = arith.constant 0 : i32
    %c0_i32_0 = arith.constant 0 : i32
    %c0_i32_1 = arith.constant 0 : i32
    return %c0_i32, %c0_i32_0 : i32, i32
  }
  func.func @transform_3(%arg0: i32) -> (i32, i32) {
    %c0_i32 = arith.constant 0 : i32
    %c0_i32_0 = arith.constant 0 : i32
    %c0_i32_1 = arith.constant 0 : i32
    return %c0_i32, %c0_i32_0 : i32, i32
  }
  func.func @transform_4(%arg0: i32) -> (i32, i32) {
    %c0_i32 = arith.constant 0 : i32
    %c0_i32_0 = arith.constant 0 : i32
    %c0_i32_1 = arith.constant 0 : i32
    return %c0_i32, %c0_i32_0 : i32, i32
  }
  func.func @transform_5(%arg0: i32) -> (i32, i32) {
    %c0_i32 = arith.constant 0 : i32
    %c0_i32_0 = arith.constant 0 : i32
    %c0_i32_1 = arith.constant 0 : i32
    return %c0_i32, %c0_i32_0 : i32, i32
  }
  func.func @transform_6(%arg0: i32) -> (i32, i32) {
    %c0_i32 = arith.constant 0 : i32
    %c0_i32_0 = arith.constant 0 : i32
    %c0_i32_1 = arith.constant 0 : i32
    return %c0_i32, %c0_i32_0 : i32, i32
  }
  func.func @transform_7(%arg0: i32) -> (i32, i32) {
    %c0_i32 = arith.constant 0 : i32
    %c0_i32_0 = arith.constant 0 : i32
    %c0_i32_1 = arith.constant 0 : i32
    return %c0_i32, %c0_i32_0 : i32, i32
  }
  func.func @transform_8(%arg0: i32) -> (i32, i32) {
    %c0_i32 = arith.constant 0 : i32
    %c0_i32_0 = arith.constant 0 : i32
    %c0_i32_1 = arith.constant 0 : i32
    return %c0_i32, %c0_i32_0 : i32, i32
  }
  func.func @transform_9(%arg0: i32) -> (i32, i32) {
    %c0_i32 = arith.constant 0 : i32
    %c0_i32_0 = arith.constant 0 : i32
    %c0_i32_1 = arith.constant 0 : i32
    return %c0_i32, %c0_i32_0 : i32, i32
  }
  func.func @transform_10(%arg0: i32) -> (i32, i32) {
    %c0_i32 = arith.constant 0 : i32
    %c0_i32_0 = arith.constant 0 : i32
    %c0_i32_1 = arith.constant 0 : i32
    return %c0_i32, %c0_i32_0 : i32, i32
  }
  func.func @transform_11(%arg0: i32) -> (i32, i32) {
    %c0_i32 = arith.constant 0 : i32
    %c0_i32_0 = arith.constant 0 : i32
    %c0_i32_1 = arith.constant 0 : i32
    return %c0_i32, %c0_i32_0 : i32, i32
  }
  func.func @transform_12(%arg0: i32) -> (i32, i32) {
    %c0_i32 = arith.constant 0 : i32
    %c0_i32_0 = arith.constant 0 : i32
    %c0_i32_1 = arith.constant 0 : i32
    return %c0_i32, %c0_i32_0 : i32, i32
  }
  func.func @transform_13(%arg0: i32) -> (i32, i32, i32) {
    %c0_i32 = arith.constant 0 : i32
    %c0_i32_0 = arith.constant 0 : i32
    %c0_i32_1 = arith.constant 0 : i32
    return %arg0, %c0_i32, %c0_i32_0 : i32, i32, i32
  }
  func.func @transform_14(%arg0: i32) -> (i32, i32, i32) {
    %c0_i32 = arith.constant 0 : i32
    %c0_i32_0 = arith.constant 0 : i32
    %c0_i32_1 = arith.constant 0 : i32
    return %arg0, %c0_i32, %c0_i32_0 : i32, i32, i32
  }
  func.func @transform_15(%arg0: i32) -> (i32, i32, i32) {
    %c0_i32 = arith.constant 0 : i32
    %c0_i32_0 = arith.constant 0 : i32
    %c0_i32_1 = arith.constant 0 : i32
    return %arg0, %c0_i32, %c0_i32_0 : i32, i32, i32
  }
}

module attributes {stable_mosaic.version = 11 : i64} {
  func.func @_outproj_ffn_kernel(%arg0: i32, %arg1: memref<16x128xbf16, #tpu.memory_space<vmem>>, %arg2: memref<16x128xf32, #tpu.memory_space<vmem>>, %arg3: memref<128x128xbf16, #tpu.memory_space<vmem>>, %arg4: memref<1x128xf32, #tpu.memory_space<vmem>>, %arg5: memref<1x128xf32, #tpu.memory_space<vmem>>, %arg6: memref<1x128xf32, #tpu.memory_space<vmem>>, %arg7: memref<128x256xbf16, #tpu.memory_space<vmem>>, %arg8: memref<1x256xf32, #tpu.memory_space<vmem>>, %arg9: memref<256x128xbf16, #tpu.memory_space<vmem>>, %arg10: memref<1x128xf32, #tpu.memory_space<vmem>>, %arg11: memref<1x128xf32, #tpu.memory_space<vmem>>, %arg12: memref<1x128xf32, #tpu.memory_space<vmem>>, %arg13: memref<16x128xf32, #tpu.memory_space<vmem>>) attributes {dimension_semantics = [#tpu.dimension_semantics<parallel>], iteration_bounds = array<i64: 1>, scalar_prefetch = 0 : i64, scratch_operands = 0 : i64, tpu.core_type = #tpu.core_type<tc>, window_params = [{transform_indices = @transform_0, window_bounds = array<i64: 16, 128>}, {transform_indices = @transform_1, window_bounds = array<i64: 16, 128>}, {pipeline_mode = #tpu.pipeline_mode<synchronous>, transform_indices = @transform_2, window_bounds = array<i64: 128, 128>}, {pipeline_mode = #tpu.pipeline_mode<synchronous>, transform_indices = @transform_3, window_bounds = array<i64: 1, 128>}, {pipeline_mode = #tpu.pipeline_mode<synchronous>, transform_indices = @transform_4, window_bounds = array<i64: 1, 128>}, {pipeline_mode = #tpu.pipeline_mode<synchronous>, transform_indices = @transform_5, window_bounds = array<i64: 1, 128>}, {pipeline_mode = #tpu.pipeline_mode<synchronous>, transform_indices = @transform_6, window_bounds = array<i64: 128, 256>}, {pipeline_mode = #tpu.pipeline_mode<synchronous>, transform_indices = @transform_7, window_bounds = array<i64: 1, 256>}, {pipeline_mode = #tpu.pipeline_mode<synchronous>, transform_indices = @transform_8, window_bounds = array<i64: 256, 128>}, {pipeline_mode = #tpu.pipeline_mode<synchronous>, transform_indices = @transform_9, window_bounds = array<i64: 1, 128>}, {pipeline_mode = #tpu.pipeline_mode<synchronous>, transform_indices = @transform_10, window_bounds = array<i64: 1, 128>}, {pipeline_mode = #tpu.pipeline_mode<synchronous>, transform_indices = @transform_11, window_bounds = array<i64: 1, 128>}, {transform_indices = @transform_12, window_bounds = array<i64: 16, 128>}]} {
    %c0 = arith.constant 0 : index
    %c0_0 = arith.constant 0 : index
    %0 = vector.load %arg2[%c0, %c0_0] : memref<16x128xf32, #tpu.memory_space<vmem>>, vector<16x128xf32>
    %c0_1 = arith.constant 0 : index
    %c0_2 = arith.constant 0 : index
    %1 = vector.load %arg1[%c0_1, %c0_2] : memref<16x128xbf16, #tpu.memory_space<vmem>>, vector<16x128xbf16>
    %c0_3 = arith.constant 0 : index
    %c0_4 = arith.constant 0 : index
    %2 = vector.load %arg3[%c0_3, %c0_4] : memref<128x128xbf16, #tpu.memory_space<vmem>>, vector<128x128xbf16>
    %cst = arith.constant dense<0.000000e+00> : vector<16x128xf32>
    %3 = tpu.matmul %1, %2, %cst {dimension_numbers = #tpu.dot_dimension_numbers<[1], [0], [0], [1], [0, 0, 1, 1], [], []>} : vector<16x128xbf16>, vector<128x128xbf16>, vector<16x128xf32> -> vector<16x128xf32>
    %c0_5 = arith.constant 0 : index
    %c0_6 = arith.constant 0 : index
    %4 = vector.load %arg4[%c0_5, %c0_6] : memref<1x128xf32, #tpu.memory_space<vmem>>, vector<1x128xf32>
    %5 = vector.broadcast %4 : vector<1x128xf32> to vector<16x128xf32>
    %6 = arith.addf %3, %5 : vector<16x128xf32>
    %7 = arith.addf %6, %0 : vector<16x128xf32>
    %c0_7 = arith.constant 0 : index
    %c0_8 = arith.constant 0 : index
    %8 = vector.load %arg5[%c0_7, %c0_8] : memref<1x128xf32, #tpu.memory_space<vmem>>, vector<1x128xf32>
    %c0_9 = arith.constant 0 : index
    %c0_10 = arith.constant 0 : index
    %9 = vector.load %arg6[%c0_9, %c0_10] : memref<1x128xf32, #tpu.memory_space<vmem>>, vector<1x128xf32>
    %cst_11 = arith.constant dense<0.000000e+00> : vector<16xf32>
    %10 = vector.multi_reduction <add>, %7, %cst_11 [1] : vector<16x128xf32> to vector<16xf32>
    %11 = vector.shape_cast %10 : vector<16xf32> to vector<16x1xf32>
    %cst_12 = arith.constant 1.280000e+02 : f32
    %12 = vector.broadcast %cst_12 : f32 to vector<16x1xf32>
    %13 = arith.divf %11, %12 : vector<16x1xf32>
    %14 = vector.broadcast %13 : vector<16x1xf32> to vector<16x128xf32>
    %15 = arith.subf %7, %14 : vector<16x128xf32>
    %16 = arith.mulf %15, %15 : vector<16x128xf32>
    %cst_13 = arith.constant dense<0.000000e+00> : vector<16xf32>
    %17 = vector.multi_reduction <add>, %16, %cst_13 [1] : vector<16x128xf32> to vector<16xf32>
    %18 = vector.shape_cast %17 : vector<16xf32> to vector<16x1xf32>
    %cst_14 = arith.constant 1.280000e+02 : f32
    %19 = vector.broadcast %cst_14 : f32 to vector<16x1xf32>
    %20 = arith.divf %18, %19 : vector<16x1xf32>
    %21 = vector.broadcast %13 : vector<16x1xf32> to vector<16x128xf32>
    %22 = arith.subf %7, %21 : vector<16x128xf32>
    %cst_15 = arith.constant 9.99999974E-6 : f32
    %23 = vector.broadcast %cst_15 : f32 to vector<16x1xf32>
    %24 = arith.addf %20, %23 : vector<16x1xf32>
    %25 = math.rsqrt %24 : vector<16x1xf32>
    %26 = vector.broadcast %25 : vector<16x1xf32> to vector<16x128xf32>
    %27 = arith.mulf %22, %26 : vector<16x128xf32>
    %28 = vector.broadcast %8 : vector<1x128xf32> to vector<16x128xf32>
    %29 = arith.mulf %27, %28 : vector<16x128xf32>
    %30 = vector.broadcast %9 : vector<1x128xf32> to vector<16x128xf32>
    %31 = arith.addf %29, %30 : vector<16x128xf32>
    %32 = arith.truncf %31 : vector<16x128xf32> to vector<16x128xbf16>
    %c0_16 = arith.constant 0 : index
    %c0_17 = arith.constant 0 : index
    %33 = vector.load %arg7[%c0_16, %c0_17] : memref<128x256xbf16, #tpu.memory_space<vmem>>, vector<128x256xbf16>
    %cst_18 = arith.constant dense<0.000000e+00> : vector<16x256xf32>
    %34 = tpu.matmul %32, %33, %cst_18 {dimension_numbers = #tpu.dot_dimension_numbers<[1], [0], [0], [1], [0, 0, 1, 1], [], []>} : vector<16x128xbf16>, vector<128x256xbf16>, vector<16x256xf32> -> vector<16x256xf32>
    %c0_19 = arith.constant 0 : index
    %c0_20 = arith.constant 0 : index
    %35 = vector.load %arg8[%c0_19, %c0_20] : memref<1x256xf32, #tpu.memory_space<vmem>>, vector<1x256xf32>
    %36 = vector.broadcast %35 : vector<1x256xf32> to vector<16x256xf32>
    %37 = arith.addf %34, %36 : vector<16x256xf32>
    %cst_21 = arith.constant 0.000000e+00 : f32
    %38 = vector.broadcast %cst_21 : f32 to vector<16x256xf32>
    %39 = arith.maximumf %37, %38 : vector<16x256xf32>
    %40 = arith.truncf %39 : vector<16x256xf32> to vector<16x256xbf16>
    %c0_22 = arith.constant 0 : index
    %c0_23 = arith.constant 0 : index
    %41 = vector.load %arg9[%c0_22, %c0_23] : memref<256x128xbf16, #tpu.memory_space<vmem>>, vector<256x128xbf16>
    %cst_24 = arith.constant dense<0.000000e+00> : vector<16x128xf32>
    %42 = tpu.matmul %40, %41, %cst_24 {dimension_numbers = #tpu.dot_dimension_numbers<[1], [0], [0], [1], [0, 0, 1, 1], [], []>} : vector<16x256xbf16>, vector<256x128xbf16>, vector<16x128xf32> -> vector<16x128xf32>
    %c0_25 = arith.constant 0 : index
    %c0_26 = arith.constant 0 : index
    %43 = vector.load %arg10[%c0_25, %c0_26] : memref<1x128xf32, #tpu.memory_space<vmem>>, vector<1x128xf32>
    %44 = vector.broadcast %43 : vector<1x128xf32> to vector<16x128xf32>
    %45 = arith.addf %42, %44 : vector<16x128xf32>
    %46 = arith.addf %45, %31 : vector<16x128xf32>
    %c0_27 = arith.constant 0 : index
    %c0_28 = arith.constant 0 : index
    %47 = vector.load %arg11[%c0_27, %c0_28] : memref<1x128xf32, #tpu.memory_space<vmem>>, vector<1x128xf32>
    %c0_29 = arith.constant 0 : index
    %c0_30 = arith.constant 0 : index
    %48 = vector.load %arg12[%c0_29, %c0_30] : memref<1x128xf32, #tpu.memory_space<vmem>>, vector<1x128xf32>
    %cst_31 = arith.constant dense<0.000000e+00> : vector<16xf32>
    %49 = vector.multi_reduction <add>, %46, %cst_31 [1] : vector<16x128xf32> to vector<16xf32>
    %50 = vector.shape_cast %49 : vector<16xf32> to vector<16x1xf32>
    %cst_32 = arith.constant 1.280000e+02 : f32
    %51 = vector.broadcast %cst_32 : f32 to vector<16x1xf32>
    %52 = arith.divf %50, %51 : vector<16x1xf32>
    %53 = vector.broadcast %52 : vector<16x1xf32> to vector<16x128xf32>
    %54 = arith.subf %46, %53 : vector<16x128xf32>
    %55 = arith.mulf %54, %54 : vector<16x128xf32>
    %cst_33 = arith.constant dense<0.000000e+00> : vector<16xf32>
    %56 = vector.multi_reduction <add>, %55, %cst_33 [1] : vector<16x128xf32> to vector<16xf32>
    %57 = vector.shape_cast %56 : vector<16xf32> to vector<16x1xf32>
    %cst_34 = arith.constant 1.280000e+02 : f32
    %58 = vector.broadcast %cst_34 : f32 to vector<16x1xf32>
    %59 = arith.divf %57, %58 : vector<16x1xf32>
    %60 = vector.broadcast %52 : vector<16x1xf32> to vector<16x128xf32>
    %61 = arith.subf %46, %60 : vector<16x128xf32>
    %cst_35 = arith.constant 9.99999974E-6 : f32
    %62 = vector.broadcast %cst_35 : f32 to vector<16x1xf32>
    %63 = arith.addf %59, %62 : vector<16x1xf32>
    %64 = math.rsqrt %63 : vector<16x1xf32>
    %65 = vector.broadcast %64 : vector<16x1xf32> to vector<16x128xf32>
    %66 = arith.mulf %61, %65 : vector<16x128xf32>
    %67 = vector.broadcast %47 : vector<1x128xf32> to vector<16x128xf32>
    %68 = arith.mulf %66, %67 : vector<16x128xf32>
    %69 = vector.broadcast %48 : vector<1x128xf32> to vector<16x128xf32>
    %70 = arith.addf %68, %69 : vector<16x128xf32>
    %c0_36 = arith.constant 0 : index
    %c0_37 = arith.constant 0 : index
    %71 = vector.load %arg13[%c0_36, %c0_37] : memref<16x128xf32, #tpu.memory_space<vmem>>, vector<16x128xf32>
    tpu.vector_store %arg13[%c0_36, %c0_37], %70 {strides = array<i32>} : memref<16x128xf32, #tpu.memory_space<vmem>>, vector<16x128xf32>,
    return
  }
  func.func @transform_0(%arg0: i32) -> (i32, i32) {
    %c0_i32 = arith.constant 0 : i32
    %c0_i32_0 = arith.constant 0 : i32
    return %arg0, %c0_i32 : i32, i32
  }
  func.func @transform_1(%arg0: i32) -> (i32, i32) {
    %c0_i32 = arith.constant 0 : i32
    %c0_i32_0 = arith.constant 0 : i32
    return %arg0, %c0_i32 : i32, i32
  }
  func.func @transform_2(%arg0: i32) -> (i32, i32) {
    %c0_i32 = arith.constant 0 : i32
    %c0_i32_0 = arith.constant 0 : i32
    %c0_i32_1 = arith.constant 0 : i32
    return %c0_i32, %c0_i32_0 : i32, i32
  }
  func.func @transform_3(%arg0: i32) -> (i32, i32) {
    %c0_i32 = arith.constant 0 : i32
    %c0_i32_0 = arith.constant 0 : i32
    %c0_i32_1 = arith.constant 0 : i32
    return %c0_i32, %c0_i32_0 : i32, i32
  }
  func.func @transform_4(%arg0: i32) -> (i32, i32) {
    %c0_i32 = arith.constant 0 : i32
    %c0_i32_0 = arith.constant 0 : i32
    %c0_i32_1 = arith.constant 0 : i32
    return %c0_i32, %c0_i32_0 : i32, i32
  }
  func.func @transform_5(%arg0: i32) -> (i32, i32) {
    %c0_i32 = arith.constant 0 : i32
    %c0_i32_0 = arith.constant 0 : i32
    %c0_i32_1 = arith.constant 0 : i32
    return %c0_i32, %c0_i32_0 : i32, i32
  }
  func.func @transform_6(%arg0: i32) -> (i32, i32) {
    %c0_i32 = arith.constant 0 : i32
    %c0_i32_0 = arith.constant 0 : i32
    %c0_i32_1 = arith.constant 0 : i32
    return %c0_i32, %c0_i32_0 : i32, i32
  }
  func.func @transform_7(%arg0: i32) -> (i32, i32) {
    %c0_i32 = arith.constant 0 : i32
    %c0_i32_0 = arith.constant 0 : i32
    %c0_i32_1 = arith.constant 0 : i32
    return %c0_i32, %c0_i32_0 : i32, i32
  }
  func.func @transform_8(%arg0: i32) -> (i32, i32) {
    %c0_i32 = arith.constant 0 : i32
    %c0_i32_0 = arith.constant 0 : i32
    %c0_i32_1 = arith.constant 0 : i32
    return %c0_i32, %c0_i32_0 : i32, i32
  }
  func.func @transform_9(%arg0: i32) -> (i32, i32) {
    %c0_i32 = arith.constant 0 : i32
    %c0_i32_0 = arith.constant 0 : i32
    %c0_i32_1 = arith.constant 0 : i32
    return %c0_i32, %c0_i32_0 : i32, i32
  }
  func.func @transform_10(%arg0: i32) -> (i32, i32) {
    %c0_i32 = arith.constant 0 : i32
    %c0_i32_0 = arith.constant 0 : i32
    %c0_i32_1 = arith.constant 0 : i32
    return %c0_i32, %c0_i32_0 : i32, i32
  }
  func.func @transform_11(%arg0: i32) -> (i32, i32) {
    %c0_i32 = arith.constant 0 : i32
    %c0_i32_0 = arith.constant 0 : i32
    %c0_i32_1 = arith.constant 0 : i32
    return %c0_i32, %c0_i32_0 : i32, i32
  }
  func.func @transform_12(%arg0: i32) -> (i32, i32) {
    %c0_i32 = arith.constant 0 : i32
    %c0_i32_0 = arith.constant 0 : i32
    return %arg0, %c0_i32 : i32, i32
  }
}

</mosaic_0001>

<llo_original>
// kernel: lightconv_decoder_layer_forward.4
$region0: #{lightconv_decoder_layer_forward.4}
  #allocation0 [shape = 'u32[]', space=smem, size = 0x4, offset = 0x4, fixed_abs, tag = 'smem constant byte address 0x4 - core index']
  #allocation1 [shape = 'u32[72,128]{1,0:T(1,128)}', space=vmem, size = 0x9000, scoped, tag = 'internal scratch']
  %s0 = inlined_call_operand.vmem [shape: bf16[2,8,128], index: 0, kind: input, shape index: {}]
  %s1 = inlined_call_operand.vmem [shape: bf16[2,128,256], index: 1, kind: input, shape index: {}]
  %s2 = inlined_call_operand.vmem [shape: f32[2,1,128], index: 2, kind: input, shape index: {}]
  %s3 = inlined_call_operand.vmem [shape: bf16[2,8,128], index: 3, kind: output, shape index: {0}]
  %s4 = inlined_call_operand.hbm [shape: f32[2,8,128], index: 4, kind: output, shape index: {1}]
  %5 = xla_tuple %s3, %s4
  %s6 = sld [smem:[#allocation0]]
  $region53: #{lightconv_decoder_layer_forward.4} parent=0
    _
  %s8 = ssub.s32 1, %s6
  %s9 = scalar_select 0, %s8, %s6
  $region1: #{lightconv_decoder_layer_forward.4} parent=0
    #allocation2 [shape = 'u8[8192]{0}', space=vmem, size = 0x2000, scoped, tag = 'output window, operand 1']
    #allocation3 [shape = 's32[2]{0}', space=sflag, size = 0x8, scoped, tag = 'scoped memory for lightconv_decoder_layer_forward.4']
    %10 = vsyncpa [#allocation3], 0
    %s11 = scalar_lea.sflag [#allocation3], 1
    %12 = vsyncpa %s11, 0
    loop: start=0, step=1, limit=4
    $region2: #{lightconv_decoder_layer_forward.4} parent=1 // loop_pre_header
      _
    $region3: #{lightconv_decoder_layer_forward.4} parent=1 // loop_header
      %s14 = sphi 0, %s18
      %p15 = scmp.ge.s32.totalorder %s14, 4
      %s24 = sphi 0, %s26
      %s27 = sphi 0, %s24
      %s28 = sphi 0, %s27
      %s44 = sphi 0, %s28
      %s50 = sphi 0, %s52
      %s53 = sphi 0, %s50
      %s54 = sphi 0, %s53
      %s70 = sphi 0, %s54
      %s76 = sphi 0, %s78
      %s79 = sphi 0, %s76
      %s80 = sphi 0, %s79
      %s96 = sphi 0, %s80
      %s102 = sphi 0, %s104
      %s105 = sphi 0, %s102
      %s106 = sphi 0, %s105
      %s122 = sphi 0, %s106
      %s128 = sphi 0, %s130
      %s131 = sphi 0, %s128
      %s132 = sphi 0, %s131
      %s148 = sphi 0, %s132
    $region4: #{lightconv_decoder_layer_forward.4} parent=1 // loop_header_branch
      %17 = sbr.rel (%p15) target = $region8
    $region5: #{lightconv_decoder_layer_forward.4} parent=1 // loop_body
      %s19 = ssub.s32 %s14, 1
      %s20 = ssub.s32 %s14, 2
      %s21 = sadd.s32 %s14, 1
      %s22 = ssub.s32 %s14, %s21
      %p23 = scmp.eq.s32.totalorder %s22, 0
      %s25 = sadd.s32 %s24, 1
      %s26 = scalar_select %p23, %s24, %s25
      %p29 = pneg %p23
      %p30 = scmp.eq.s32.totalorder %s14, 1
      %p31 = por %p29, %p30
      %p32 = scmp.ne.s32.totalorder %s24, %s27
      %p33 = scmp.eq.s32.totalorder %s14, 0
      %p34 = por %p32, %p33
      %p35 = scmp.ne.s32.totalorder %s24, %s27
      %p36 = scmp.eq.s32.totalorder %s19, 1
      %p37 = por %p35, %p36
      %p38 = scmp.ne.s32.totalorder %s27, %s28
      %p39 = scmp.eq.s32.totalorder %s19, 0
      %p40 = por %p38, %p39
      %p41 = scmp.ne.s32.totalorder %s27, %s28
      %p42 = scmp.eq.s32.totalorder %s20, 1
      %p43 = por %p41, %p42
      %p45 = scmp.ne.s32.totalorder %s28, %s44
      %p46 = scmp.eq.s32.totalorder %s20, 0
      %p47 = por %p45, %p46
      %s48 = ssub.s32 %s14, %s21
      %p49 = scmp.eq.s32.totalorder %s48, 0
      %s51 = sadd.s32 %s50, 1
      %s52 = scalar_select %p49, %s50, %s51
      %p55 = pneg %p49
      %p56 = scmp.eq.s32.totalorder %s14, 1
      %p57 = por %p55, %p56
      %p58 = scmp.ne.s32.totalorder %s50, %s53
      %p59 = scmp.eq.s32.totalorder %s14, 0
      %p60 = por %p58, %p59
      %p61 = scmp.ne.s32.totalorder %s50, %s53
      %p62 = scmp.eq.s32.totalorder %s19, 1
      %p63 = por %p61, %p62
      %p64 = scmp.ne.s32.totalorder %s53, %s54
      %p65 = scmp.eq.s32.totalorder %s19, 0
      %p66 = por %p64, %p65
      %p67 = scmp.ne.s32.totalorder %s53, %s54
      %p68 = scmp.eq.s32.totalorder %s20, 1
      %p69 = por %p67, %p68
      %p71 = scmp.ne.s32.totalorder %s54, %s70
      %p72 = scmp.eq.s32.totalorder %s20, 0
      %p73 = por %p71, %p72
      %s74 = ssub.s32 %s14, %s21
      %p75 = scmp.eq.s32.totalorder %s74, 0
      %s77 = sadd.s32 %s76, 1
      %s78 = scalar_select %p75, %s76, %s77
      %p81 = pneg %p75
      %p82 = scmp.eq.s32.totalorder %s14, 1
      %p83 = por %p81, %p82
      %p84 = scmp.ne.s32.totalorder %s76, %s79
      %p85 = scmp.eq.s32.totalorder %s14, 0
      %p86 = por %p84, %p85
      %p87 = scmp.ne.s32.totalorder %s76, %s79
      %p88 = scmp.eq.s32.totalorder %s19, 1
      %p89 = por %p87, %p88
      %p90 = scmp.ne.s32.totalorder %s79, %s80
      %p91 = scmp.eq.s32.totalorder %s19, 0
      %p92 = por %p90, %p91
      %p93 = scmp.ne.s32.totalorder %s79, %s80
      %p94 = scmp.eq.s32.totalorder %s20, 1
      %p95 = por %p93, %p94
      %p97 = scmp.ne.s32.totalorder %s80, %s96
      %p98 = scmp.eq.s32.totalorder %s20, 0
      %p99 = por %p97, %p98
      %s100 = ssub.s32 %s14, %s21
      %p101 = scmp.eq.s32.totalorder %s100, 0
      %s103 = sadd.s32 %s102, 1
      %s104 = scalar_select %p101, %s102, %s103
      %p107 = pneg %p101
      %p108 = scmp.eq.s32.totalorder %s14, 1
      %p109 = por %p107, %p108
      %p110 = scmp.ne.s32.totalorder %s102, %s105
      %p111 = scmp.eq.s32.totalorder %s14, 0
      %p112 = por %p110, %p111
      %p113 = scmp.ne.s32.totalorder %s102, %s105
      %p114 = scmp.eq.s32.totalorder %s19, 1
      %p115 = por %p113, %p114
      %p116 = scmp.ne.s32.totalorder %s105, %s106
      %p117 = scmp.eq.s32.totalorder %s19, 0
      %p118 = por %p116, %p117
      %p119 = scmp.ne.s32.totalorder %s105, %s106
      %p120 = scmp.eq.s32.totalorder %s20, 1
      %p121 = por %p119, %p120
      %p123 = scmp.ne.s32.totalorder %s106, %s122
      %p124 = scmp.eq.s32.totalorder %s20, 0
      %p125 = por %p123, %p124
      %s126 = ssub.s32 %s14, %s21
      %p127 = scmp.eq.s32.totalorder %s126, 0
      %s129 = sadd.s32 %s128, 1
      %s130 = scalar_select %p127, %s128, %s129
      %p133 = pneg %p127
      %p134 = scmp.eq.s32.totalorder %s14, 1
      %p135 = por %p133, %p134
      %p136 = scmp.ne.s32.totalorder %s128, %s131
      %p137 = scmp.eq.s32.totalorder %s14, 0
      %p138 = por %p136, %p137
      %p139 = scmp.ne.s32.totalorder %s128, %s131
      %p140 = scmp.eq.s32.totalorder %s19, 1
      %p141 = por %p139, %p140
      %p142 = scmp.ne.s32.totalorder %s131, %s132
      %p143 = scmp.eq.s32.totalorder %s19, 0
      %p144 = por %p142, %p143
      %p145 = scmp.ne.s32.totalorder %s131, %s132
      %p146 = scmp.eq.s32.totalorder %s20, 1
      %p147 = por %p145, %p146
      %p149 = scmp.ne.s32.totalorder %s132, %s148
      %p150 = scmp.eq.s32.totalorder %s20, 0
      %p151 = por %p149, %p150
      %p152 = scmp.le.s32.totalorder 1, %s14
      %p153 = scmp.lt.s32.totalorder %s14, 3
      %p154 = pnand %p152, %p153
      %p155 = pneg %p154
      // Predicated region
      $region9: #{lightconv_decoder_layer_forward.4} parent=5 // pred_check
        _
      $region10: #{lightconv_decoder_layer_forward.4} parent=5 // pred_check_branch
        %157 = sbr.rel (%p154) target = $region12
      $region11: #{lightconv_decoder_layer_forward.4} parent=5 // pred_region
        %s158 = ssub.s32 %s14, 1
      $region12: #{lightconv_decoder_layer_forward.4} parent=5 // pred_fallthru
        _
      %p159 = scmp.lt.s32.totalorder %s14, 2
      // Predicated region
      $region13: #{lightconv_decoder_layer_forward.4} parent=5 // pred_check
        %p160 = pneg %p159
      $region14: #{lightconv_decoder_layer_forward.4} parent=5 // pred_check_branch
        %162 = sbr.rel (%p160) target = $region16
      $region15: #{lightconv_decoder_layer_forward.4} parent=5 // pred_region
        // Predicated region
        $region17: #{lightconv_decoder_layer_forward.4} parent=15 // pred_check
          %p163 = pneg %p34
        $region18: #{lightconv_decoder_layer_forward.4} parent=15 // pred_check_branch
          %165 = sbr.rel (%p163) target = $region20
        $region19: #{lightconv_decoder_layer_forward.4} parent=15 // pred_region
          %p166 = scmp.lt.s32.totalorder %s14, 1
          %s167 = scalar_select %p166, %s14, 1
          %s168 = smul.addr %s167, 4
          %s169 = scalar_lea.vmem %s0, %s168
        $region20: #{lightconv_decoder_layer_forward.4} parent=15 // pred_fallthru
          _
        // Predicated region
        $region21: #{lightconv_decoder_layer_forward.4} parent=15 // pred_check
          %p170 = pneg %p60
        $region22: #{lightconv_decoder_layer_forward.4} parent=15 // pred_check_branch
          %172 = sbr.rel (%p170) target = $region24
        $region23: #{lightconv_decoder_layer_forward.4} parent=15 // pred_region
          %p173 = scmp.lt.s32.totalorder %s14, 1
          %s174 = scalar_select %p173, %s14, 1
          %s175 = smul.addr %s174, 32
          %s176 = smul.addr %s175, 4
          %s177 = scalar_lea.vmem %s1, %s176
        $region24: #{lightconv_decoder_layer_forward.4} parent=15 // pred_fallthru
          _
        // Predicated region
        $region25: #{lightconv_decoder_layer_forward.4} parent=15 // pred_check
          %p178 = pneg %p86
        $region26: #{lightconv_decoder_layer_forward.4} parent=15 // pred_check_branch
          %180 = sbr.rel (%p178) target = $region28
        $region27: #{lightconv_decoder_layer_forward.4} parent=15 // pred_region
          %p181 = scmp.lt.s32.totalorder %s14, 1
          %s182 = scalar_select %p181, %s14, 1
          %s183 = scalar_lea.vmem %s2, %s182
        $region28: #{lightconv_decoder_layer_forward.4} parent=15 // pred_fallthru
          _
      $region16: #{lightconv_decoder_layer_forward.4} parent=5 // pred_fallthru
        _
      %p184 = scmp.le.s32.totalorder 1, %s14
      %p185 = scmp.lt.s32.totalorder %s14, 3
      %p186 = pnand %p184, %p185
      %p187 = pneg %p186
      // Predicated region
      $region29: #{lightconv_decoder_layer_forward.4} parent=5 // pred_check
        _
      $region30: #{lightconv_decoder_layer_forward.4} parent=5 // pred_check_branch
        %189 = sbr.rel (%p186) target = $region32
      $region31: #{lightconv_decoder_layer_forward.4} parent=5 // pred_region
        %s190 = ssub.s32 %s14, 1
        %p191 = scmp.lt.s32.totalorder %s19, 1
        %s192 = scalar_select %p191, %s19, 1
        %s193 = smul.addr %s192, 4
        %s194 = scalar_lea.vmem %s0, %s193
        %p195 = pneg %p40
        %p196 = pneg %p37
        %p197 = scmp.lt.s32.totalorder %s19, 1
        %s198 = scalar_select %p197, %s19, 1
        %s199 = smul.addr %s198, 32
        %s200 = smul.addr %s199, 4
        %s201 = scalar_lea.vmem %s1, %s200
        %p202 = pneg %p66
        %p203 = pneg %p63
        %p204 = scmp.lt.s32.totalorder %s19, 1
        %s205 = scalar_select %p204, %s19, 1
        %s206 = scalar_lea.vmem %s2, %s205
        %p207 = pneg %p92
        %p208 = pneg %p89
        %p209 = pneg %p118
        %p210 = pneg %p115
        %p211 = scmp.lt.s32.totalorder %s19, 1
        %s212 = scalar_select %p211, %s19, 1
        %s213 = smul.addr %s212, 4
        %s214 = scalar_lea.vmem %s3, %s213
        %p215 = pneg %p144
        %p216 = pneg %p141
        %s217 = sand.u32 %s131, 1
        %s218 = scalar_lea.sflag [#allocation3], %s217
        %s219 = sand.u32 %s131, 1
        %s220 = smul.addr %s219, 8
        %s221 = scalar_lea.vmem [#allocation2], %s220
        %p222 = scmp.lt.s32.totalorder %s19, 1
        %s223 = scalar_select %p222, %s19, 1
        %s224 = smul.addr %s223, 4
        %s225 = scalar_lea.vmem %s0, %s224
        %p226 = scmp.lt.s32.totalorder %s19, 1
        %s227 = scalar_select %p226, %s19, 1
        %s228 = smul.addr %s227, 32
        %s229 = smul.addr %s228, 4
        %s230 = scalar_lea.vmem %s1, %s229
        %p231 = scmp.lt.s32.totalorder %s19, 1
        %s232 = scalar_select %p231, %s19, 1
        %s233 = scalar_lea.vmem %s2, %s232
        %p234 = scmp.lt.s32.totalorder %s19, 1
        %s235 = scalar_select %p234, %s19, 1
        %s236 = smul.addr %s235, 4
        %s237 = scalar_lea.vmem %s3, %s236
        %v238 = vld [vmem:[%s225] sm:$0xf]
        %v239 = vld [vmem:[%s230] sm:$0xff]
        %v240 = vld [vmem:[%s230 + $0x8] sm:$0xff]
        %v241 = vld [vmem:[%s230 + $0x10] sm:$0xff]
        %v242 = vld [vmem:[%s230 + $0x18] sm:$0xff]
        %v243 = vld [vmem:[%s230 + $0x20] sm:$0xff]
        %v244 = vld [vmem:[%s230 + $0x28] sm:$0xff]
        %v245 = vld [vmem:[%s230 + $0x30] sm:$0xff]
        %v246 = vld [vmem:[%s230 + $0x38] sm:$0xff]
        %v247 = vld [vmem:[%s230 + $0x40] sm:$0xff]
        %v248 = vld [vmem:[%s230 + $0x48] sm:$0xff]
        %v249 = vld [vmem:[%s230 + $0x50] sm:$0xff]
        %v250 = vld [vmem:[%s230 + $0x58] sm:$0xff]
        %v251 = vld [vmem:[%s230 + $0x60] sm:$0xff]
        %v252 = vld [vmem:[%s230 + $0x68] sm:$0xff]
        %v253 = vld [vmem:[%s230 + $0x70] sm:$0xff]
        %v254 = vld [vmem:[%s230 + $0x78] sm:$0xff]
        %v255 = vld [vmem:[%s233] sm:$0x1]
        %v272 = vunpack.c.l.b16 %v239
        %v273 = vunpack.c.l.b16 %v240
        %v274 = vunpack.c.l.b16 %v241
        %v275 = vunpack.c.l.b16 %v242
        %v276 = vunpack.c.l.b16 %v243
        %v277 = vunpack.c.l.b16 %v244
        %v278 = vunpack.c.l.b16 %v245
        %v279 = vunpack.c.l.b16 %v246
        %v280 = vunpack.c.l.b16 %v247
        %v281 = vunpack.c.l.b16 %v248
        %v282 = vunpack.c.l.b16 %v249
        %v283 = vunpack.c.l.b16 %v250
        %v284 = vunpack.c.l.b16 %v251
        %v285 = vunpack.c.l.b16 %v252
        %v286 = vunpack.c.l.b16 %v253
        %v287 = vunpack.c.l.b16 %v254
        %v288 = vpack.c.b16 %v273, %v272
        %v289 = vpack.c.b16 %v275, %v274
        %v290 = vpack.c.b16 %v277, %v276
        %v291 = vpack.c.b16 %v279, %v278
        %v292 = vpack.c.b16 %v281, %v280
        %v293 = vpack.c.b16 %v283, %v282
        %v294 = vpack.c.b16 %v285, %v284
        %v295 = vpack.c.b16 %v287, %v286
        %vm296 = vcmask 261120
        %v298 = vsel %vm296, %v238, 0
        %v301 = vsel %vm296, %v288, 0
        %v304 = vsel %vm296, %v289, 0
        %v307 = vsel %vm296, %v290, 0
        %v310 = vsel %vm296, %v291, 0
        %v313 = vsel %vm296, %v292, 0
        %v316 = vsel %vm296, %v293, 0
        %v319 = vsel %vm296, %v294, 0
        %v322 = vsel %vm296, %v295, 0
        %324 = vmatpush.bf16.xpose.msra.mxu0 %v322
        %325 = vmatpush.bf16.xpose.msra.mxu0 %v319
        %326 = vmatpush.bf16.xpose.msra.mxu0 %v316
        %327 = vmatpush.bf16.xpose.msra.mxu0 %v313
        %328 = vmatpush.bf16.xpose.msra.mxu0 %v310
        %329 = vmatpush.bf16.xpose.msra.mxu0 %v307
        %330 = vmatpush.bf16.xpose.msra.mxu0 %v304
        %331 = vmatpush.bf16.xpose.msra.mxu0 %v301
        %332 = vmatmul.bf16.gmra.mxu0 %v298
        %v333 = vpop.f32.mrf.mxu0
        %v334 = vadd.f32 0.0, %v333
        %v335 = vpop.f32.mrf.mxu0
        %336 = vdwg.mxu0
        %vm337 = vcmp.gt.f32.partialorder %v255, 0.5
        %v338 = vsel %vm337, 1, 0
        %v339 = vperm.slane %v338, 0
        %vm340 = vcmp.eq.s32.totalorder %v339, 1
        %v341 = vsel %vm340, -1e+30, %v334
        %342 = vmax.xlane.f32.xlu0 %v341
        %v343 = vpop.xlane.xlu0 %342
        %v344 = vsub.f32 %v341, %v343
        %v345 = vmul.f32 %v344, 1.442695
        %v346 = vpow.pop %v345
        %347 = vadd.xlane.f32.xlu0 %v346
        %v348 = vpop.xlane.xlu0 %347
        %v349 = vrcp.pop %v348
        %v350 = vmul.f32 %v346, %v349
        %v351 = vadd.f32 %v350, 0.0
        %v352 = vpack.c.bf16 %v350, %v350
        %v353 = vunpack.c.h.b16 %v239
        %v354 = vunpack.c.h.b16 %v240
        %v355 = vunpack.c.h.b16 %v241
        %v356 = vunpack.c.h.b16 %v242
        %v357 = vunpack.c.h.b16 %v243
        %v358 = vunpack.c.h.b16 %v244
        %v359 = vunpack.c.h.b16 %v245
        %v360 = vunpack.c.h.b16 %v246
        %v361 = vunpack.c.h.b16 %v247
        %v362 = vunpack.c.h.b16 %v248
        %v363 = vunpack.c.h.b16 %v249
        %v364 = vunpack.c.h.b16 %v250
        %v365 = vunpack.c.h.b16 %v251
        %v366 = vunpack.c.h.b16 %v252
        %v367 = vunpack.c.h.b16 %v253
        %v368 = vunpack.c.h.b16 %v254
        %v369 = vpack.c.b16 %v354, %v353
        %v370 = vpack.c.b16 %v356, %v355
        %v371 = vpack.c.b16 %v358, %v357
        %v372 = vpack.c.b16 %v360, %v359
        %v373 = vpack.c.b16 %v362, %v361
        %v374 = vpack.c.b16 %v364, %v363
        %v375 = vpack.c.b16 %v366, %v365
        %v376 = vpack.c.b16 %v368, %v367
        %385 = vmatpush.bf16.msra.mxu0 %v376
        %386 = vmatpush.bf16.msra.mxu0 %v375
        %387 = vmatpush.bf16.msra.mxu0 %v374
        %388 = vmatpush.bf16.msra.mxu0 %v373
        %389 = vmatpush.bf16.msra.mxu0 %v372
        %390 = vmatpush.bf16.msra.mxu0 %v371
        %391 = vmatpush.bf16.msra.mxu0 %v370
        %392 = vmatpush.bf16.msra.mxu0 %v369
        %393 = vmatmul.bf16.gmra.mxu0 %v352
        %v394 = vpop.f32.mrf.mxu0
        %v395 = vadd.f32 0.0, %v394
        %v396 = vpop.f32.mrf.mxu0
        %397 = vdwg.mxu0
        %v399 = vunpack.c.l.b16 %v238
        %v400 = vpack.c.b16 %v399, %v399
        %401 = vrot.lane.b32.xlu0 %v400, 96
        %v402 = vpop.permute.xlu0 %401
        %403 = vrot.lane.b32.xlu0 %v288, 96
        %v404 = vpop.permute.xlu0 %403
        %405 = vrot.lane.b32.xlu0 %v289, 96
        %v406 = vpop.permute.xlu0 %405
        %407 = vrot.lane.b32.xlu0 %v290, 96
        %v408 = vpop.permute.xlu0 %407
        %409 = vrot.lane.b32.xlu0 %v291, 96
        %v410 = vpop.permute.xlu0 %409
        %411 = vrot.lane.b32.xlu0 %v292, 96
        %v412 = vpop.permute.xlu0 %411
        %413 = vrot.lane.b32.xlu0 %v293, 96
        %v414 = vpop.permute.xlu0 %413
        %415 = vrot.lane.b32.xlu0 %v294, 96
        %v416 = vpop.permute.xlu0 %415
        %417 = vrot.lane.b32.xlu0 %v295, 96
        %v418 = vpop.permute.xlu0 %417
        %v420 = vsel %vm296, %v402, 0
        %v423 = vsel %vm296, %v404, 0
        %v426 = vsel %vm296, %v406, 0
        %v429 = vsel %vm296, %v408, 0
        %v432 = vsel %vm296, %v410, 0
        %v435 = vsel %vm296, %v412, 0
        %v438 = vsel %vm296, %v414, 0
        %v441 = vsel %vm296, %v416, 0
        %v444 = vsel %vm296, %v418, 0
        %446 = vmatpush.bf16.xpose.msra.mxu0 %v444
        %447 = vmatpush.bf16.xpose.msra.mxu0 %v441
        %448 = vmatpush.bf16.xpose.msra.mxu0 %v438
        %449 = vmatpush.bf16.xpose.msra.mxu0 %v435
        %450 = vmatpush.bf16.xpose.msra.mxu0 %v432
        %451 = vmatpush.bf16.xpose.msra.mxu0 %v429
        %452 = vmatpush.bf16.xpose.msra.mxu0 %v426
        %453 = vmatpush.bf16.xpose.msra.mxu0 %v423
        %454 = vmatmul.bf16.gmra.mxu0 %v420
        %v455 = vpop.f32.mrf.mxu0
        %v456 = vadd.f32 0.0, %v455
        %v457 = vpop.f32.mrf.mxu0
        %458 = vdwg.mxu0
        %v459 = vsel %vm340, -1e+30, %v456
        %460 = vmax.xlane.f32.xlu0 %v459
        %v461 = vpop.xlane.xlu0 %460
        %v462 = vsub.f32 %v459, %v461
        %v463 = vmul.f32 %v462, 1.442695
        %v464 = vpow.pop %v463
        %465 = vadd.xlane.f32.xlu0 %v464
        %v466 = vpop.xlane.xlu0 %465
        %v467 = vrcp.pop %v466
        %v468 = vmul.f32 %v464, %v467
        %v469 = vadd.f32 %v351, %v468
        %v470 = vpack.c.bf16 %v468, %v468
        %471 = vrot.lane.b32.xlu0 %v369, 96
        %v472 = vpop.permute.xlu0 %471
        %473 = vrot.lane.b32.xlu0 %v370, 96
        %v474 = vpop.permute.xlu0 %473
        %475 = vrot.lane.b32.xlu0 %v371, 96
        %v476 = vpop.permute.xlu0 %475
        %477 = vrot.lane.b32.xlu0 %v372, 96
        %v478 = vpop.permute.xlu0 %477
        %479 = vrot.lane.b32.xlu0 %v373, 96
        %v480 = vpop.permute.xlu0 %479
        %481 = vrot.lane.b32.xlu0 %v374, 96
        %v482 = vpop.permute.xlu0 %481
        %483 = vrot.lane.b32.xlu0 %v375, 96
        %v484 = vpop.permute.xlu0 %483
        %485 = vrot.lane.b32.xlu0 %v376, 96
        %v486 = vpop.permute.xlu0 %485
        %495 = vmatpush.bf16.msra.mxu0 %v486
        %496 = vmatpush.bf16.msra.mxu0 %v484
        %497 = vmatpush.bf16.msra.mxu0 %v482
        %498 = vmatpush.bf16.msra.mxu0 %v480
        %499 = vmatpush.bf16.msra.mxu0 %v478
        %500 = vmatpush.bf16.msra.mxu0 %v476
        %501 = vmatpush.bf16.msra.mxu0 %v474
        %502 = vmatpush.bf16.msra.mxu0 %v472
        %503 = vmatmul.bf16.gmra.mxu0 %v470
        %v504 = vpop.f32.mrf.mxu0
        %v505 = vadd.f32 0.0, %v504
        %v506 = vpop.f32.mrf.mxu0
        %507 = vdwg.mxu0
        %508 = vrot.lane.b32.xlu0 %v400, 64
        %v509 = vpop.permute.xlu0 %508
        %510 = vrot.lane.b32.xlu0 %v288, 64
        %v511 = vpop.permute.xlu0 %510
        %512 = vrot.lane.b32.xlu0 %v289, 64
        %v513 = vpop.permute.xlu0 %512
        %514 = vrot.lane.b32.xlu0 %v290, 64
        %v515 = vpop.permute.xlu0 %514
        %516 = vrot.lane.b32.xlu0 %v291, 64
        %v517 = vpop.permute.xlu0 %516
        %518 = vrot.lane.b32.xlu0 %v292, 64
        %v519 = vpop.permute.xlu0 %518
        %520 = vrot.lane.b32.xlu0 %v293, 64
        %v521 = vpop.permute.xlu0 %520
        %522 = vrot.lane.b32.xlu0 %v294, 64
        %v523 = vpop.permute.xlu0 %522
        %524 = vrot.lane.b32.xlu0 %v295, 64
        %v525 = vpop.permute.xlu0 %524
        %v527 = vsel %vm296, %v509, 0
        %v530 = vsel %vm296, %v511, 0
        %v533 = vsel %vm296, %v513, 0
        %v536 = vsel %vm296, %v515, 0
        %v539 = vsel %vm296, %v517, 0
        %v542 = vsel %vm296, %v519, 0
        %v545 = vsel %vm296, %v521, 0
        %v548 = vsel %vm296, %v523, 0
        %v551 = vsel %vm296, %v525, 0
        %553 = vmatpush.bf16.xpose.msra.mxu0 %v551
        %554 = vmatpush.bf16.xpose.msra.mxu0 %v548
        %555 = vmatpush.bf16.xpose.msra.mxu0 %v545
        %556 = vmatpush.bf16.xpose.msra.mxu0 %v542
        %557 = vmatpush.bf16.xpose.msra.mxu0 %v539
        %558 = vmatpush.bf16.xpose.msra.mxu0 %v536
        %559 = vmatpush.bf16.xpose.msra.mxu0 %v533
        %560 = vmatpush.bf16.xpose.msra.mxu0 %v530
        %561 = vmatmul.bf16.gmra.mxu0 %v527
        %v562 = vpop.f32.mrf.mxu0
        %v563 = vadd.f32 0.0, %v562
        %v564 = vpop.f32.mrf.mxu0
        %565 = vdwg.mxu0
        %v566 = vsel %vm340, -1e+30, %v563
        %567 = vmax.xlane.f32.xlu0 %v566
        %v568 = vpop.xlane.xlu0 %567
        %v569 = vsub.f32 %v566, %v568
        %v570 = vmul.f32 %v569, 1.442695
        %v571 = vpow.pop %v570
        %572 = vadd.xlane.f32.xlu0 %v571
        %v573 = vpop.xlane.xlu0 %572
        %v574 = vrcp.pop %v573
        %v575 = vmul.f32 %v571, %v574
        %v576 = vadd.f32 %v469, %v575
        %v577 = vpack.c.bf16 %v575, %v575
        %578 = vrot.lane.b32.xlu0 %v369, 64
        %v579 = vpop.permute.xlu0 %578
        %580 = vrot.lane.b32.xlu0 %v370, 64
        %v581 = vpop.permute.xlu0 %580
        %582 = vrot.lane.b32.xlu0 %v371, 64
        %v583 = vpop.permute.xlu0 %582
        %584 = vrot.lane.b32.xlu0 %v372, 64
        %v585 = vpop.permute.xlu0 %584
        %586 = vrot.lane.b32.xlu0 %v373, 64
        %v587 = vpop.permute.xlu0 %586
        %588 = vrot.lane.b32.xlu0 %v374, 64
        %v589 = vpop.permute.xlu0 %588
        %590 = vrot.lane.b32.xlu0 %v375, 64
        %v591 = vpop.permute.xlu0 %590
        %592 = vrot.lane.b32.xlu0 %v376, 64
        %v593 = vpop.permute.xlu0 %592
        %602 = vmatpush.bf16.msra.mxu0 %v593
        %603 = vmatpush.bf16.msra.mxu0 %v591
        %604 = vmatpush.bf16.msra.mxu0 %v589
        %605 = vmatpush.bf16.msra.mxu0 %v587
        %606 = vmatpush.bf16.msra.mxu0 %v585
        %607 = vmatpush.bf16.msra.mxu0 %v583
        %608 = vmatpush.bf16.msra.mxu0 %v581
        %609 = vmatpush.bf16.msra.mxu0 %v579
        %610 = vmatmul.bf16.gmra.mxu0 %v577
        %v611 = vpop.f32.mrf.mxu0
        %v612 = vadd.f32 0.0, %v611
        %v613 = vpop.f32.mrf.mxu0
        %614 = vdwg.mxu0
        %615 = vrot.lane.b32.xlu0 %v400, 32
        %v616 = vpop.permute.xlu0 %615
        %617 = vrot.lane.b32.xlu0 %v288, 32
        %v618 = vpop.permute.xlu0 %617
        %619 = vrot.lane.b32.xlu0 %v289, 32
        %v620 = vpop.permute.xlu0 %619
        %621 = vrot.lane.b32.xlu0 %v290, 32
        %v622 = vpop.permute.xlu0 %621
        %623 = vrot.lane.b32.xlu0 %v291, 32
        %v624 = vpop.permute.xlu0 %623
        %625 = vrot.lane.b32.xlu0 %v292, 32
        %v626 = vpop.permute.xlu0 %625
        %627 = vrot.lane.b32.xlu0 %v293, 32
        %v628 = vpop.permute.xlu0 %627
        %629 = vrot.lane.b32.xlu0 %v294, 32
        %v630 = vpop.permute.xlu0 %629
        %631 = vrot.lane.b32.xlu0 %v295, 32
        %v632 = vpop.permute.xlu0 %631
        %v634 = vsel %vm296, %v616, 0
        %v637 = vsel %vm296, %v618, 0
        %v640 = vsel %vm296, %v620, 0
        %v643 = vsel %vm296, %v622, 0
        %v646 = vsel %vm296, %v624, 0
        %v649 = vsel %vm296, %v626, 0
        %v652 = vsel %vm296, %v628, 0
        %v655 = vsel %vm296, %v630, 0
        %v658 = vsel %vm296, %v632, 0
        %660 = vmatpush.bf16.xpose.msra.mxu0 %v658
        %661 = vmatpush.bf16.xpose.msra.mxu0 %v655
        %662 = vmatpush.bf16.xpose.msra.mxu0 %v652
        %663 = vmatpush.bf16.xpose.msra.mxu0 %v649
        %664 = vmatpush.bf16.xpose.msra.mxu0 %v646
        %665 = vmatpush.bf16.xpose.msra.mxu0 %v643
        %666 = vmatpush.bf16.xpose.msra.mxu0 %v640
        %667 = vmatpush.bf16.xpose.msra.mxu0 %v637
        %668 = vmatmul.bf16.gmra.mxu0 %v634
        %v669 = vpop.f32.mrf.mxu0
        %v670 = vadd.f32 0.0, %v669
        %v671 = vpop.f32.mrf.mxu0
        %672 = vdwg.mxu0
        %v673 = vsel %vm340, -1e+30, %v670
        %674 = vmax.xlane.f32.xlu0 %v673
        %v675 = vpop.xlane.xlu0 %674
        %v676 = vsub.f32 %v673, %v675
        %v677 = vmul.f32 %v676, 1.442695
        %v678 = vpow.pop %v677
        %679 = vadd.xlane.f32.xlu0 %v678
        %v680 = vpop.xlane.xlu0 %679
        %v681 = vrcp.pop %v680
        %v682 = vmul.f32 %v678, %v681
        %v683 = vadd.f32 %v576, %v682
        %v684 = vpack.c.bf16 %v682, %v682
        %685 = vrot.lane.b32.xlu0 %v369, 32
        %v686 = vpop.permute.xlu0 %685
        %687 = vrot.lane.b32.xlu0 %v370, 32
        %v688 = vpop.permute.xlu0 %687
        %689 = vrot.lane.b32.xlu0 %v371, 32
        %v690 = vpop.permute.xlu0 %689
        %691 = vrot.lane.b32.xlu0 %v372, 32
        %v692 = vpop.permute.xlu0 %691
        %693 = vrot.lane.b32.xlu0 %v373, 32
        %v694 = vpop.permute.xlu0 %693
        %695 = vrot.lane.b32.xlu0 %v374, 32
        %v696 = vpop.permute.xlu0 %695
        %697 = vrot.lane.b32.xlu0 %v375, 32
        %v698 = vpop.permute.xlu0 %697
        %699 = vrot.lane.b32.xlu0 %v376, 32
        %v700 = vpop.permute.xlu0 %699
        %709 = vmatpush.bf16.msra.mxu0 %v700
        %710 = vmatpush.bf16.msra.mxu0 %v698
        %711 = vmatpush.bf16.msra.mxu0 %v696
        %712 = vmatpush.bf16.msra.mxu0 %v694
        %713 = vmatpush.bf16.msra.mxu0 %v692
        %714 = vmatpush.bf16.msra.mxu0 %v690
        %715 = vmatpush.bf16.msra.mxu0 %v688
        %716 = vmatpush.bf16.msra.mxu0 %v686
        %717 = vmatmul.bf16.gmra.mxu0 %v684
        %v718 = vpop.f32.mrf.mxu0
        %v719 = vadd.f32 0.0, %v718
        %v720 = vpop.f32.mrf.mxu0
        %721 = vdwg.mxu0
        %723 = vrot.lane.b32.xlu0 %v505, 32
        %v724 = vpop.permute.xlu0 %723
        %727 = vrot.lane.b32.xlu0 %v612, 64
        %v728 = vpop.permute.xlu0 %727
        %731 = vrot.lane.b32.xlu0 %v719, 96
        %v732 = vpop.permute.xlu0 %731
        %v734 = vsel %vm296, %v395, %v724
        %vm735 = vcmask 523264
        %v736 = vsel %vm735, %v734, %v728
        %vm737 = vcmask 785408
        %v738 = vsel %vm737, %v736, %v732
        %v739 = vpack.c.bf16 %v738, %v738
        %740 = vst [vmem:[%s237] sm:$0xf] %v739
        %v741 = vmul.f32 %v683, 0.25
        %742 = vst [vmem:[%s221] sm:$0xff] %v741
        %p743 = scmp.lt.s32.totalorder %s19, 1
        %s744 = scalar_select %p743, %s19, 1
        %s745 = smul.addr %s744, 4
        %s746 = scalar_lea.vmem %s3, %s745
        %s747 = sand.u32 %s131, 1
        %s748 = scalar_lea.sflag [#allocation3], %s747
        %s749 = sand.u32 %s131, 1
        %s750 = smul.addr %s749, 8
        %s751 = scalar_lea.vmem [#allocation2], %s750
        // Predicated region
        $region33: #{lightconv_decoder_layer_forward.4} parent=31 // pred_check
          %p752 = pneg %p115
        $region34: #{lightconv_decoder_layer_forward.4} parent=31 // pred_check_branch
          %754 = sbr.rel (%p752) target = $region36
        $region35: #{lightconv_decoder_layer_forward.4} parent=31 // pred_region
          _
        $region36: #{lightconv_decoder_layer_forward.4} parent=31 // pred_fallthru
          _
        // Predicated region
        $region37: #{lightconv_decoder_layer_forward.4} parent=31 // pred_check
          %p755 = pneg %p141
        $region38: #{lightconv_decoder_layer_forward.4} parent=31 // pred_check_branch
          %757 = sbr.rel (%p755) target = $region40
        $region39: #{lightconv_decoder_layer_forward.4} parent=31 // pred_region
          %759 = vsyncadd %s748, 0
          %s760 = smul.addr %s19, 8
          %s761 = scalar_lea.hbm %s4, %s760
          %s763 = sshll.u32 %s751, 4
          %s764 = int_to_ptr.vmem [resolvable:$true] %s763
          %s765 = sshll.u32 %s761, 4
          %s766 = int_to_ptr.hbm [resolvable:$true] %s765
          %768 = dma.vmem_to_hbm [thread:$0]  %s764, 128, %s766, %s748
        $region40: #{lightconv_decoder_layer_forward.4} parent=31 // pred_fallthru
          _
      $region32: #{lightconv_decoder_layer_forward.4} parent=5 // pred_fallthru
        _
      %p769 = scmp.le.s32.totalorder 2, %s14
      // Predicated region
      $region41: #{lightconv_decoder_layer_forward.4} parent=5 // pred_check
        %p770 = pneg %p769
      $region42: #{lightconv_decoder_layer_forward.4} parent=5 // pred_check_branch
        %772 = sbr.rel (%p770) target = $region44
      $region43: #{lightconv_decoder_layer_forward.4} parent=5 // pred_region
        %s773 = ssub.s32 %s14, 2
        // Predicated region
        $region45: #{lightconv_decoder_layer_forward.4} parent=43 // pred_check
          %p774 = pneg %p121
        $region46: #{lightconv_decoder_layer_forward.4} parent=43 // pred_check_branch
          %776 = sbr.rel (%p774) target = $region48
        $region47: #{lightconv_decoder_layer_forward.4} parent=43 // pred_region
          %p777 = scmp.lt.s32.totalorder %s20, 1
          %s778 = scalar_select %p777, %s20, 1
          %s779 = smul.addr %s778, 4
          %s780 = scalar_lea.vmem %s3, %s779
        $region48: #{lightconv_decoder_layer_forward.4} parent=43 // pred_fallthru
          _
        // Predicated region
        $region49: #{lightconv_decoder_layer_forward.4} parent=43 // pred_check
          %p781 = pneg %p147
        $region50: #{lightconv_decoder_layer_forward.4} parent=43 // pred_check_branch
          %783 = sbr.rel (%p781) target = $region52
        $region51: #{lightconv_decoder_layer_forward.4} parent=43 // pred_region
          %s784 = sand.u32 %s132, 1
          %s785 = scalar_lea.sflag [#allocation3], %s784
          %s786 = sand.u32 %s132, 1
          %s787 = smul.addr %s786, 8
          %s788 = scalar_lea.vmem [#allocation2], %s787
          %790 = dma.done %s785, 128
        $region52: #{lightconv_decoder_layer_forward.4} parent=43 // pred_fallthru
          _
      $region44: #{lightconv_decoder_layer_forward.4} parent=5 // pred_fallthru
        _
    $region6: #{lightconv_decoder_layer_forward.4} parent=1 // loop_footer
      %s18 = sadd.s32 1, %s14
    $region7: #{lightconv_decoder_layer_forward.4} parent=1 // loop_footer_branch
      %13 = sbr.rel target = $region3
    $region8: #{lightconv_decoder_layer_forward.4} parent=1 // loop_exit
      _
    %791 = vsyncpa [#allocation3], 1
    %s792 = scalar_lea.sflag [#allocation3], 1
    %793 = vsyncpa %s792, 1

// kernel: lightconv_decoder_layer_forward.5
$region0: #{lightconv_decoder_layer_forward.5}
  #allocation0 [shape = 'u32[]', space=smem, size = 0x4, offset = 0x4, fixed_abs, tag = 'smem constant byte address 0x4 - core index']
  #allocation1 [shape = 'u32[72,128]{1,0:T(1,128)}', space=vmem, size = 0x9000, scoped, tag = 'internal scratch']
  %s0 = inlined_call_operand.vmem [shape: bf16[16,128], index: 0, kind: input, shape index: {}]
  %s1 = inlined_call_operand.vmem [shape: f32[16,128], index: 1, kind: input, shape index: {}]
  %s2 = inlined_call_operand.vmem [shape: bf16[128,128], index: 2, kind: input, shape index: {}]
  %s3 = inlined_call_operand.vmem [shape: f32[1,128], index: 3, kind: input, shape index: {}]
  %s4 = inlined_call_operand.vmem [shape: f32[1,128], index: 4, kind: input, shape index: {}]
  %s5 = inlined_call_operand.vmem [shape: f32[1,128], index: 5, kind: input, shape index: {}]
  %s6 = inlined_call_operand.vmem [shape: bf16[128,256], index: 6, kind: input, shape index: {}]
  %s7 = inlined_call_operand.vmem [shape: f32[1,256], index: 7, kind: input, shape index: {}]
  %s8 = inlined_call_operand.vmem [shape: bf16[256,128], index: 8, kind: input, shape index: {}]
  %s9 = inlined_call_operand.vmem [shape: f32[1,128], index: 9, kind: input, shape index: {}]
  %s10 = inlined_call_operand.vmem [shape: f32[1,128], index: 10, kind: input, shape index: {}]
  %s11 = inlined_call_operand.vmem [shape: f32[1,128], index: 11, kind: input, shape index: {}]
  %s12 = inlined_call_operand.vmem [shape: f32[16,128], index: 12, kind: output, shape index: {}]
  %s13 = sld [smem:[#allocation0]]
  $region58: #{lightconv_decoder_layer_forward.5} parent=0
    _
  %s15 = ssub.s32 1, %s13
  %s16 = scalar_select 0, %s15, %s13
  // Predicated region
  $region2: #{lightconv_decoder_layer_forward.5} parent=0 // pred_check
    _
  $region3: #{lightconv_decoder_layer_forward.5} parent=0 // pred_check_branch
    %18 = sbr.rel (0) target = $region5
  $region4: #{lightconv_decoder_layer_forward.5} parent=0 // pred_region
    _
  $region5: #{lightconv_decoder_layer_forward.5} parent=0 // pred_fallthru
    _
  // Predicated region
  $region6: #{lightconv_decoder_layer_forward.5} parent=0 // pred_check
    _
  $region7: #{lightconv_decoder_layer_forward.5} parent=0 // pred_check_branch
    %20 = sbr.rel (0) target = $region9
  $region8: #{lightconv_decoder_layer_forward.5} parent=0 // pred_region
    _
  $region9: #{lightconv_decoder_layer_forward.5} parent=0 // pred_fallthru
    _
  // Predicated region
  $region10: #{lightconv_decoder_layer_forward.5} parent=0 // pred_check
    _
  $region11: #{lightconv_decoder_layer_forward.5} parent=0 // pred_check_branch
    %22 = sbr.rel (0) target = $region13
  $region12: #{lightconv_decoder_layer_forward.5} parent=0 // pred_region
    _
  $region13: #{lightconv_decoder_layer_forward.5} parent=0 // pred_fallthru
    _
  // Predicated region
  $region14: #{lightconv_decoder_layer_forward.5} parent=0 // pred_check
    _
  $region15: #{lightconv_decoder_layer_forward.5} parent=0 // pred_check_branch
    %24 = sbr.rel (0) target = $region17
  $region16: #{lightconv_decoder_layer_forward.5} parent=0 // pred_region
    _
  $region17: #{lightconv_decoder_layer_forward.5} parent=0 // pred_fallthru
    _
  // Predicated region
  $region18: #{lightconv_decoder_layer_forward.5} parent=0 // pred_check
    _
  $region19: #{lightconv_decoder_layer_forward.5} parent=0 // pred_check_branch
    %26 = sbr.rel (0) target = $region21
  $region20: #{lightconv_decoder_layer_forward.5} parent=0 // pred_region
    _
  $region21: #{lightconv_decoder_layer_forward.5} parent=0 // pred_fallthru
    _
  // Predicated region
  $region22: #{lightconv_decoder_layer_forward.5} parent=0 // pred_check
    _
  $region23: #{lightconv_decoder_layer_forward.5} parent=0 // pred_check_branch
    %28 = sbr.rel (0) target = $region25
  $region24: #{lightconv_decoder_layer_forward.5} parent=0 // pred_region
    _
  $region25: #{lightconv_decoder_layer_forward.5} parent=0 // pred_fallthru
    _
  // Predicated region
  $region26: #{lightconv_decoder_layer_forward.5} parent=0 // pred_check
    _
  $region27: #{lightconv_decoder_layer_forward.5} parent=0 // pred_check_branch
    %30 = sbr.rel (0) target = $region29
  $region28: #{lightconv_decoder_layer_forward.5} parent=0 // pred_region
    _
  $region29: #{lightconv_decoder_layer_forward.5} parent=0 // pred_fallthru
    _
  // Predicated region
  $region30: #{lightconv_decoder_layer_forward.5} parent=0 // pred_check
    _
  $region31: #{lightconv_decoder_layer_forward.5} parent=0 // pred_check_branch
    %32 = sbr.rel (0) target = $region33
  $region32: #{lightconv_decoder_layer_forward.5} parent=0 // pred_region
    _
  $region33: #{lightconv_decoder_layer_forward.5} parent=0 // pred_fallthru
    _
  // Predicated region
  $region34: #{lightconv_decoder_layer_forward.5} parent=0 // pred_check
    _
  $region35: #{lightconv_decoder_layer_forward.5} parent=0 // pred_check_branch
    %34 = sbr.rel (0) target = $region37
  $region36: #{lightconv_decoder_layer_forward.5} parent=0 // pred_region
    _
  $region37: #{lightconv_decoder_layer_forward.5} parent=0 // pred_fallthru
    _
  // Predicated region
  $region38: #{lightconv_decoder_layer_forward.5} parent=0 // pred_check
    _
  $region39: #{lightconv_decoder_layer_forward.5} parent=0 // pred_check_branch
    %36 = sbr.rel (0) target = $region41
  $region40: #{lightconv_decoder_layer_forward.5} parent=0 // pred_region
    _
  $region41: #{lightconv_decoder_layer_forward.5} parent=0 // pred_fallthru
    _
  // Predicated region
  $region42: #{lightconv_decoder_layer_forward.5} parent=0 // pred_check
    _
  $region43: #{lightconv_decoder_layer_forward.5} parent=0 // pred_check_branch
    %38 = sbr.rel (0) target = $region45
  $region44: #{lightconv_decoder_layer_forward.5} parent=0 // pred_region
    _
  $region45: #{lightconv_decoder_layer_forward.5} parent=0 // pred_fallthru
    _
  // Predicated region
  $region46: #{lightconv_decoder_layer_forward.5} parent=0 // pred_check
    _
  $region47: #{lightconv_decoder_layer_forward.5} parent=0 // pred_check_branch
    %40 = sbr.rel (0) target = $region49
  $region48: #{lightconv_decoder_layer_forward.5} parent=0 // pred_region
    _
  $region49: #{lightconv_decoder_layer_forward.5} parent=0 // pred_fallthru
    _
  %v41 = vld [vmem:[%s1] sm:$0xff]
  %v42 = vld [vmem:[%s1 + $0x8] sm:$0xff]
  %v43 = vld [vmem:[%s0] sm:$0xf]
  %v44 = vld [vmem:[%s0 + $0x4] sm:$0xf]
  %v45 = vld [vmem:[%s2] sm:$0xf]
  %v46 = vld [vmem:[%s2 + $0x4] sm:$0xf]
  %v47 = vld [vmem:[%s2 + $0x8] sm:$0xf]
  %v48 = vld [vmem:[%s2 + $0xc] sm:$0xf]
  %v49 = vld [vmem:[%s2 + $0x10] sm:$0xf]
  %v50 = vld [vmem:[%s2 + $0x14] sm:$0xf]
  %v51 = vld [vmem:[%s2 + $0x18] sm:$0xf]
  %v52 = vld [vmem:[%s2 + $0x1c] sm:$0xf]
  %v53 = vld [vmem:[%s2 + $0x20] sm:$0xf]
  %v54 = vld [vmem:[%s2 + $0x24] sm:$0xf]
  %v55 = vld [vmem:[%s2 + $0x28] sm:$0xf]
  %v56 = vld [vmem:[%s2 + $0x2c] sm:$0xf]
  %v57 = vld [vmem:[%s2 + $0x30] sm:$0xf]
  %v58 = vld [vmem:[%s2 + $0x34] sm:$0xf]
  %v59 = vld [vmem:[%s2 + $0x38] sm:$0xf]
  %v60 = vld [vmem:[%s2 + $0x3c] sm:$0xf]
  %v61 = vld [vmem:[%s3] sm:$0x1]
  %v63 = vperm.slane %v61, 0
  %v67 = vunpack.c.l.b16 %v43
  %v68 = vunpack.c.l.b16 %v44
  %v69 = vpack.c.b16 %v68, %v67
  %v87 = vunpack.c.l.b16 %v45
  %v88 = vunpack.c.l.b16 %v46
  %v89 = vunpack.c.l.b16 %v47
  %v90 = vunpack.c.l.b16 %v48
  %v91 = vunpack.c.l.b16 %v49
  %v92 = vunpack.c.l.b16 %v50
  %v93 = vunpack.c.l.b16 %v51
  %v94 = vunpack.c.l.b16 %v52
  %v95 = vunpack.c.l.b16 %v53
  %v96 = vunpack.c.l.b16 %v54
  %v97 = vunpack.c.l.b16 %v55
  %v98 = vunpack.c.l.b16 %v56
  %v99 = vunpack.c.l.b16 %v57
  %v100 = vunpack.c.l.b16 %v58
  %v101 = vunpack.c.l.b16 %v59
  %v102 = vunpack.c.l.b16 %v60
  %v103 = vpack.c.b16 %v88, %v87
  %v104 = vpack.c.b16 %v90, %v89
  %v105 = vpack.c.b16 %v92, %v91
  %v106 = vpack.c.b16 %v94, %v93
  %v107 = vpack.c.b16 %v96, %v95
  %v108 = vpack.c.b16 %v98, %v97
  %v109 = vpack.c.b16 %v100, %v99
  %v110 = vpack.c.b16 %v102, %v101
  %119 = vmatpush.bf16.msra.mxu0 %v110
  %120 = vmatpush.bf16.msra.mxu0 %v109
  %121 = vmatpush.bf16.msra.mxu0 %v108
  %122 = vmatpush.bf16.msra.mxu0 %v107
  %123 = vmatpush.bf16.msra.mxu0 %v106
  %124 = vmatpush.bf16.msra.mxu0 %v105
  %125 = vmatpush.bf16.msra.mxu0 %v104
  %126 = vmatpush.bf16.msra.mxu0 %v103
  %127 = vmatmul.bf16.gmra.mxu0 %v69
  %v128 = vpop.f32.mrf.mxu0
  %v129 = vadd.f32 %v63, %v128
  %v130 = vpop.f32.mrf.mxu0
  %v131 = vadd.f32 %v63, %v130
  %132 = vdwg.mxu0
  %v133 = vadd.f32 %v129, %v41
  %v134 = vadd.f32 %v131, %v42
  %v135 = vld [vmem:[%s4] sm:$0x1]
  %v136 = vld [vmem:[%s5] sm:$0x1]
  %137 = vadd.xlane.f32.xlu0 %v133
  %v138 = vpop.xlane.xlu0 %137
  %139 = vadd.xlane.f32.xlu0 %v134
  %v140 = vpop.xlane.xlu0 %139
  %v141 = vrcp.pop 128.0
  %v142 = vmul.f32 128.0, %v141
  %v143 = vsub.f32 1.0, %v142
  %v144 = vmul.f32 %v141, %v143
  %v145 = vadd.f32 %v141, %v144
  %vm146 = vweird.f32 %v141
  %v147 = vsel %vm146, %v141, %v145
  %v148 = vmul.f32 %v138, %v147
  %v149 = vmul.f32 %v140, %v147
  %v150 = vsub.f32 %v133, %v148
  %v151 = vsub.f32 %v134, %v149
  %v152 = vmul.f32 %v150, %v150
  %v153 = vmul.f32 %v151, %v151
  %154 = vadd.xlane.f32.xlu0 %v152
  %v155 = vpop.xlane.xlu0 %154
  %156 = vadd.xlane.f32.xlu0 %v153
  %v157 = vpop.xlane.xlu0 %156
  %v158 = vmul.f32 %v155, %v147
  %v159 = vmul.f32 %v157, %v147
  %v160 = vadd.f32 %v158, 1e-05
  %v161 = vadd.f32 %v159, 1e-05
  %v162 = vrsqrt.pop %v160
  %v163 = vmul.f32 %v162, %v160
  %v164 = vmul.f32 %v163, %v162
  %v165 = vmul.f32 0.5, %v164
  %v166 = vsub.f32 1.5, %v165
  %v167 = vmul.f32 %v162, %v166
  %vm168 = vweird.f32 %v160
  %vm169 = vweird.f32 %v162
  %vm170 = vmor %vm168, %vm169
  %v171 = vsel %vm170, %v162, %v167
  %v172 = vrsqrt.pop %v161
  %v173 = vmul.f32 %v172, %v161
  %v174 = vmul.f32 %v173, %v172
  %v175 = vmul.f32 0.5, %v174
  %v176 = vsub.f32 1.5, %v175
  %v177 = vmul.f32 %v172, %v176
  %vm178 = vweird.f32 %v161
  %vm179 = vweird.f32 %v172
  %vm180 = vmor %vm178, %vm179
  %v181 = vsel %vm180, %v172, %v177
  %v182 = vmul.f32 %v150, %v171
  %v183 = vmul.f32 %v151, %v181
  %v185 = vperm.slane %v135, 0
  %v187 = vmul.f32 %v182, %v185
  %v188 = vmul.f32 %v183, %v185
  %v190 = vperm.slane %v136, 0
  %v192 = vadd.f32 %v187, %v190
  %v193 = vadd.f32 %v188, %v190
  %v194 = vpack.c.bf16 %v193, %v192
  %v195 = vld [vmem:[%s6] sm:$0xff]
  %v196 = vld [vmem:[%s6 + $0x8] sm:$0xff]
  %v197 = vld [vmem:[%s6 + $0x10] sm:$0xff]
  %v198 = vld [vmem:[%s6 + $0x18] sm:$0xff]
  %v199 = vld [vmem:[%s6 + $0x20] sm:$0xff]
  %v200 = vld [vmem:[%s6 + $0x28] sm:$0xff]
  %v201 = vld [vmem:[%s6 + $0x30] sm:$0xff]
  %v202 = vld [vmem:[%s6 + $0x38] sm:$0xff]
  %v203 = vld [vmem:[%s6 + $0x40] sm:$0xff]
  %v204 = vld [vmem:[%s6 + $0x48] sm:$0xff]
  %v205 = vld [vmem:[%s6 + $0x50] sm:$0xff]
  %v206 = vld [vmem:[%s6 + $0x58] sm:$0xff]
  %v207 = vld [vmem:[%s6 + $0x60] sm:$0xff]
  %v208 = vld [vmem:[%s6 + $0x68] sm:$0xff]
  %v209 = vld [vmem:[%s6 + $0x70] sm:$0xff]
  %v210 = vld [vmem:[%s6 + $0x78] sm:$0xff]
  %v211 = vld [vmem:[%s7] sm:$0x3]
  %v213 = vperm.slane %v211, 0
  %v214 = vperm.slane %v211, 1
  %v233 = vunpack.c.l.b16 %v195
  %v234 = vunpack.c.h.b16 %v195
  %v235 = vunpack.c.l.b16 %v196
  %v236 = vunpack.c.h.b16 %v196
  %v237 = vunpack.c.l.b16 %v197
  %v238 = vunpack.c.h.b16 %v197
  %v239 = vunpack.c.l.b16 %v198
  %v240 = vunpack.c.h.b16 %v198
  %v241 = vunpack.c.l.b16 %v199
  %v242 = vunpack.c.h.b16 %v199
  %v243 = vunpack.c.l.b16 %v200
  %v244 = vunpack.c.h.b16 %v200
  %v245 = vunpack.c.l.b16 %v201
  %v246 = vunpack.c.h.b16 %v201
  %v247 = vunpack.c.l.b16 %v202
  %v248 = vunpack.c.h.b16 %v202
  %v249 = vunpack.c.l.b16 %v203
  %v250 = vunpack.c.h.b16 %v203
  %v251 = vunpack.c.l.b16 %v204
  %v252 = vunpack.c.h.b16 %v204
  %v253 = vunpack.c.l.b16 %v205
  %v254 = vunpack.c.h.b16 %v205
  %v255 = vunpack.c.l.b16 %v206
  %v256 = vunpack.c.h.b16 %v206
  %v257 = vunpack.c.l.b16 %v207
  %v258 = vunpack.c.h.b16 %v207
  %v259 = vunpack.c.l.b16 %v208
  %v260 = vunpack.c.h.b16 %v208
  %v261 = vunpack.c.l.b16 %v209
  %v262 = vunpack.c.h.b16 %v209
  %v263 = vunpack.c.l.b16 %v210
  %v264 = vunpack.c.h.b16 %v210
  %v265 = vpack.c.b16 %v235, %v233
  %v266 = vpack.c.b16 %v236, %v234
  %v267 = vpack.c.b16 %v239, %v237
  %v268 = vpack.c.b16 %v240, %v238
  %v269 = vpack.c.b16 %v243, %v241
  %v270 = vpack.c.b16 %v244, %v242
  %v271 = vpack.c.b16 %v247, %v245
  %v272 = vpack.c.b16 %v248, %v246
  %v273 = vpack.c.b16 %v251, %v249
  %v274 = vpack.c.b16 %v252, %v250
  %v275 = vpack.c.b16 %v255, %v253
  %v276 = vpack.c.b16 %v256, %v254
  %v277 = vpack.c.b16 %v259, %v257
  %v278 = vpack.c.b16 %v260, %v258
  %v279 = vpack.c.b16 %v263, %v261
  %v280 = vpack.c.b16 %v264, %v262
  %297 = vmatpush.bf16.msra.mxu0 %v279
  %298 = vmatpush.bf16.msra.mxu0 %v277
  %299 = vmatpush.bf16.msra.mxu0 %v275
  %300 = vmatpush.bf16.msra.mxu0 %v273
  %301 = vmatpush.bf16.msra.mxu0 %v271
  %302 = vmatpush.bf16.msra.mxu0 %v269
  %303 = vmatpush.bf16.msra.mxu0 %v267
  %304 = vmatpush.bf16.msra.mxu0 %v265
  %305 = vmatmul.bf16.gmra.mxu0 %v194
  %v306 = vpop.f32.mrf.mxu0
  %v307 = vadd.f32 %v213, %v306
  %v308 = vpop.f32.mrf.mxu0
  %v309 = vadd.f32 %v213, %v308
  %310 = vdwg.mxu0
  %311 = vmatpush.bf16.msra.mxu0 %v280
  %312 = vmatpush.bf16.msra.mxu0 %v278
  %313 = vmatpush.bf16.msra.mxu0 %v276
  %314 = vmatpush.bf16.msra.mxu0 %v274
  %315 = vmatpush.bf16.msra.mxu0 %v272
  %316 = vmatpush.bf16.msra.mxu0 %v270
  %317 = vmatpush.bf16.msra.mxu0 %v268
  %318 = vmatpush.bf16.msra.mxu0 %v266
  %319 = vmatmul.bf16.gmra.mxu0 %v194
  %v320 = vpop.f32.mrf.mxu0
  %v321 = vadd.f32 %v214, %v320
  %v322 = vpop.f32.mrf.mxu0
  %v323 = vadd.f32 %v214, %v322
  %324 = vdwg.mxu0
  %v325 = vmax.f32 %v307, 0.0
  %v326 = vmax.f32 %v321, 0.0
  %v327 = vmax.f32 %v309, 0.0
  %v328 = vmax.f32 %v323, 0.0
  %v329 = vpack.c.bf16 %v327, %v325
  %v330 = vpack.c.bf16 %v328, %v326
  %v331 = vld [vmem:[%s8] sm:$0xf]
  %v332 = vld [vmem:[%s8 + $0x4] sm:$0xf]
  %v333 = vld [vmem:[%s8 + $0x8] sm:$0xf]
  %v334 = vld [vmem:[%s8 + $0xc] sm:$0xf]
  %v335 = vld [vmem:[%s8 + $0x10] sm:$0xf]
  %v336 = vld [vmem:[%s8 + $0x14] sm:$0xf]
  %v337 = vld [vmem:[%s8 + $0x18] sm:$0xf]
  %v338 = vld [vmem:[%s8 + $0x1c] sm:$0xf]
  %v339 = vld [vmem:[%s8 + $0x20] sm:$0xf]
  %v340 = vld [vmem:[%s8 + $0x24] sm:$0xf]
  %v341 = vld [vmem:[%s8 + $0x28] sm:$0xf]
  %v342 = vld [vmem:[%s8 + $0x2c] sm:$0xf]
  %v343 = vld [vmem:[%s8 + $0x30] sm:$0xf]
  %v344 = vld [vmem:[%s8 + $0x34] sm:$0xf]
  %v345 = vld [vmem:[%s8 + $0x38] sm:$0xf]
  %v346 = vld [vmem:[%s8 + $0x3c] sm:$0xf]
  %v347 = vld [vmem:[%s8 + $0x40] sm:$0xf]
  %v348 = vld [vmem:[%s8 + $0x44] sm:$0xf]
  %v349 = vld [vmem:[%s8 + $0x48] sm:$0xf]
  %v350 = vld [vmem:[%s8 + $0x4c] sm:$0xf]
  %v351 = vld [vmem:[%s8 + $0x50] sm:$0xf]
  %v352 = vld [vmem:[%s8 + $0x54] sm:$0xf]
  %v353 = vld [vmem:[%s8 + $0x58] sm:$0xf]
  %v354 = vld [vmem:[%s8 + $0x5c] sm:$0xf]
  %v355 = vld [vmem:[%s8 + $0x60] sm:$0xf]
  %v356 = vld [vmem:[%s8 + $0x64] sm:$0xf]
  %v357 = vld [vmem:[%s8 + $0x68] sm:$0xf]
  %v358 = vld [vmem:[%s8 + $0x6c] sm:$0xf]
  %v359 = vld [vmem:[%s8 + $0x70] sm:$0xf]
  %v360 = vld [vmem:[%s8 + $0x74] sm:$0xf]
  %v361 = vld [vmem:[%s8 + $0x78] sm:$0xf]
  %v362 = vld [vmem:[%s8 + $0x7c] sm:$0xf]
  %v363 = vld [vmem:[%s9] sm:$0x1]
  %v365 = vperm.slane %v363, 0
  %v399 = vunpack.c.l.b16 %v331
  %v400 = vunpack.c.l.b16 %v332
  %v401 = vunpack.c.l.b16 %v333
  %v402 = vunpack.c.l.b16 %v334
  %v403 = vunpack.c.l.b16 %v335
  %v404 = vunpack.c.l.b16 %v336
  %v405 = vunpack.c.l.b16 %v337
  %v406 = vunpack.c.l.b16 %v338
  %v407 = vunpack.c.l.b16 %v339
  %v408 = vunpack.c.l.b16 %v340
  %v409 = vunpack.c.l.b16 %v341
  %v410 = vunpack.c.l.b16 %v342
  %v411 = vunpack.c.l.b16 %v343
  %v412 = vunpack.c.l.b16 %v344
  %v413 = vunpack.c.l.b16 %v345
  %v414 = vunpack.c.l.b16 %v346
  %v415 = vunpack.c.l.b16 %v347
  %v416 = vunpack.c.l.b16 %v348
  %v417 = vunpack.c.l.b16 %v349
  %v418 = vunpack.c.l.b16 %v350
  %v419 = vunpack.c.l.b16 %v351
  %v420 = vunpack.c.l.b16 %v352
  %v421 = vunpack.c.l.b16 %v353
  %v422 = vunpack.c.l.b16 %v354
  %v423 = vunpack.c.l.b16 %v355
  %v424 = vunpack.c.l.b16 %v356
  %v425 = vunpack.c.l.b16 %v357
  %v426 = vunpack.c.l.b16 %v358
  %v427 = vunpack.c.l.b16 %v359
  %v428 = vunpack.c.l.b16 %v360
  %v429 = vunpack.c.l.b16 %v361
  %v430 = vunpack.c.l.b16 %v362
  %v431 = vpack.c.b16 %v400, %v399
  %v432 = vpack.c.b16 %v402, %v401
  %v433 = vpack.c.b16 %v404, %v403
  %v434 = vpack.c.b16 %v406, %v405
  %v435 = vpack.c.b16 %v408, %v407
  %v436 = vpack.c.b16 %v410, %v409
  %v437 = vpack.c.b16 %v412, %v411
  %v438 = vpack.c.b16 %v414, %v413
  %v439 = vpack.c.b16 %v416, %v415
  %v440 = vpack.c.b16 %v418, %v417
  %v441 = vpack.c.b16 %v420, %v419
  %v442 = vpack.c.b16 %v422, %v421
  %v443 = vpack.c.b16 %v424, %v423
  %v444 = vpack.c.b16 %v426, %v425
  %v445 = vpack.c.b16 %v428, %v427
  %v446 = vpack.c.b16 %v430, %v429
  %463 = vmatpush.bf16.msra.mxu0 %v438
  %464 = vmatpush.bf16.msra.mxu0 %v437
  %465 = vmatpush.bf16.msra.mxu0 %v436
  %466 = vmatpush.bf16.msra.mxu0 %v435
  %467 = vmatpush.bf16.msra.mxu0 %v434
  %468 = vmatpush.bf16.msra.mxu0 %v433
  %469 = vmatpush.bf16.msra.mxu0 %v432
  %470 = vmatpush.bf16.msra.mxu0 %v431
  %471 = vmatmul.bf16.gmra.mxu0 %v329
  %v472 = vpop.f32.mrf.mxu0
  %v473 = vadd.f32 %v365, %v472
  %v474 = vpop.f32.mrf.mxu0
  %v475 = vadd.f32 %v365, %v474
  %476 = vdwg.mxu0
  %477 = vmatpush.bf16.msra.mxu0 %v446
  %478 = vmatpush.bf16.msra.mxu0 %v445
  %479 = vmatpush.bf16.msra.mxu0 %v444
  %480 = vmatpush.bf16.msra.mxu0 %v443
  %481 = vmatpush.bf16.msra.mxu0 %v442
  %482 = vmatpush.bf16.msra.mxu0 %v441
  %483 = vmatpush.bf16.msra.mxu0 %v440
  %484 = vmatpush.bf16.msra.mxu0 %v439
  %485 = vmatmul.bf16.gmra.mxu0 %v330
  %v486 = vpop.f32.mrf.mxu0
  %v487 = vadd.f32 %v473, %v486
  %v488 = vpop.f32.mrf.mxu0
  %v489 = vadd.f32 %v475, %v488
  %490 = vdwg.mxu0
  %v491 = vadd.f32 %v487, %v192
  %v492 = vadd.f32 %v489, %v193
  %v493 = vld [vmem:[%s10] sm:$0x1]
  %v494 = vld [vmem:[%s11] sm:$0x1]
  %495 = vadd.xlane.f32.xlu0 %v491
  %v496 = vpop.xlane.xlu0 %495
  %497 = vadd.xlane.f32.xlu0 %v492
  %v498 = vpop.xlane.xlu0 %497
  %v499 = vmul.f32 %v496, %v147
  %v500 = vmul.f32 %v498, %v147
  %v501 = vsub.f32 %v491, %v499
  %v502 = vsub.f32 %v492, %v500
  %v503 = vmul.f32 %v501, %v501
  %v504 = vmul.f32 %v502, %v502
  %505 = vadd.xlane.f32.xlu0 %v503
  %v506 = vpop.xlane.xlu0 %505
  %507 = vadd.xlane.f32.xlu0 %v504
  %v508 = vpop.xlane.xlu0 %507
  %v509 = vmul.f32 %v506, %v147
  %v510 = vmul.f32 %v508, %v147
  %v511 = vadd.f32 %v509, 1e-05
  %v512 = vadd.f32 %v510, 1e-05
  %v513 = vrsqrt.pop %v511
  %v514 = vmul.f32 %v513, %v511
  %v515 = vmul.f32 %v514, %v513
  %v516 = vmul.f32 0.5, %v515
  %v517 = vsub.f32 1.5, %v516
  %v518 = vmul.f32 %v513, %v517
  %vm519 = vweird.f32 %v511
  %vm520 = vweird.f32 %v513
  %vm521 = vmor %vm519, %vm520
  %v522 = vsel %vm521, %v513, %v518
  %v523 = vrsqrt.pop %v512
  %v524 = vmul.f32 %v523, %v512
  %v525 = vmul.f32 %v524, %v523
  %v526 = vmul.f32 0.5, %v525
  %v527 = vsub.f32 1.5, %v526
  %v528 = vmul.f32 %v523, %v527
  %vm529 = vweird.f32 %v512
  %vm530 = vweird.f32 %v523
  %vm531 = vmor %vm529, %vm530
  %v532 = vsel %vm531, %v523, %v528
  %v533 = vmul.f32 %v501, %v522
  %v534 = vmul.f32 %v502, %v532
  %v536 = vperm.slane %v493, 0
  %v538 = vmul.f32 %v533, %v536
  %v539 = vmul.f32 %v534, %v536
  %v541 = vperm.slane %v494, 0
  %v543 = vadd.f32 %v538, %v541
  %v544 = vadd.f32 %v539, %v541
  %545 = vst [vmem:[%s12] sm:$0xff] %v543
  %546 = vst [vmem:[%s12 + $0x8] sm:$0xff] %v544
  // Predicated region
  $region50: #{lightconv_decoder_layer_forward.5} parent=0 // pred_check
    _
  $region51: #{lightconv_decoder_layer_forward.5} parent=0 // pred_check_branch
    %548 = sbr.rel (0) target = $region53
  $region52: #{lightconv_decoder_layer_forward.5} parent=0 // pred_region
    _
  $region53: #{lightconv_decoder_layer_forward.5} parent=0 // pred_fallthru
    _
  // Predicated region
  $region54: #{lightconv_decoder_layer_forward.5} parent=0 // pred_check
    _
  $region55: #{lightconv_decoder_layer_forward.5} parent=0 // pred_check_branch
    %550 = sbr.rel (0) target = $region57
  $region56: #{lightconv_decoder_layer_forward.5} parent=0 // pred_region
    _
  $region57: #{lightconv_decoder_layer_forward.5} parent=0 // pred_fallthru
    _

// kernel: lightconv_decoder_layer_forward.3
$region0: #{lightconv_decoder_layer_forward.3}
  #allocation0 [shape = 'u32[]', space=smem, size = 0x4, offset = 0x4, fixed_abs, tag = 'smem constant byte address 0x4 - core index']
  #allocation1 [shape = 'u32[72,128]{1,0:T(1,128)}', space=vmem, size = 0x9000, scoped, tag = 'internal scratch']
  #allocation2 [shape = 'f32[2,11,128]{2,1,0:T(8,128)}', space=vmem, size = 0x4000, scoped, tag = 'scratch operand']
  %s0 = inlined_call_operand.vmem [shape: f32[2,8,128], index: 0, kind: input, shape index: {}]
  %s1 = inlined_call_operand.vmem [shape: f32[2,128,128], index: 1, kind: input, shape index: {}]
  %s2 = inlined_call_operand.vmem [shape: bf16[128,256], index: 2, kind: input, shape index: {}]
  %s3 = inlined_call_operand.vmem [shape: f32[1,256], index: 3, kind: input, shape index: {}]
  %s4 = inlined_call_operand.vmem [shape: f32[4,128], index: 4, kind: input, shape index: {}]
  %s5 = inlined_call_operand.vmem [shape: bf16[128,128], index: 5, kind: input, shape index: {}]
  %s6 = inlined_call_operand.vmem [shape: f32[1,128], index: 6, kind: input, shape index: {}]
  %s7 = inlined_call_operand.vmem [shape: f32[1,128], index: 7, kind: input, shape index: {}]
  %s8 = inlined_call_operand.vmem [shape: f32[1,128], index: 8, kind: input, shape index: {}]
  %s9 = inlined_call_operand.vmem [shape: bf16[128,128], index: 9, kind: input, shape index: {}]
  %s10 = inlined_call_operand.vmem [shape: f32[1,128], index: 10, kind: input, shape index: {}]
  %s11 = inlined_call_operand.vmem [shape: bf16[128,256], index: 11, kind: input, shape index: {}]
  %s12 = inlined_call_operand.vmem [shape: f32[1,256], index: 12, kind: input, shape index: {}]
  %s13 = inlined_call_operand.vmem [shape: f32[2,8,128], index: 13, kind: output, shape index: {0}]
  %s14 = inlined_call_operand.vmem [shape: bf16[2,8,128], index: 14, kind: output, shape index: {1}]
  %s15 = inlined_call_operand.vmem [shape: bf16[2,128,256], index: 15, kind: output, shape index: {2}]
  %16 = xla_tuple %s13, %s14, %s15
  %s17 = sld [smem:[#allocation0]]
  $region78: #{lightconv_decoder_layer_forward.3} parent=0
    _
  %s19 = ssub.s32 1, %s17
  %s20 = scalar_select 0, %s19, %s17
  // Predicated region
  $region2: #{lightconv_decoder_layer_forward.3} parent=0 // pred_check
    _
  $region3: #{lightconv_decoder_layer_forward.3} parent=0 // pred_check_branch
    %22 = sbr.rel (0) target = $region5
  $region4: #{lightconv_decoder_layer_forward.3} parent=0 // pred_region
    _
  $region5: #{lightconv_decoder_layer_forward.3} parent=0 // pred_fallthru
    _
  // Predicated region
  $region6: #{lightconv_decoder_layer_forward.3} parent=0 // pred_check
    _
  $region7: #{lightconv_decoder_layer_forward.3} parent=0 // pred_check_branch
    %24 = sbr.rel (0) target = $region9
  $region8: #{lightconv_decoder_layer_forward.3} parent=0 // pred_region
    _
  $region9: #{lightconv_decoder_layer_forward.3} parent=0 // pred_fallthru
    _
  // Predicated region
  $region10: #{lightconv_decoder_layer_forward.3} parent=0 // pred_check
    _
  $region11: #{lightconv_decoder_layer_forward.3} parent=0 // pred_check_branch
    %26 = sbr.rel (0) target = $region13
  $region12: #{lightconv_decoder_layer_forward.3} parent=0 // pred_region
    _
  $region13: #{lightconv_decoder_layer_forward.3} parent=0 // pred_fallthru
    _
  // Predicated region
  $region14: #{lightconv_decoder_layer_forward.3} parent=0 // pred_check
    _
  $region15: #{lightconv_decoder_layer_forward.3} parent=0 // pred_check_branch
    %28 = sbr.rel (0) target = $region17
  $region16: #{lightconv_decoder_layer_forward.3} parent=0 // pred_region
    _
  $region17: #{lightconv_decoder_layer_forward.3} parent=0 // pred_fallthru
    _
  // Predicated region
  $region18: #{lightconv_decoder_layer_forward.3} parent=0 // pred_check
    _
  $region19: #{lightconv_decoder_layer_forward.3} parent=0 // pred_check_branch
    %30 = sbr.rel (0) target = $region21
  $region20: #{lightconv_decoder_layer_forward.3} parent=0 // pred_region
    _
  $region21: #{lightconv_decoder_layer_forward.3} parent=0 // pred_fallthru
    _
  // Predicated region
  $region22: #{lightconv_decoder_layer_forward.3} parent=0 // pred_check
    _
  $region23: #{lightconv_decoder_layer_forward.3} parent=0 // pred_check_branch
    %32 = sbr.rel (0) target = $region25
  $region24: #{lightconv_decoder_layer_forward.3} parent=0 // pred_region
    _
  $region25: #{lightconv_decoder_layer_forward.3} parent=0 // pred_fallthru
    _
  // Predicated region
  $region26: #{lightconv_decoder_layer_forward.3} parent=0 // pred_check
    _
  $region27: #{lightconv_decoder_layer_forward.3} parent=0 // pred_check_branch
    %34 = sbr.rel (0) target = $region29
  $region28: #{lightconv_decoder_layer_forward.3} parent=0 // pred_region
    _
  $region29: #{lightconv_decoder_layer_forward.3} parent=0 // pred_fallthru
    _
  // Predicated region
  $region30: #{lightconv_decoder_layer_forward.3} parent=0 // pred_check
    _
  $region31: #{lightconv_decoder_layer_forward.3} parent=0 // pred_check_branch
    %36 = sbr.rel (0) target = $region33
  $region32: #{lightconv_decoder_layer_forward.3} parent=0 // pred_region
    _
  $region33: #{lightconv_decoder_layer_forward.3} parent=0 // pred_fallthru
    _
  // Predicated region
  $region34: #{lightconv_decoder_layer_forward.3} parent=0 // pred_check
    _
  $region35: #{lightconv_decoder_layer_forward.3} parent=0 // pred_check_branch
    %38 = sbr.rel (0) target = $region37
  $region36: #{lightconv_decoder_layer_forward.3} parent=0 // pred_region
    _
  $region37: #{lightconv_decoder_layer_forward.3} parent=0 // pred_fallthru
    _
  // Predicated region
  $region38: #{lightconv_decoder_layer_forward.3} parent=0 // pred_check
    _
  $region39: #{lightconv_decoder_layer_forward.3} parent=0 // pred_check_branch
    %40 = sbr.rel (0) target = $region41
  $region40: #{lightconv_decoder_layer_forward.3} parent=0 // pred_region
    _
  $region41: #{lightconv_decoder_layer_forward.3} parent=0 // pred_fallthru
    _
  // Predicated region
  $region42: #{lightconv_decoder_layer_forward.3} parent=0 // pred_check
    _
  $region43: #{lightconv_decoder_layer_forward.3} parent=0 // pred_check_branch
    %42 = sbr.rel (0) target = $region45
  $region44: #{lightconv_decoder_layer_forward.3} parent=0 // pred_region
    _
  $region45: #{lightconv_decoder_layer_forward.3} parent=0 // pred_fallthru
    _
  // Predicated region
  $region46: #{lightconv_decoder_layer_forward.3} parent=0 // pred_check
    _
  $region47: #{lightconv_decoder_layer_forward.3} parent=0 // pred_check_branch
    %44 = sbr.rel (0) target = $region49
  $region48: #{lightconv_decoder_layer_forward.3} parent=0 // pred_region
    _
  $region49: #{lightconv_decoder_layer_forward.3} parent=0 // pred_fallthru
    _
  // Predicated region
  $region50: #{lightconv_decoder_layer_forward.3} parent=0 // pred_check
    _
  $region51: #{lightconv_decoder_layer_forward.3} parent=0 // pred_check_branch
    %46 = sbr.rel (0) target = $region53
  $region52: #{lightconv_decoder_layer_forward.3} parent=0 // pred_region
    _
  $region53: #{lightconv_decoder_layer_forward.3} parent=0 // pred_fallthru
    _
  %v47 = vld [vmem:[%s0] sm:$0xff]
  %v48 = vld [vmem:[%s0 + $0x8] sm:$0xff]
  %v49 = vpack.c.bf16 %v48, %v47
  %v50 = vld [vmem:[%s2] sm:$0xff]
  %v51 = vld [vmem:[%s2 + $0x8] sm:$0xff]
  %v52 = vld [vmem:[%s2 + $0x10] sm:$0xff]
  %v53 = vld [vmem:[%s2 + $0x18] sm:$0xff]
  %v54 = vld [vmem:[%s2 + $0x20] sm:$0xff]
  %v55 = vld [vmem:[%s2 + $0x28] sm:$0xff]
  %v56 = vld [vmem:[%s2 + $0x30] sm:$0xff]
  %v57 = vld [vmem:[%s2 + $0x38] sm:$0xff]
  %v58 = vld [vmem:[%s2 + $0x40] sm:$0xff]
  %v59 = vld [vmem:[%s2 + $0x48] sm:$0xff]
  %v60 = vld [vmem:[%s2 + $0x50] sm:$0xff]
  %v61 = vld [vmem:[%s2 + $0x58] sm:$0xff]
  %v62 = vld [vmem:[%s2 + $0x60] sm:$0xff]
  %v63 = vld [vmem:[%s2 + $0x68] sm:$0xff]
  %v64 = vld [vmem:[%s2 + $0x70] sm:$0xff]
  %v65 = vld [vmem:[%s2 + $0x78] sm:$0xff]
  %v66 = vld [vmem:[%s3] sm:$0x3]
  %v68 = vperm.slane %v66, 0
  %v69 = vperm.slane %v66, 1
  %v88 = vunpack.c.l.b16 %v50
  %v89 = vunpack.c.h.b16 %v50
  %v90 = vunpack.c.l.b16 %v51
  %v91 = vunpack.c.h.b16 %v51
  %v92 = vunpack.c.l.b16 %v52
  %v93 = vunpack.c.h.b16 %v52
  %v94 = vunpack.c.l.b16 %v53
  %v95 = vunpack.c.h.b16 %v53
  %v96 = vunpack.c.l.b16 %v54
  %v97 = vunpack.c.h.b16 %v54
  %v98 = vunpack.c.l.b16 %v55
  %v99 = vunpack.c.h.b16 %v55
  %v100 = vunpack.c.l.b16 %v56
  %v101 = vunpack.c.h.b16 %v56
  %v102 = vunpack.c.l.b16 %v57
  %v103 = vunpack.c.h.b16 %v57
  %v104 = vunpack.c.l.b16 %v58
  %v105 = vunpack.c.h.b16 %v58
  %v106 = vunpack.c.l.b16 %v59
  %v107 = vunpack.c.h.b16 %v59
  %v108 = vunpack.c.l.b16 %v60
  %v109 = vunpack.c.h.b16 %v60
  %v110 = vunpack.c.l.b16 %v61
  %v111 = vunpack.c.h.b16 %v61
  %v112 = vunpack.c.l.b16 %v62
  %v113 = vunpack.c.h.b16 %v62
  %v114 = vunpack.c.l.b16 %v63
  %v115 = vunpack.c.h.b16 %v63
  %v116 = vunpack.c.l.b16 %v64
  %v117 = vunpack.c.h.b16 %v64
  %v118 = vunpack.c.l.b16 %v65
  %v119 = vunpack.c.h.b16 %v65
  %v120 = vpack.c.b16 %v90, %v88
  %v121 = vpack.c.b16 %v91, %v89
  %v122 = vpack.c.b16 %v94, %v92
  %v123 = vpack.c.b16 %v95, %v93
  %v124 = vpack.c.b16 %v98, %v96
  %v125 = vpack.c.b16 %v99, %v97
  %v126 = vpack.c.b16 %v102, %v100
  %v127 = vpack.c.b16 %v103, %v101
  %v128 = vpack.c.b16 %v106, %v104
  %v129 = vpack.c.b16 %v107, %v105
  %v130 = vpack.c.b16 %v110, %v108
  %v131 = vpack.c.b16 %v111, %v109
  %v132 = vpack.c.b16 %v114, %v112
  %v133 = vpack.c.b16 %v115, %v113
  %v134 = vpack.c.b16 %v118, %v116
  %v135 = vpack.c.b16 %v119, %v117
  %152 = vmatpush.bf16.msra.mxu0 %v134
  %153 = vmatpush.bf16.msra.mxu0 %v132
  %154 = vmatpush.bf16.msra.mxu0 %v130
  %155 = vmatpush.bf16.msra.mxu0 %v128
  %156 = vmatpush.bf16.msra.mxu0 %v126
  %157 = vmatpush.bf16.msra.mxu0 %v124
  %158 = vmatpush.bf16.msra.mxu0 %v122
  %159 = vmatpush.bf16.msra.mxu0 %v120
  %160 = vmatmul.bf16.gmra.mxu0 %v49
  %v161 = vpop.f32.mrf.mxu0
  %v162 = vadd.f32 %v68, %v161
  %v163 = vpop.f32.mrf.mxu0
  %v164 = vadd.f32 %v68, %v163
  %165 = vdwg.mxu0
  %166 = vmatpush.bf16.msra.mxu0 %v135
  %167 = vmatpush.bf16.msra.mxu0 %v133
  %168 = vmatpush.bf16.msra.mxu0 %v131
  %169 = vmatpush.bf16.msra.mxu0 %v129
  %170 = vmatpush.bf16.msra.mxu0 %v127
  %171 = vmatpush.bf16.msra.mxu0 %v125
  %172 = vmatpush.bf16.msra.mxu0 %v123
  %173 = vmatpush.bf16.msra.mxu0 %v121
  %174 = vmatmul.bf16.gmra.mxu0 %v49
  %v175 = vpop.f32.mrf.mxu0
  %v176 = vadd.f32 %v69, %v175
  %v177 = vpop.f32.mrf.mxu0
  %v178 = vadd.f32 %v69, %v177
  %179 = vdwg.mxu0
  %v180 = vsub.f32 0.0, %v176
  %v181 = vsub.f32 0.0, %v178
  %v182 = vmul.f32 %v180, 1.442695
  %v183 = vpow.pop %v182
  %v184 = vmul.f32 %v181, 1.442695
  %v185 = vpow.pop %v184
  %v186 = vadd.f32 %v183, 1.0
  %v187 = vadd.f32 %v185, 1.0
  %v188 = vrcp.pop %v186
  %v189 = vmul.f32 %v186, %v188
  %v190 = vsub.f32 1.0, %v189
  %v191 = vmul.f32 %v188, %v190
  %v192 = vadd.f32 %v188, %v191
  %vm193 = vweird.f32 %v186
  %vm194 = vweird.f32 %v188
  %vm195 = vmor %vm193, %vm194
  %v196 = vsel %vm195, %v188, %v192
  %v197 = vand.u32 2147483647, %v186
  %vm198 = vcmp.eq.f32.partialorder %v197, 8.507059e+37
  %v199 = vand.u32 %v186, 2147483648
  %v200 = vor.u32 1.1754944e-38, %v199
  %v201 = vsel %vm198, %v200, %v196
  %v202 = vmul.f32 1.0, %v201
  %v203 = vrcp.pop %v187
  %v204 = vmul.f32 %v187, %v203
  %v205 = vsub.f32 1.0, %v204
  %v206 = vmul.f32 %v203, %v205
  %v207 = vadd.f32 %v203, %v206
  %vm208 = vweird.f32 %v187
  %vm209 = vweird.f32 %v203
  %vm210 = vmor %vm208, %vm209
  %v211 = vsel %vm210, %v203, %v207
  %v212 = vand.u32 2147483647, %v187
  %vm213 = vcmp.eq.f32.partialorder %v212, 8.507059e+37
  %v214 = vand.u32 %v187, 2147483648
  %v215 = vor.u32 1.1754944e-38, %v214
  %v216 = vsel %vm213, %v215, %v211
  %v217 = vmul.f32 1.0, %v216
  %v218 = vmul.f32 %v162, %v202
  %v219 = vmul.f32 %v164, %v217
  %v220 = vld [vmem:[%s4] sm:$0xf]
  %221 = vst [vmem:[#allocation2] sm:$0x7] 0.0
  %222 = vst [vmem:[#allocation2 + $0x10] sm:$0x7] 0.0
  %223 = vst [vmem:[#allocation2 + $0x3] sm:$0xff] %v218
  %224 = vst [vmem:[#allocation2 + $0x13] sm:$0xff] %v219
  %v225 = vld [vmem:[#allocation2] sm:$0xff]
  %v226 = vld [vmem:[#allocation2 + $0x10] sm:$0xff]
  %v227 = vperm.slane %v220, 0
  %v228 = vmul.f32 %v225, %v227
  %v229 = vmul.f32 %v226, %v227
  %v230 = vadd.f32 %v228, 0.0
  %v231 = vadd.f32 %v229, 0.0
  %v232 = vld [vmem:[#allocation2 + $0x1] sm:$0xff]
  %v233 = vld [vmem:[#allocation2 + $0x11] sm:$0xff]
  %v234 = vperm.slane %v220, 1
  %v235 = vmul.f32 %v232, %v234
  %v236 = vmul.f32 %v233, %v234
  %v237 = vadd.f32 %v230, %v235
  %v238 = vadd.f32 %v231, %v236
  %v239 = vld [vmem:[#allocation2 + $0x2] sm:$0xff]
  %v240 = vld [vmem:[#allocation2 + $0x12] sm:$0xff]
  %v241 = vperm.slane %v220, 2
  %v242 = vmul.f32 %v239, %v241
  %v243 = vmul.f32 %v240, %v241
  %v244 = vadd.f32 %v237, %v242
  %v245 = vadd.f32 %v238, %v243
  %v246 = vld [vmem:[#allocation2 + $0x3] sm:$0xff]
  %v247 = vld [vmem:[#allocation2 + $0x13] sm:$0xff]
  %v248 = vperm.slane %v220, 3
  %v249 = vmul.f32 %v246, %v248
  %v250 = vmul.f32 %v247, %v248
  %v251 = vadd.f32 %v244, %v249
  %v252 = vadd.f32 %v245, %v250
  %v253 = vpack.c.bf16 %v252, %v251
  %v254 = vld [vmem:[%s5] sm:$0xf]
  %v255 = vld [vmem:[%s5 + $0x4] sm:$0xf]
  %v256 = vld [vmem:[%s5 + $0x8] sm:$0xf]
  %v257 = vld [vmem:[%s5 + $0xc] sm:$0xf]
  %v258 = vld [vmem:[%s5 + $0x10] sm:$0xf]
  %v259 = vld [vmem:[%s5 + $0x14] sm:$0xf]
  %v260 = vld [vmem:[%s5 + $0x18] sm:$0xf]
  %v261 = vld [vmem:[%s5 + $0x1c] sm:$0xf]
  %v262 = vld [vmem:[%s5 + $0x20] sm:$0xf]
  %v263 = vld [vmem:[%s5 + $0x24] sm:$0xf]
  %v264 = vld [vmem:[%s5 + $0x28] sm:$0xf]
  %v265 = vld [vmem:[%s5 + $0x2c] sm:$0xf]
  %v266 = vld [vmem:[%s5 + $0x30] sm:$0xf]
  %v267 = vld [vmem:[%s5 + $0x34] sm:$0xf]
  %v268 = vld [vmem:[%s5 + $0x38] sm:$0xf]
  %v269 = vld [vmem:[%s5 + $0x3c] sm:$0xf]
  %v270 = vld [vmem:[%s6] sm:$0x1]
  %v272 = vperm.slane %v270, 0
  %v290 = vunpack.c.l.b16 %v254
  %v291 = vunpack.c.l.b16 %v255
  %v292 = vunpack.c.l.b16 %v256
  %v293 = vunpack.c.l.b16 %v257
  %v294 = vunpack.c.l.b16 %v258
  %v295 = vunpack.c.l.b16 %v259
  %v296 = vunpack.c.l.b16 %v260
  %v297 = vunpack.c.l.b16 %v261
  %v298 = vunpack.c.l.b16 %v262
  %v299 = vunpack.c.l.b16 %v263
  %v300 = vunpack.c.l.b16 %v264
  %v301 = vunpack.c.l.b16 %v265
  %v302 = vunpack.c.l.b16 %v266
  %v303 = vunpack.c.l.b16 %v267
  %v304 = vunpack.c.l.b16 %v268
  %v305 = vunpack.c.l.b16 %v269
  %v306 = vpack.c.b16 %v291, %v290
  %v307 = vpack.c.b16 %v293, %v292
  %v308 = vpack.c.b16 %v295, %v294
  %v309 = vpack.c.b16 %v297, %v296
  %v310 = vpack.c.b16 %v299, %v298
  %v311 = vpack.c.b16 %v301, %v300
  %v312 = vpack.c.b16 %v303, %v302
  %v313 = vpack.c.b16 %v305, %v304
  %322 = vmatpush.bf16.msra.mxu0 %v313
  %323 = vmatpush.bf16.msra.mxu0 %v312
  %324 = vmatpush.bf16.msra.mxu0 %v311
  %325 = vmatpush.bf16.msra.mxu0 %v310
  %326 = vmatpush.bf16.msra.mxu0 %v309
  %327 = vmatpush.bf16.msra.mxu0 %v308
  %328 = vmatpush.bf16.msra.mxu0 %v307
  %329 = vmatpush.bf16.msra.mxu0 %v306
  %330 = vmatmul.bf16.gmra.mxu0 %v253
  %v331 = vpop.f32.mrf.mxu0
  %v332 = vadd.f32 %v272, %v331
  %v333 = vpop.f32.mrf.mxu0
  %v334 = vadd.f32 %v272, %v333
  %335 = vdwg.mxu0
  %v336 = vadd.f32 %v332, %v47
  %v337 = vadd.f32 %v334, %v48
  %338 = vadd.xlane.f32.xlu0 %v336
  %v339 = vpop.xlane.xlu0 %338
  %340 = vadd.xlane.f32.xlu0 %v337
  %v341 = vpop.xlane.xlu0 %340
  %v342 = vrcp.pop 128.0
  %v343 = vmul.f32 128.0, %v342
  %v344 = vsub.f32 1.0, %v343
  %v345 = vmul.f32 %v342, %v344
  %v346 = vadd.f32 %v342, %v345
  %vm347 = vweird.f32 %v342
  %v348 = vsel %vm347, %v342, %v346
  %v349 = vmul.f32 %v339, %v348
  %v350 = vmul.f32 %v341, %v348
  %v351 = vsub.f32 %v336, %v349
  %v352 = vsub.f32 %v337, %v350
  %v353 = vmul.f32 %v351, %v351
  %v354 = vmul.f32 %v352, %v352
  %355 = vadd.xlane.f32.xlu0 %v353
  %v356 = vpop.xlane.xlu0 %355
  %357 = vadd.xlane.f32.xlu0 %v354
  %v358 = vpop.xlane.xlu0 %357
  %v359 = vmul.f32 %v356, %v348
  %v360 = vmul.f32 %v358, %v348
  %v361 = vadd.f32 %v359, 1e-05
  %v362 = vadd.f32 %v360, 1e-05
  %v363 = vrsqrt.pop %v361
  %v364 = vmul.f32 %v363, %v361
  %v365 = vmul.f32 %v364, %v363
  %v366 = vmul.f32 0.5, %v365
  %v367 = vsub.f32 1.5, %v366
  %v368 = vmul.f32 %v363, %v367
  %vm369 = vweird.f32 %v361
  %vm370 = vweird.f32 %v363
  %vm371 = vmor %vm369, %vm370
  %v372 = vsel %vm371, %v363, %v368
  %v373 = vrsqrt.pop %v362
  %v374 = vmul.f32 %v373, %v362
  %v375 = vmul.f32 %v374, %v373
  %v376 = vmul.f32 0.5, %v375
  %v377 = vsub.f32 1.5, %v376
  %v378 = vmul.f32 %v373, %v377
  %vm379 = vweird.f32 %v362
  %vm380 = vweird.f32 %v373
  %vm381 = vmor %vm379, %vm380
  %v382 = vsel %vm381, %v373, %v378
  %v383 = vmul.f32 %v351, %v372
  %v384 = vmul.f32 %v352, %v382
  %v385 = vld [vmem:[%s7] sm:$0x1]
  %v387 = vperm.slane %v385, 0
  %v389 = vmul.f32 %v383, %v387
  %v390 = vmul.f32 %v384, %v387
  %v391 = vld [vmem:[%s8] sm:$0x1]
  %v393 = vperm.slane %v391, 0
  %v395 = vadd.f32 %v389, %v393
  %v396 = vadd.f32 %v390, %v393
  %397 = vst [vmem:[%s13] sm:$0xff] %v395
  %398 = vst [vmem:[%s13 + $0x8] sm:$0xff] %v396
  %v399 = vpack.c.bf16 %v396, %v395
  %v400 = vld [vmem:[%s9] sm:$0xf]
  %v401 = vld [vmem:[%s9 + $0x4] sm:$0xf]
  %v402 = vld [vmem:[%s9 + $0x8] sm:$0xf]
  %v403 = vld [vmem:[%s9 + $0xc] sm:$0xf]
  %v404 = vld [vmem:[%s9 + $0x10] sm:$0xf]
  %v405 = vld [vmem:[%s9 + $0x14] sm:$0xf]
  %v406 = vld [vmem:[%s9 + $0x18] sm:$0xf]
  %v407 = vld [vmem:[%s9 + $0x1c] sm:$0xf]
  %v408 = vld [vmem:[%s9 + $0x20] sm:$0xf]
  %v409 = vld [vmem:[%s9 + $0x24] sm:$0xf]
  %v410 = vld [vmem:[%s9 + $0x28] sm:$0xf]
  %v411 = vld [vmem:[%s9 + $0x2c] sm:$0xf]
  %v412 = vld [vmem:[%s9 + $0x30] sm:$0xf]
  %v413 = vld [vmem:[%s9 + $0x34] sm:$0xf]
  %v414 = vld [vmem:[%s9 + $0x38] sm:$0xf]
  %v415 = vld [vmem:[%s9 + $0x3c] sm:$0xf]
  %v416 = vld [vmem:[%s10] sm:$0x1]
  %v418 = vperm.slane %v416, 0
  %v436 = vunpack.c.l.b16 %v400
  %v437 = vunpack.c.l.b16 %v401
  %v438 = vunpack.c.l.b16 %v402
  %v439 = vunpack.c.l.b16 %v403
  %v440 = vunpack.c.l.b16 %v404
  %v441 = vunpack.c.l.b16 %v405
  %v442 = vunpack.c.l.b16 %v406
  %v443 = vunpack.c.l.b16 %v407
  %v444 = vunpack.c.l.b16 %v408
  %v445 = vunpack.c.l.b16 %v409
  %v446 = vunpack.c.l.b16 %v410
  %v447 = vunpack.c.l.b16 %v411
  %v448 = vunpack.c.l.b16 %v412
  %v449 = vunpack.c.l.b16 %v413
  %v450 = vunpack.c.l.b16 %v414
  %v451 = vunpack.c.l.b16 %v415
  %v452 = vpack.c.b16 %v437, %v436
  %v453 = vpack.c.b16 %v439, %v438
  %v454 = vpack.c.b16 %v441, %v440
  %v455 = vpack.c.b16 %v443, %v442
  %v456 = vpack.c.b16 %v445, %v444
  %v457 = vpack.c.b16 %v447, %v446
  %v458 = vpack.c.b16 %v449, %v448
  %v459 = vpack.c.b16 %v451, %v450
  %468 = vmatpush.bf16.msra.mxu0 %v459
  %469 = vmatpush.bf16.msra.mxu0 %v458
  %470 = vmatpush.bf16.msra.mxu0 %v457
  %471 = vmatpush.bf16.msra.mxu0 %v456
  %472 = vmatpush.bf16.msra.mxu0 %v455
  %473 = vmatpush.bf16.msra.mxu0 %v454
  %474 = vmatpush.bf16.msra.mxu0 %v453
  %475 = vmatpush.bf16.msra.mxu0 %v452
  %476 = vmatmul.bf16.gmra.mxu0 %v399
  %v477 = vpop.f32.mrf.mxu0
  %v478 = vadd.f32 %v418, %v477
  %v479 = vpop.f32.mrf.mxu0
  %v480 = vadd.f32 %v418, %v479
  %481 = vdwg.mxu0
  %v482 = vmul.f32 %v478, 0.17677669
  %v483 = vmul.f32 %v480, 0.17677669
  %v484 = vpack.c.bf16 %v482, %v482
  %v485 = vpack.c.bf16 %v483, %v483
  %486 = vst [vmem:[%s14] sm:$0xf] %v484
  %487 = vst [vmem:[%s14 + $0x4] sm:$0xf] %v485
  %v488 = vld [vmem:[%s1] sm:$0xff]
  %v489 = vld [vmem:[%s1 + $0x8] sm:$0xff]
  %v490 = vld [vmem:[%s1 + $0x10] sm:$0xff]
  %v491 = vld [vmem:[%s1 + $0x18] sm:$0xff]
  %v492 = vld [vmem:[%s1 + $0x20] sm:$0xff]
  %v493 = vld [vmem:[%s1 + $0x28] sm:$0xff]
  %v494 = vld [vmem:[%s1 + $0x30] sm:$0xff]
  %v495 = vld [vmem:[%s1 + $0x38] sm:$0xff]
  %v496 = vld [vmem:[%s1 + $0x40] sm:$0xff]
  %v497 = vld [vmem:[%s1 + $0x48] sm:$0xff]
  %v498 = vld [vmem:[%s1 + $0x50] sm:$0xff]
  %v499 = vld [vmem:[%s1 + $0x58] sm:$0xff]
  %v500 = vld [vmem:[%s1 + $0x60] sm:$0xff]
  %v501 = vld [vmem:[%s1 + $0x68] sm:$0xff]
  %v502 = vld [vmem:[%s1 + $0x70] sm:$0xff]
  %v503 = vld [vmem:[%s1 + $0x78] sm:$0xff]
  %v504 = vld [vmem:[%s1 + $0x80] sm:$0xff]
  %v505 = vld [vmem:[%s1 + $0x88] sm:$0xff]
  %v506 = vld [vmem:[%s1 + $0x90] sm:$0xff]
  %v507 = vld [vmem:[%s1 + $0x98] sm:$0xff]
  %v508 = vld [vmem:[%s1 + $0xa0] sm:$0xff]
  %v509 = vld [vmem:[%s1 + $0xa8] sm:$0xff]
  %v510 = vld [vmem:[%s1 + $0xb0] sm:$0xff]
  %v511 = vld [vmem:[%s1 + $0xb8] sm:$0xff]
  %v512 = vld [vmem:[%s1 + $0xc0] sm:$0xff]
  %v513 = vld [vmem:[%s1 + $0xc8] sm:$0xff]
  %v514 = vld [vmem:[%s1 + $0xd0] sm:$0xff]
  %v515 = vld [vmem:[%s1 + $0xd8] sm:$0xff]
  %v516 = vld [vmem:[%s1 + $0xe0] sm:$0xff]
  %v517 = vld [vmem:[%s1 + $0xe8] sm:$0xff]
  %v518 = vld [vmem:[%s1 + $0xf0] sm:$0xff]
  %v519 = vld [vmem:[%s1 + $0xf8] sm:$0xff]
  %v520 = vpack.c.bf16 %v489, %v488
  %v521 = vpack.c.bf16 %v491, %v490
  %v522 = vpack.c.bf16 %v493, %v492
  %v523 = vpack.c.bf16 %v495, %v494
  %v524 = vpack.c.bf16 %v497, %v496
  %v525 = vpack.c.bf16 %v499, %v498
  %v526 = vpack.c.bf16 %v501, %v500
  %v527 = vpack.c.bf16 %v503, %v502
  %v528 = vpack.c.bf16 %v505, %v504
  %v529 = vpack.c.bf16 %v507, %v506
  %v530 = vpack.c.bf16 %v509, %v508
  %v531 = vpack.c.bf16 %v511, %v510
  %v532 = vpack.c.bf16 %v513, %v512
  %v533 = vpack.c.bf16 %v515, %v514
  %v534 = vpack.c.bf16 %v517, %v516
  %v535 = vpack.c.bf16 %v519, %v518
  %v536 = vld [vmem:[%s11] sm:$0xff]
  %v537 = vld [vmem:[%s11 + $0x8] sm:$0xff]
  %v538 = vld [vmem:[%s11 + $0x10] sm:$0xff]
  %v539 = vld [vmem:[%s11 + $0x18] sm:$0xff]
  %v540 = vld [vmem:[%s11 + $0x20] sm:$0xff]
  %v541 = vld [vmem:[%s11 + $0x28] sm:$0xff]
  %v542 = vld [vmem:[%s11 + $0x30] sm:$0xff]
  %v543 = vld [vmem:[%s11 + $0x38] sm:$0xff]
  %v544 = vld [vmem:[%s11 + $0x40] sm:$0xff]
  %v545 = vld [vmem:[%s11 + $0x48] sm:$0xff]
  %v546 = vld [vmem:[%s11 + $0x50] sm:$0xff]
  %v547 = vld [vmem:[%s11 + $0x58] sm:$0xff]
  %v548 = vld [vmem:[%s11 + $0x60] sm:$0xff]
  %v549 = vld [vmem:[%s11 + $0x68] sm:$0xff]
  %v550 = vld [vmem:[%s11 + $0x70] sm:$0xff]
  %v551 = vld [vmem:[%s11 + $0x78] sm:$0xff]
  %v552 = vld [vmem:[%s12] sm:$0x3]
  %v554 = vperm.slane %v552, 0
  %v555 = vperm.slane %v552, 1
  %v574 = vunpack.c.l.b16 %v536
  %v575 = vunpack.c.h.b16 %v536
  %v576 = vunpack.c.l.b16 %v537
  %v577 = vunpack.c.h.b16 %v537
  %v578 = vunpack.c.l.b16 %v538
  %v579 = vunpack.c.h.b16 %v538
  %v580 = vunpack.c.l.b16 %v539
  %v581 = vunpack.c.h.b16 %v539
  %v582 = vunpack.c.l.b16 %v540
  %v583 = vunpack.c.h.b16 %v540
  %v584 = vunpack.c.l.b16 %v541
  %v585 = vunpack.c.h.b16 %v541
  %v586 = vunpack.c.l.b16 %v542
  %v587 = vunpack.c.h.b16 %v542
  %v588 = vunpack.c.l.b16 %v543
  %v589 = vunpack.c.h.b16 %v543
  %v590 = vunpack.c.l.b16 %v544
  %v591 = vunpack.c.h.b16 %v544
  %v592 = vunpack.c.l.b16 %v545
  %v593 = vunpack.c.h.b16 %v545
  %v594 = vunpack.c.l.b16 %v546
  %v595 = vunpack.c.h.b16 %v546
  %v596 = vunpack.c.l.b16 %v547
  %v597 = vunpack.c.h.b16 %v547
  %v598 = vunpack.c.l.b16 %v548
  %v599 = vunpack.c.h.b16 %v548
  %v600 = vunpack.c.l.b16 %v549
  %v601 = vunpack.c.h.b16 %v549
  %v602 = vunpack.c.l.b16 %v550
  %v603 = vunpack.c.h.b16 %v550
  %v604 = vunpack.c.l.b16 %v551
  %v605 = vunpack.c.h.b16 %v551
  %v606 = vpack.c.b16 %v576, %v574
  %v607 = vpack.c.b16 %v577, %v575
  %v608 = vpack.c.b16 %v580, %v578
  %v609 = vpack.c.b16 %v581, %v579
  %v610 = vpack.c.b16 %v584, %v582
  %v611 = vpack.c.b16 %v585, %v583
  %v612 = vpack.c.b16 %v588, %v586
  %v613 = vpack.c.b16 %v589, %v587
  %v614 = vpack.c.b16 %v592, %v590
  %v615 = vpack.c.b16 %v593, %v591
  %v616 = vpack.c.b16 %v596, %v594
  %v617 = vpack.c.b16 %v597, %v595
  %v618 = vpack.c.b16 %v600, %v598
  %v619 = vpack.c.b16 %v601, %v599
  %v620 = vpack.c.b16 %v604, %v602
  %v621 = vpack.c.b16 %v605, %v603
  %638 = vmatpush.bf16.msra.mxu0 %v620
  %639 = vmatpush.bf16.msra.mxu0 %v618
  %640 = vmatpush.bf16.msra.mxu0 %v616
  %641 = vmatpush.bf16.msra.mxu0 %v614
  %642 = vmatpush.bf16.msra.mxu0 %v612
  %643 = vmatpush.bf16.msra.mxu0 %v610
  %644 = vmatpush.bf16.msra.mxu0 %v608
  %645 = vmatpush.bf16.msra.mxu0 %v606
  %646 = vmatmul.bf16.gmra.mxu0 %v520
  %v647 = vpop.f32.mrf.mxu0
  %v648 = vadd.f32 %v554, %v647
  %v649 = vpop.f32.mrf.mxu0
  %v650 = vadd.f32 %v554, %v649
  %651 = vmatmul.bf16.gmra.mxu0 %v521
  %v652 = vpop.f32.mrf.mxu0
  %v653 = vadd.f32 %v554, %v652
  %v654 = vpop.f32.mrf.mxu0
  %v655 = vadd.f32 %v554, %v654
  %656 = vmatmul.bf16.gmra.mxu0 %v522
  %v657 = vpop.f32.mrf.mxu0
  %v658 = vadd.f32 %v554, %v657
  %v659 = vpop.f32.mrf.mxu0
  %v660 = vadd.f32 %v554, %v659
  %661 = vmatmul.bf16.gmra.mxu0 %v523
  %v662 = vpop.f32.mrf.mxu0
  %v663 = vadd.f32 %v554, %v662
  %v664 = vpop.f32.mrf.mxu0
  %v665 = vadd.f32 %v554, %v664
  %666 = vmatmul.bf16.gmra.mxu0 %v524
  %v667 = vpop.f32.mrf.mxu0
  %v668 = vadd.f32 %v554, %v667
  %v669 = vpop.f32.mrf.mxu0
  %v670 = vadd.f32 %v554, %v669
  %671 = vmatmul.bf16.gmra.mxu0 %v525
  %v672 = vpop.f32.mrf.mxu0
  %v673 = vadd.f32 %v554, %v672
  %v674 = vpop.f32.mrf.mxu0
  %v675 = vadd.f32 %v554, %v674
  %676 = vmatmul.bf16.gmra.mxu0 %v526
  %v677 = vpop.f32.mrf.mxu0
  %v678 = vadd.f32 %v554, %v677
  %v679 = vpop.f32.mrf.mxu0
  %v680 = vadd.f32 %v554, %v679
  %681 = vmatmul.bf16.gmra.mxu0 %v527
  %v682 = vpop.f32.mrf.mxu0
  %v683 = vadd.f32 %v554, %v682
  %v684 = vpop.f32.mrf.mxu0
  %v685 = vadd.f32 %v554, %v684
  %686 = vmatmul.bf16.gmra.mxu0 %v528
  %v687 = vpop.f32.mrf.mxu0
  %v688 = vadd.f32 %v554, %v687
  %v689 = vpop.f32.mrf.mxu0
  %v690 = vadd.f32 %v554, %v689
  %691 = vmatmul.bf16.gmra.mxu0 %v529
  %v692 = vpop.f32.mrf.mxu0
  %v693 = vadd.f32 %v554, %v692
  %v694 = vpop.f32.mrf.mxu0
  %v695 = vadd.f32 %v554, %v694
  %696 = vmatmul.bf16.gmra.mxu0 %v530
  %v697 = vpop.f32.mrf.mxu0
  %v698 = vadd.f32 %v554, %v697
  %v699 = vpop.f32.mrf.mxu0
  %v700 = vadd.f32 %v554, %v699
  %701 = vmatmul.bf16.gmra.mxu0 %v531
  %v702 = vpop.f32.mrf.mxu0
  %v703 = vadd.f32 %v554, %v702
  %v704 = vpop.f32.mrf.mxu0
  %v705 = vadd.f32 %v554, %v704
  %706 = vmatmul.bf16.gmra.mxu0 %v532
  %v707 = vpop.f32.mrf.mxu0
  %v708 = vadd.f32 %v554, %v707
  %v709 = vpop.f32.mrf.mxu0
  %v710 = vadd.f32 %v554, %v709
  %711 = vmatmul.bf16.gmra.mxu0 %v533
  %v712 = vpop.f32.mrf.mxu0
  %v713 = vadd.f32 %v554, %v712
  %v714 = vpop.f32.mrf.mxu0
  %v715 = vadd.f32 %v554, %v714
  %716 = vmatmul.bf16.gmra.mxu0 %v534
  %v717 = vpop.f32.mrf.mxu0
  %v718 = vadd.f32 %v554, %v717
  %v719 = vpop.f32.mrf.mxu0
  %v720 = vadd.f32 %v554, %v719
  %721 = vmatmul.bf16.gmra.mxu0 %v535
  %v722 = vpop.f32.mrf.mxu0
  %v723 = vadd.f32 %v554, %v722
  %v724 = vpop.f32.mrf.mxu0
  %v725 = vadd.f32 %v554, %v724
  %726 = vdwg.mxu0
  %727 = vmatpush.bf16.msra.mxu0 %v621
  %728 = vmatpush.bf16.msra.mxu0 %v619
  %729 = vmatpush.bf16.msra.mxu0 %v617
  %730 = vmatpush.bf16.msra.mxu0 %v615
  %731 = vmatpush.bf16.msra.mxu0 %v613
  %732 = vmatpush.bf16.msra.mxu0 %v611
  %733 = vmatpush.bf16.msra.mxu0 %v609
  %734 = vmatpush.bf16.msra.mxu0 %v607
  %735 = vmatmul.bf16.gmra.mxu0 %v520
  %v736 = vpop.f32.mrf.mxu0
  %v737 = vadd.f32 %v555, %v736
  %v738 = vpop.f32.mrf.mxu0
  %v739 = vadd.f32 %v555, %v738
  %740 = vmatmul.bf16.gmra.mxu0 %v521
  %v741 = vpop.f32.mrf.mxu0
  %v742 = vadd.f32 %v555, %v741
  %v743 = vpop.f32.mrf.mxu0
  %v744 = vadd.f32 %v555, %v743
  %745 = vmatmul.bf16.gmra.mxu0 %v522
  %v746 = vpop.f32.mrf.mxu0
  %v747 = vadd.f32 %v555, %v746
  %v748 = vpop.f32.mrf.mxu0
  %v749 = vadd.f32 %v555, %v748
  %750 = vmatmul.bf16.gmra.mxu0 %v523
  %v751 = vpop.f32.mrf.mxu0
  %v752 = vadd.f32 %v555, %v751
  %v753 = vpop.f32.mrf.mxu0
  %v754 = vadd.f32 %v555, %v753
  %755 = vmatmul.bf16.gmra.mxu0 %v524
  %v756 = vpop.f32.mrf.mxu0
  %v757 = vadd.f32 %v555, %v756
  %v758 = vpop.f32.mrf.mxu0
  %v759 = vadd.f32 %v555, %v758
  %760 = vmatmul.bf16.gmra.mxu0 %v525
  %v761 = vpop.f32.mrf.mxu0
  %v762 = vadd.f32 %v555, %v761
  %v763 = vpop.f32.mrf.mxu0
  %v764 = vadd.f32 %v555, %v763
  %765 = vmatmul.bf16.gmra.mxu0 %v526
  %v766 = vpop.f32.mrf.mxu0
  %v767 = vadd.f32 %v555, %v766
  %v768 = vpop.f32.mrf.mxu0
  %v769 = vadd.f32 %v555, %v768
  %770 = vmatmul.bf16.gmra.mxu0 %v527
  %v771 = vpop.f32.mrf.mxu0
  %v772 = vadd.f32 %v555, %v771
  %v773 = vpop.f32.mrf.mxu0
  %v774 = vadd.f32 %v555, %v773
  %775 = vmatmul.bf16.gmra.mxu0 %v528
  %v776 = vpop.f32.mrf.mxu0
  %v777 = vadd.f32 %v555, %v776
  %v778 = vpop.f32.mrf.mxu0
  %v779 = vadd.f32 %v555, %v778
  %780 = vmatmul.bf16.gmra.mxu0 %v529
  %v781 = vpop.f32.mrf.mxu0
  %v782 = vadd.f32 %v555, %v781
  %v783 = vpop.f32.mrf.mxu0
  %v784 = vadd.f32 %v555, %v783
  %785 = vmatmul.bf16.gmra.mxu0 %v530
  %v786 = vpop.f32.mrf.mxu0
  %v787 = vadd.f32 %v555, %v786
  %v788 = vpop.f32.mrf.mxu0
  %v789 = vadd.f32 %v555, %v788
  %790 = vmatmul.bf16.gmra.mxu0 %v531
  %v791 = vpop.f32.mrf.mxu0
  %v792 = vadd.f32 %v555, %v791
  %v793 = vpop.f32.mrf.mxu0
  %v794 = vadd.f32 %v555, %v793
  %795 = vmatmul.bf16.gmra.mxu0 %v532
  %v796 = vpop.f32.mrf.mxu0
  %v797 = vadd.f32 %v555, %v796
  %v798 = vpop.f32.mrf.mxu0
  %v799 = vadd.f32 %v555, %v798
  %800 = vmatmul.bf16.gmra.mxu0 %v533
  %v801 = vpop.f32.mrf.mxu0
  %v802 = vadd.f32 %v555, %v801
  %v803 = vpop.f32.mrf.mxu0
  %v804 = vadd.f32 %v555, %v803
  %805 = vmatmul.bf16.gmra.mxu0 %v534
  %v806 = vpop.f32.mrf.mxu0
  %v807 = vadd.f32 %v555, %v806
  %v808 = vpop.f32.mrf.mxu0
  %v809 = vadd.f32 %v555, %v808
  %810 = vmatmul.bf16.gmra.mxu0 %v535
  %v811 = vpop.f32.mrf.mxu0
  %v812 = vadd.f32 %v555, %v811
  %v813 = vpop.f32.mrf.mxu0
  %v814 = vadd.f32 %v555, %v813
  %815 = vdwg.mxu0
  %v816 = vpack.c.bf16 %v737, %v648
  %v817 = vpack.c.bf16 %v739, %v650
  %v818 = vpack.c.bf16 %v742, %v653
  %v819 = vpack.c.bf16 %v744, %v655
  %v820 = vpack.c.bf16 %v747, %v658
  %v821 = vpack.c.bf16 %v749, %v660
  %v822 = vpack.c.bf16 %v752, %v663
  %v823 = vpack.c.bf16 %v754, %v665
  %v824 = vpack.c.bf16 %v757, %v668
  %v825 = vpack.c.bf16 %v759, %v670
  %v826 = vpack.c.bf16 %v762, %v673
  %v827 = vpack.c.bf16 %v764, %v675
  %v828 = vpack.c.bf16 %v767, %v678
  %v829 = vpack.c.bf16 %v769, %v680
  %v830 = vpack.c.bf16 %v772, %v683
  %v831 = vpack.c.bf16 %v774, %v685
  %v832 = vpack.c.bf16 %v777, %v688
  %v833 = vpack.c.bf16 %v779, %v690
  %v834 = vpack.c.bf16 %v782, %v693
  %v835 = vpack.c.bf16 %v784, %v695
  %v836 = vpack.c.bf16 %v787, %v698
  %v837 = vpack.c.bf16 %v789, %v700
  %v838 = vpack.c.bf16 %v792, %v703
  %v839 = vpack.c.bf16 %v794, %v705
  %v840 = vpack.c.bf16 %v797, %v708
  %v841 = vpack.c.bf16 %v799, %v710
  %v842 = vpack.c.bf16 %v802, %v713
  %v843 = vpack.c.bf16 %v804, %v715
  %v844 = vpack.c.bf16 %v807, %v718
  %v845 = vpack.c.bf16 %v809, %v720
  %v846 = vpack.c.bf16 %v812, %v723
  %v847 = vpack.c.bf16 %v814, %v725
  %848 = vst [vmem:[%s15] sm:$0xff] %v816
  %849 = vst [vmem:[%s15 + $0x8] sm:$0xff] %v817
  %850 = vst [vmem:[%s15 + $0x10] sm:$0xff] %v818
  %851 = vst [vmem:[%s15 + $0x18] sm:$0xff] %v819
  %852 = vst [vmem:[%s15 + $0x20] sm:$0xff] %v820
  %853 = vst [vmem:[%s15 + $0x28] sm:$0xff] %v821
  %854 = vst [vmem:[%s15 + $0x30] sm:$0xff] %v822
  %855 = vst [vmem:[%s15 + $0x38] sm:$0xff] %v823
  %856 = vst [vmem:[%s15 + $0x40] sm:$0xff] %v824
  %857 = vst [vmem:[%s15 + $0x48] sm:$0xff] %v825
  %858 = vst [vmem:[%s15 + $0x50] sm:$0xff] %v826
  %859 = vst [vmem:[%s15 + $0x58] sm:$0xff] %v827
  %860 = vst [vmem:[%s15 + $0x60] sm:$0xff] %v828
  %861 = vst [vmem:[%s15 + $0x68] sm:$0xff] %v829
  %862 = vst [vmem:[%s15 + $0x70] sm:$0xff] %v830
  %863 = vst [vmem:[%s15 + $0x78] sm:$0xff] %v831
  %864 = vst [vmem:[%s15 + $0x80] sm:$0xff] %v832
  %865 = vst [vmem:[%s15 + $0x88] sm:$0xff] %v833
  %866 = vst [vmem:[%s15 + $0x90] sm:$0xff] %v834
  %867 = vst [vmem:[%s15 + $0x98] sm:$0xff] %v835
  %868 = vst [vmem:[%s15 + $0xa0] sm:$0xff] %v836
  %869 = vst [vmem:[%s15 + $0xa8] sm:$0xff] %v837
  %870 = vst [vmem:[%s15 + $0xb0] sm:$0xff] %v838
  %871 = vst [vmem:[%s15 + $0xb8] sm:$0xff] %v839
  %872 = vst [vmem:[%s15 + $0xc0] sm:$0xff] %v840
  %873 = vst [vmem:[%s15 + $0xc8] sm:$0xff] %v841
  %874 = vst [vmem:[%s15 + $0xd0] sm:$0xff] %v842
  %875 = vst [vmem:[%s15 + $0xd8] sm:$0xff] %v843
  %876 = vst [vmem:[%s15 + $0xe0] sm:$0xff] %v844
  %877 = vst [vmem:[%s15 + $0xe8] sm:$0xff] %v845
  %878 = vst [vmem:[%s15 + $0xf0] sm:$0xff] %v846
  %879 = vst [vmem:[%s15 + $0xf8] sm:$0xff] %v847
  // Predicated region
  $region54: #{lightconv_decoder_layer_forward.3} parent=0 // pred_check
    _
  $region55: #{lightconv_decoder_layer_forward.3} parent=0 // pred_check_branch
    %881 = sbr.rel (0) target = $region57
  $region56: #{lightconv_decoder_layer_forward.3} parent=0 // pred_region
    _
  $region57: #{lightconv_decoder_layer_forward.3} parent=0 // pred_fallthru
    _
  // Predicated region
  $region58: #{lightconv_decoder_layer_forward.3} parent=0 // pred_check
    _
  $region59: #{lightconv_decoder_layer_forward.3} parent=0 // pred_check_branch
    %883 = sbr.rel (0) target = $region61
  $region60: #{lightconv_decoder_layer_forward.3} parent=0 // pred_region
    _
  $region61: #{lightconv_decoder_layer_forward.3} parent=0 // pred_fallthru
    _
  // Predicated region
  $region62: #{lightconv_decoder_layer_forward.3} parent=0 // pred_check
    _
  $region63: #{lightconv_decoder_layer_forward.3} parent=0 // pred_check_branch
    %885 = sbr.rel (0) target = $region65
  $region64: #{lightconv_decoder_layer_forward.3} parent=0 // pred_region
    _
  $region65: #{lightconv_decoder_layer_forward.3} parent=0 // pred_fallthru
    _
  // Predicated region
  $region66: #{lightconv_decoder_layer_forward.3} parent=0 // pred_check
    _
  $region67: #{lightconv_decoder_layer_forward.3} parent=0 // pred_check_branch
    %887 = sbr.rel (0) target = $region69
  $region68: #{lightconv_decoder_layer_forward.3} parent=0 // pred_region
    _
  $region69: #{lightconv_decoder_layer_forward.3} parent=0 // pred_fallthru
    _
  // Predicated region
  $region70: #{lightconv_decoder_layer_forward.3} parent=0 // pred_check
    _
  $region71: #{lightconv_decoder_layer_forward.3} parent=0 // pred_check_branch
    %889 = sbr.rel (0) target = $region73
  $region72: #{lightconv_decoder_layer_forward.3} parent=0 // pred_region
    _
  $region73: #{lightconv_decoder_layer_forward.3} parent=0 // pred_fallthru
    _
  // Predicated region
  $region74: #{lightconv_decoder_layer_forward.3} parent=0 // pred_check
    _
  $region75: #{lightconv_decoder_layer_forward.3} parent=0 // pred_check_branch
    %891 = sbr.rel (0) target = $region77
  $region76: #{lightconv_decoder_layer_forward.3} parent=0 // pred_region
    _
  $region77: #{lightconv_decoder_layer_forward.3} parent=0 // pred_fallthru
    _

</llo_original>
